<compile_context>
chip_gen: v5e
topology: v5e:2x2
jax: 0.10.0
libtpu: 0.0.40
codegen_flags: <defaults>
</compile_context>

<pallas_src>
import functools

import numpy as np

import jax
import jax.numpy as jnp
from jax import lax
from jax.experimental import pallas as pl
from jax.experimental.pallas import tpu as pltpu

KS = 5      # kernel size of the two main convs
PAD = 2     # padding of the two main convs
EPS = 1e-5  # nn.InstanceNorm2d default eps (affine=False)


def _round_up(x, m):
    return (x + m - 1) // m * m


# ----------------------------- in-kernel helpers -----------------------------

def _prelu(y, a):
    return jnp.where(y >= 0, y, a * y)


def _masked_instance_norm(y, mask, inv_count):
    """y: (C, L) f32, mask: (1, L) with exactly 1/inv_count ones.

    Per-channel instance norm over the valid pixels; exact zeros elsewhere.
    """
    ym = y * mask
    mean = jnp.sum(ym, axis=-1, keepdims=True) * inv_count
    d = (ym - mean) * mask
    var = jnp.sum(d * d, axis=-1, keepdims=True) * inv_count
    return d * lax.rsqrt(var + EPS)


# --------------------------------- kernel ------------------------------------

def resblock_kernel(x_ref, w1_ref, w2_ref, ws_ref, m1_ref, m2_ref, prelu_ref,
                    o_ref, col1_ref, col2_ref, h1_ref, *,
                    hw, Wp, OFF, halo, L1, L2p, c_in_p, planes_p, n_img, use_scale):
    # PReLU slopes (one scalar per nn.PReLU instance) from SMEM.
    a1, a2, a3 = prelu_ref[0], prelu_ref[1], prelu_ref[2]
    inv_hw = 1.0 / float(hw)
    m1 = m1_ref[...]                      # (1, L1)  valid pixels on the padded grid
    m2 = m2_ref[...]                      # (1, L2p) valid pixels on the output window

    for im in range(n_img):               # images packed per grid step (unrolled)
        # ---- conv1: stack the 25 shifted lane-windows into the im2col scratch
        # (25 aligned full-width stores), then ONE fused MXU contraction, K=25*C_in_p.
        for t in range(KS * KS):
            dy, dx = divmod(t, KS)
            s = OFF - halo + dy * Wp + dx            # static, >= 0 by construction
            col1_ref[pl.ds(t * c_in_p, c_in_p), :] = x_ref[im, :, s:s + L1]
        acc1 = jnp.dot(w1_ref[...], col1_ref[...], preferred_element_type=jnp.float32)
        # Masked InstanceNorm + PReLU: exactly zero on the halo / tail, i.e. h1 already
        # IS the zero-padded map conv2 needs.  One aligned lane-dense bf16 store.
        h1 = _prelu(_masked_instance_norm(acc1, m1, inv_hw), a1)
        h1_ref[...] = h1.astype(h1_ref.dtype)

        # ---- conv2: same im2col-by-tap scheme on h1, fused K = 25*planes_p.
        # (Scratch fills sit in the same basic block as the norm/PReLU VPU work above
        # so the LLO scheduler can co-issue them — relevant for v5e's single vst slot.)
        for t in range(KS * KS):
            dy, dx = divmod(t, KS)
            s = dy * Wp + dx
            col2_ref[pl.ds(t * planes_p, planes_p), :] = h1_ref[:, s:s + L2p]
        acc2 = jnp.dot(w2_ref[...], col2_ref[...], preferred_element_type=jnp.float32)
        h2 = _prelu(_masked_instance_norm(acc2, m2, inv_hw), a2)

        # ---- residual path
        xwin = x_ref[im, :, OFF + halo:OFF + halo + L2p]
        if use_scale:
            # scale_residual: 1x1 conv (single MXU dot) + InstanceNorm, no activation.
            res = jnp.dot(ws_ref[...], xwin, preferred_element_type=jnp.float32)
            res = _masked_instance_norm(res, m2, inv_hw)
        else:
            # identity skip (start_filts == end_filts): raw input as residual.
            res = xwin.astype(jnp.float32)

        # ---- residual add + block-level PReLU; lane-dense unmasked store (L2p % 128 == 0).
        o_ref[im] = _prelu(h2 + res, a3)


# -------------------------------- wrapper -------------------------------------

def resblock_x2(x, params, *, planes, images_per_step=None):
    """x: (N, C_in, H, W) float32 (NCHW). Returns (N, C_out, H, W) float32."""
    N, c_in, H, W = x.shape
    w1, w2 = params["w1"], params["w2"]
    prelu = params["prelu"]
    c_out = w2.shape[0]
    use_scale = (c_in != c_out)            # stride == 1, identity_skip=True semantics

    # Channel dims padded to 16 (bf16 sublane packing); zero channels are exact no-ops.
    c_in_p, planes_p, c_out_p = (_round_up(v, 16) for v in (c_in, planes, c_out))

    Hp, Wp = H + 2 * PAD, W + 2 * PAD
    halo = PAD * Wp + PAD                                  # flat offset of pixel (0, 0)
    L2 = H * Wp                                            # real output window length
    L2p = _round_up(L2, 128)                               # lane-dense output window
    L1 = _round_up(max(Hp * Wp, 2 * halo + L2p), 128)      # conv1 / h1 grid length
    OFF = _round_up(halo, 8)                               # margin so tap starts >= 0
    SRC = _round_up(OFF + halo + L1, 128)                  # padded-flat input length

    # Images packed per grid step: amortize per-step overhead, but keep >= 2 parallel
    # grid steps when possible (v7x has 2 TensorCores per chip).
    if images_per_step is None:
        cap = min(8, max(1, N // 2))
        images_per_step = max(d for d in range(1, cap + 1) if N % d == 0)
    n_img = images_per_step
    assert N % n_img == 0, "images_per_step must divide the batch size"

    # Glue (plain XLA): NCHW -> channel-padded, zero-padded, row-flattened bf16 slab.
    xp = jnp.pad(x, ((0, 0), (0, c_in_p - c_in), (PAD, PAD), (PAD, PAD)))
    xs = jnp.pad(xp.reshape(N, c_in_p, Hp * Wp),
                 ((0, 0), (0, 0), (OFF, SRC - OFF - Hp * Wp))).astype(jnp.bfloat16)

    def conv_w_fused(w, co, co_p, ci, ci_p):
        # OIHW -> (O, tap, I) -> pad -> lane-dense (O_p, KS*KS*I_p).  Column index
        # tap*I_p + i matches the im2col scratch row layout built in the kernel.
        wt = jnp.transpose(w, (0, 2, 3, 1)).reshape(co, KS * KS, ci)
        wt = jnp.pad(wt, ((0, co_p - co), (0, 0), (0, ci_p - ci)))
        return wt.reshape(co_p, KS * KS * ci_p).astype(jnp.bfloat16)

    w1_k = conv_w_fused(w1, planes, planes_p, c_in, c_in_p)
    w2_k = conv_w_fused(w2, c_out, c_out_p, planes, planes_p)
    if use_scale:
        ws_k = jnp.pad(params["ws"][:, :, 0, 0],
                       ((0, c_out_p - c_out), (0, c_in_p - c_in))).astype(jnp.bfloat16)
    else:
        ws_k = jnp.zeros((c_out_p, c_in_p), jnp.bfloat16)  # unused (static branch)
    # NOTE: conv biases (b1, b2, bs) intentionally NOT passed — a per-channel constant
    # before InstanceNorm2d(affine=False) is exactly cancelled by the mean subtraction.

    # Valid-pixel masks on the flattened padded grid.
    def make_mask(length, offset):
        idx = np.arange(length) + offset
        r, c = idx // Wp, idx % Wp
        v = (r >= PAD) & (r < PAD + H) & (c >= PAD) & (c < PAD + W)
        return jnp.asarray(v[None, :], jnp.float32)

    mask1 = make_mask(L1, 0)        # conv1 grid (padded coordinates, zeroes the tail too)
    mask2 = make_mask(L2p, halo)    # output window (starts at image pixel (0, 0))

    kernel = functools.partial(
        resblock_kernel, hw=H * W, Wp=Wp, OFF=OFF, halo=halo, L1=L1, L2p=L2p,
        c_in_p=c_in_p, planes_p=planes_p, n_img=n_img, use_scale=use_scale)

    flops = 2 * N * H * W * (KS * KS * c_in * planes + KS * KS * planes * c_out
                             + (c_in * c_out if use_scale else 0))
    bytes_accessed = int(xs.size * 2 + w1_k.size * 2 + w2_k.size * 2 + ws_k.size * 2
                         + (mask1.size + mask2.size + prelu.size) * 4
                         + N * c_out_p * L2p * 4)
    cost = pl.CostEstimate(flops=flops,
                           transcendentals=int(N * (planes + 2 * c_out)),
                           bytes_accessed=bytes_accessed)

    out = pl.pallas_call(
        kernel,
        out_shape=jax.ShapeDtypeStruct((N, c_out_p, L2p), jnp.float32),
        grid=(N // n_img,),
        in_specs=[
            pl.BlockSpec((n_img, c_in_p, SRC), lambda g: (g, 0, 0)),           # x slab
            pl.BlockSpec((planes_p, KS * KS * c_in_p), lambda g: (0, 0)),      # w1 fused
            pl.BlockSpec((c_out_p, KS * KS * planes_p), lambda g: (0, 0)),     # w2 fused
            pl.BlockSpec((c_out_p, c_in_p), lambda g: (0, 0)),                 # 1x1 weights
            pl.BlockSpec((1, L1), lambda g: (0, 0)),                           # mask1
            pl.BlockSpec((1, L2p), lambda g: (0, 0)),                          # mask2
            pl.BlockSpec(memory_space=pltpu.MemorySpace.SMEM),                 # PReLU slopes
        ],
        out_specs=pl.BlockSpec((n_img, c_out_p, L2p), lambda g: (g, 0, 0)),
        scratch_shapes=[
            pltpu.VMEM((KS * KS * c_in_p, L1), jnp.bfloat16),    # conv1 im2col
            pltpu.VMEM((KS * KS * planes_p, L2p), jnp.bfloat16), # conv2 im2col
            pltpu.VMEM((planes_p, L1), jnp.bfloat16),            # h1 staging
        ],
        compiler_params=pltpu.CompilerParams(dimension_semantics=("parallel",)),
        cost_estimate=cost,
    )(xs, w1_k, w2_k, ws_k, mask1, mask2, prelu)

    # (N, C_out_p, L2p) -> NCHW: drop channel/lane padding and the W..W+4 halo columns.
    return out[:, :c_out, :L2].reshape(N, c_out, H, Wp)[:, :, :, :W]


# ----------------------- params + pure-JAX reference --------------------------

def init_params(key, c_in, planes, c_out):
    ks = jax.random.split(key, 6)
    return dict(
        w1=0.1 * jax.random.normal(ks[0], (planes, c_in, KS, KS), jnp.float32),
        b1=0.1 * jax.random.normal(ks[1], (planes,), jnp.float32),
        w2=0.1 * jax.random.normal(ks[2], (c_out, planes, KS, KS), jnp.float32),
        b2=0.1 * jax.random.normal(ks[3], (c_out,), jnp.float32),
        ws=0.1 * jax.random.normal(ks[4], (c_out, c_in, 1, 1), jnp.float32),
        bs=0.1 * jax.random.normal(ks[5], (c_out,), jnp.float32),
        # nn.PReLU() default init 0.25 — one scalar per PReLU instance
        # (conv1's, conv2's, and the block-level self.relu).
        prelu=jnp.full((3,), 0.25, jnp.float32),
    )


def _ref_inorm(y):  # y: (N, C, H, W)
    mean = jnp.mean(y, axis=(2, 3), keepdims=True)
    var = jnp.mean((y - mean) ** 2, axis=(2, 3), keepdims=True)
    return (y - mean) / jnp.sqrt(var + EPS)


def _ref_prelu(y, a):
    return jnp.where(y >= 0, y, a * y)


def resblock_ref(x, p):
    dn = ("NCHW", "OIHW", "NCHW")
    c_in, c_out = x.shape[1], p["w2"].shape[0]
    h = lax.conv_general_dilated(x, p["w1"], (1, 1), ((PAD, PAD), (PAD, PAD)),
                                 dimension_numbers=dn) + p["b1"][None, :, None, None]
    h = _ref_prelu(_ref_inorm(h), p["prelu"][0])
    h = lax.conv_general_dilated(h, p["w2"], (1, 1), ((PAD, PAD), (PAD, PAD)),
                                 dimension_numbers=dn) + p["b2"][None, :, None, None]
    h = _ref_prelu(_ref_inorm(h), p["prelu"][1])
    if c_in != c_out:
        r = lax.conv_general_dilated(x, p["ws"], (1, 1), ((0, 0), (0, 0)),
                                     dimension_numbers=dn) + p["bs"][None, :, None, None]
        r = _ref_inorm(r)
    else:
        r = x
    return _ref_prelu(h + r, p["prelu"][2])


if __name__ == "__main__":
    key = jax.random.PRNGKey(0)
    kx, kp = jax.random.split(key)

    # ResBlock_x2(start_filts=4, planes=8, end_filts=6, stride=1,
    #             norm='instance_norm', relu='PReLU')
    # start_filts != end_filts -> scale_residual (1x1 conv + InstanceNorm) is active.
    N, C_IN, PLANES, C_OUT, H, W = 2, 4, 8, 6, 16, 16

    x = jax.random.normal(kx, (N, C_IN, H, W), jnp.float32)
    params = init_params(kp, C_IN, PLANES, C_OUT)

    out = jax.block_until_ready(resblock_x2(x, params, planes=PLANES))
    assert out.shape == (N, C_OUT, H, W)

    ref = resblock_ref(x, params)
    # bf16 matmul operands (f32 accumulation / norm math) vs. the all-f32 reference.
    assert jnp.allclose(out, ref, atol=5e-2, rtol=5e-2), "mismatch vs JAX reference"

    print("KERNEL_OK")
</pallas_src>

<mosaic_0001>
module attributes {stable_mosaic.version = 11 : i64} {
  func.func @resblock_kernel(%arg0: i32, %arg1: memref<1x16x640xbf16, #tpu.memory_space<vmem>>, %arg2: memref<16x400xbf16, #tpu.memory_space<vmem>>, %arg3: memref<16x400xbf16, #tpu.memory_space<vmem>>, %arg4: memref<16x16xbf16, #tpu.memory_space<vmem>>, %arg5: memref<1x512xf32, #tpu.memory_space<vmem>>, %arg6: memref<1x384xf32, #tpu.memory_space<vmem>>, %arg7: memref<3xf32, #tpu.memory_space<smem>>, %arg8: memref<1x16x384xf32, #tpu.memory_space<vmem>>, %arg9: memref<400x512xbf16, #tpu.memory_space<vmem>>, %arg10: memref<400x384xbf16, #tpu.memory_space<vmem>>, %arg11: memref<16x512xbf16, #tpu.memory_space<vmem>>) attributes {dimension_semantics = [#tpu.dimension_semantics<parallel>], iteration_bounds = array<i64: 2>, scalar_prefetch = 0 : i64, scratch_operands = 3 : i64, tpu.core_type = #tpu.core_type<tc>, window_params = [{transform_indices = @transform_0, window_bounds = array<i64: 1, 16, 640>}, {pipeline_mode = #tpu.pipeline_mode<synchronous>, transform_indices = @transform_1, window_bounds = array<i64: 16, 400>}, {pipeline_mode = #tpu.pipeline_mode<synchronous>, transform_indices = @transform_2, window_bounds = array<i64: 16, 400>}, {pipeline_mode = #tpu.pipeline_mode<synchronous>, transform_indices = @transform_3, window_bounds = array<i64: 16, 16>}, {pipeline_mode = #tpu.pipeline_mode<synchronous>, transform_indices = @transform_4, window_bounds = array<i64: 1, 512>}, {pipeline_mode = #tpu.pipeline_mode<synchronous>, transform_indices = @transform_5, window_bounds = array<i64: 1, 384>}, {transform_indices = @transform_6, window_bounds = array<i64: 3>}, {transform_indices = @transform_7, window_bounds = array<i64: 1, 16, 384>}]} {
    %c0 = arith.constant 0 : index
    %0 = memref.load %arg7[%c0] : memref<3xf32, #tpu.memory_space<smem>>
    %c1 = arith.constant 1 : index
    %1 = memref.load %arg7[%c1] : memref<3xf32, #tpu.memory_space<smem>>
    %c2 = arith.constant 2 : index
    %2 = memref.load %arg7[%c2] : memref<3xf32, #tpu.memory_space<smem>>
    %c0_0 = arith.constant 0 : index
    %c0_1 = arith.constant 0 : index
    %3 = vector.load %arg5[%c0_0, %c0_1] : memref<1x512xf32, #tpu.memory_space<vmem>>, vector<1x512xf32>
    %c0_2 = arith.constant 0 : index
    %c0_3 = arith.constant 0 : index
    %4 = vector.load %arg6[%c0_2, %c0_3] : memref<1x384xf32, #tpu.memory_space<vmem>>, vector<1x384xf32>
    %c0_4 = arith.constant 0 : index
    %c0_5 = arith.constant 0 : index
    %c6 = arith.constant 6 : index
    %5 = vector.load %arg1[%c0_4, %c0_5, %c6] : memref<1x16x640xbf16, #tpu.memory_space<vmem>>, vector<1x16x512xbf16>
    %6 = vector.shape_cast %5 : vector<1x16x512xbf16> to vector<16x512xbf16>
    %c0_6 = arith.constant 0 : index
    %c0_7 = arith.constant 0 : index
    %7 = vector.load %arg9[%c0_6, %c0_7] : memref<400x512xbf16, #tpu.memory_space<vmem>>, vector<16x512xbf16>
    tpu.vector_store %arg9[%c0_6, %c0_7], %6 {strides = array<i32>} : memref<400x512xbf16, #tpu.memory_space<vmem>>, vector<16x512xbf16>,
    %c0_8 = arith.constant 0 : index
    %c0_9 = arith.constant 0 : index
    %c7 = arith.constant 7 : index
    %8 = vector.load %arg1[%c0_8, %c0_9, %c7] : memref<1x16x640xbf16, #tpu.memory_space<vmem>>, vector<1x16x512xbf16>
    %9 = vector.shape_cast %8 : vector<1x16x512xbf16> to vector<16x512xbf16>
    %c16 = arith.constant 16 : index
    %c0_10 = arith.constant 0 : index
    %10 = vector.load %arg9[%c16, %c0_10] : memref<400x512xbf16, #tpu.memory_space<vmem>>, vector<16x512xbf16>
    tpu.vector_store %arg9[%c16, %c0_10], %9 {strides = array<i32>} : memref<400x512xbf16, #tpu.memory_space<vmem>>, vector<16x512xbf16>,
    %c0_11 = arith.constant 0 : index
    %c0_12 = arith.constant 0 : index
    %c8 = arith.constant 8 : index
    %11 = vector.load %arg1[%c0_11, %c0_12, %c8] : memref<1x16x640xbf16, #tpu.memory_space<vmem>>, vector<1x16x512xbf16>
    %12 = vector.shape_cast %11 : vector<1x16x512xbf16> to vector<16x512xbf16>
    %c32 = arith.constant 32 : index
    %c0_13 = arith.constant 0 : index
    %13 = vector.load %arg9[%c32, %c0_13] : memref<400x512xbf16, #tpu.memory_space<vmem>>, vector<16x512xbf16>
    tpu.vector_store %arg9[%c32, %c0_13], %12 {strides = array<i32>} : memref<400x512xbf16, #tpu.memory_space<vmem>>, vector<16x512xbf16>,
    %c0_14 = arith.constant 0 : index
    %c0_15 = arith.constant 0 : index
    %c9 = arith.constant 9 : index
    %14 = vector.load %arg1[%c0_14, %c0_15, %c9] : memref<1x16x640xbf16, #tpu.memory_space<vmem>>, vector<1x16x512xbf16>
    %15 = vector.shape_cast %14 : vector<1x16x512xbf16> to vector<16x512xbf16>
    %c48 = arith.constant 48 : index
    %c0_16 = arith.constant 0 : index
    %16 = vector.load %arg9[%c48, %c0_16] : memref<400x512xbf16, #tpu.memory_space<vmem>>, vector<16x512xbf16>
    tpu.vector_store %arg9[%c48, %c0_16], %15 {strides = array<i32>} : memref<400x512xbf16, #tpu.memory_space<vmem>>, vector<16x512xbf16>,
    %c0_17 = arith.constant 0 : index
    %c0_18 = arith.constant 0 : index
    %c10 = arith.constant 10 : index
    %17 = vector.load %arg1[%c0_17, %c0_18, %c10] : memref<1x16x640xbf16, #tpu.memory_space<vmem>>, vector<1x16x512xbf16>
    %18 = vector.shape_cast %17 : vector<1x16x512xbf16> to vector<16x512xbf16>
    %c64 = arith.constant 64 : index
    %c0_19 = arith.constant 0 : index
    %19 = vector.load %arg9[%c64, %c0_19] : memref<400x512xbf16, #tpu.memory_space<vmem>>, vector<16x512xbf16>
    tpu.vector_store %arg9[%c64, %c0_19], %18 {strides = array<i32>} : memref<400x512xbf16, #tpu.memory_space<vmem>>, vector<16x512xbf16>,
    %c0_20 = arith.constant 0 : index
    %c0_21 = arith.constant 0 : index
    %c26 = arith.constant 26 : index
    %20 = vector.load %arg1[%c0_20, %c0_21, %c26] : memref<1x16x640xbf16, #tpu.memory_space<vmem>>, vector<1x16x512xbf16>
    %21 = vector.shape_cast %20 : vector<1x16x512xbf16> to vector<16x512xbf16>
    %c80 = arith.constant 80 : index
    %c0_22 = arith.constant 0 : index
    %22 = vector.load %arg9[%c80, %c0_22] : memref<400x512xbf16, #tpu.memory_space<vmem>>, vector<16x512xbf16>
    tpu.vector_store %arg9[%c80, %c0_22], %21 {strides = array<i32>} : memref<400x512xbf16, #tpu.memory_space<vmem>>, vector<16x512xbf16>,
    %c0_23 = arith.constant 0 : index
    %c0_24 = arith.constant 0 : index
    %c27 = arith.constant 27 : index
    %23 = vector.load %arg1[%c0_23, %c0_24, %c27] : memref<1x16x640xbf16, #tpu.memory_space<vmem>>, vector<1x16x512xbf16>
    %24 = vector.shape_cast %23 : vector<1x16x512xbf16> to vector<16x512xbf16>
    %c96 = arith.constant 96 : index
    %c0_25 = arith.constant 0 : index
    %25 = vector.load %arg9[%c96, %c0_25] : memref<400x512xbf16, #tpu.memory_space<vmem>>, vector<16x512xbf16>
    tpu.vector_store %arg9[%c96, %c0_25], %24 {strides = array<i32>} : memref<400x512xbf16, #tpu.memory_space<vmem>>, vector<16x512xbf16>,
    %c0_26 = arith.constant 0 : index
    %c0_27 = arith.constant 0 : index
    %c28 = arith.constant 28 : index
    %26 = vector.load %arg1[%c0_26, %c0_27, %c28] : memref<1x16x640xbf16, #tpu.memory_space<vmem>>, vector<1x16x512xbf16>
    %27 = vector.shape_cast %26 : vector<1x16x512xbf16> to vector<16x512xbf16>
    %c112 = arith.constant 112 : index
    %c0_28 = arith.constant 0 : index
    %28 = vector.load %arg9[%c112, %c0_28] : memref<400x512xbf16, #tpu.memory_space<vmem>>, vector<16x512xbf16>
    tpu.vector_store %arg9[%c112, %c0_28], %27 {strides = array<i32>} : memref<400x512xbf16, #tpu.memory_space<vmem>>, vector<16x512xbf16>,
    %c0_29 = arith.constant 0 : index
    %c0_30 = arith.constant 0 : index
    %c29 = arith.constant 29 : index
    %29 = vector.load %arg1[%c0_29, %c0_30, %c29] : memref<1x16x640xbf16, #tpu.memory_space<vmem>>, vector<1x16x512xbf16>
    %30 = vector.shape_cast %29 : vector<1x16x512xbf16> to vector<16x512xbf16>
    %c128 = arith.constant 128 : index
    %c0_31 = arith.constant 0 : index
    %31 = vector.load %arg9[%c128, %c0_31] : memref<400x512xbf16, #tpu.memory_space<vmem>>, vector<16x512xbf16>
    tpu.vector_store %arg9[%c128, %c0_31], %30 {strides = array<i32>} : memref<400x512xbf16, #tpu.memory_space<vmem>>, vector<16x512xbf16>,
    %c0_32 = arith.constant 0 : index
    %c0_33 = arith.constant 0 : index
    %c30 = arith.constant 30 : index
    %32 = vector.load %arg1[%c0_32, %c0_33, %c30] : memref<1x16x640xbf16, #tpu.memory_space<vmem>>, vector<1x16x512xbf16>
    %33 = vector.shape_cast %32 : vector<1x16x512xbf16> to vector<16x512xbf16>
    %c144 = arith.constant 144 : index
    %c0_34 = arith.constant 0 : index
    %34 = vector.load %arg9[%c144, %c0_34] : memref<400x512xbf16, #tpu.memory_space<vmem>>, vector<16x512xbf16>
    tpu.vector_store %arg9[%c144, %c0_34], %33 {strides = array<i32>} : memref<400x512xbf16, #tpu.memory_space<vmem>>, vector<16x512xbf16>,
    %c0_35 = arith.constant 0 : index
    %c0_36 = arith.constant 0 : index
    %c46 = arith.constant 46 : index
    %35 = vector.load %arg1[%c0_35, %c0_36, %c46] : memref<1x16x640xbf16, #tpu.memory_space<vmem>>, vector<1x16x512xbf16>
    %36 = vector.shape_cast %35 : vector<1x16x512xbf16> to vector<16x512xbf16>
    %c160 = arith.constant 160 : index
    %c0_37 = arith.constant 0 : index
    %37 = vector.load %arg9[%c160, %c0_37] : memref<400x512xbf16, #tpu.memory_space<vmem>>, vector<16x512xbf16>
    tpu.vector_store %arg9[%c160, %c0_37], %36 {strides = array<i32>} : memref<400x512xbf16, #tpu.memory_space<vmem>>, vector<16x512xbf16>,
    %c0_38 = arith.constant 0 : index
    %c0_39 = arith.constant 0 : index
    %c47 = arith.constant 47 : index
    %38 = vector.load %arg1[%c0_38, %c0_39, %c47] : memref<1x16x640xbf16, #tpu.memory_space<vmem>>, vector<1x16x512xbf16>
    %39 = vector.shape_cast %38 : vector<1x16x512xbf16> to vector<16x512xbf16>
    %c176 = arith.constant 176 : index
    %c0_40 = arith.constant 0 : index
    %40 = vector.load %arg9[%c176, %c0_40] : memref<400x512xbf16, #tpu.memory_space<vmem>>, vector<16x512xbf16>
    tpu.vector_store %arg9[%c176, %c0_40], %39 {strides = array<i32>} : memref<400x512xbf16, #tpu.memory_space<vmem>>, vector<16x512xbf16>,
    %c0_41 = arith.constant 0 : index
    %c0_42 = arith.constant 0 : index
    %c48_43 = arith.constant 48 : index
    %41 = vector.load %arg1[%c0_41, %c0_42, %c48_43] : memref<1x16x640xbf16, #tpu.memory_space<vmem>>, vector<1x16x512xbf16>
    %42 = vector.shape_cast %41 : vector<1x16x512xbf16> to vector<16x512xbf16>
    %c192 = arith.constant 192 : index
    %c0_44 = arith.constant 0 : index
    %43 = vector.load %arg9[%c192, %c0_44] : memref<400x512xbf16, #tpu.memory_space<vmem>>, vector<16x512xbf16>
    tpu.vector_store %arg9[%c192, %c0_44], %42 {strides = array<i32>} : memref<400x512xbf16, #tpu.memory_space<vmem>>, vector<16x512xbf16>,
    %c0_45 = arith.constant 0 : index
    %c0_46 = arith.constant 0 : index
    %c49 = arith.constant 49 : index
    %44 = vector.load %arg1[%c0_45, %c0_46, %c49] : memref<1x16x640xbf16, #tpu.memory_space<vmem>>, vector<1x16x512xbf16>
    %45 = vector.shape_cast %44 : vector<1x16x512xbf16> to vector<16x512xbf16>
    %c208 = arith.constant 208 : index
    %c0_47 = arith.constant 0 : index
    %46 = vector.load %arg9[%c208, %c0_47] : memref<400x512xbf16, #tpu.memory_space<vmem>>, vector<16x512xbf16>
    tpu.vector_store %arg9[%c208, %c0_47], %45 {strides = array<i32>} : memref<400x512xbf16, #tpu.memory_space<vmem>>, vector<16x512xbf16>,
    %c0_48 = arith.constant 0 : index
    %c0_49 = arith.constant 0 : index
    %c50 = arith.constant 50 : index
    %47 = vector.load %arg1[%c0_48, %c0_49, %c50] : memref<1x16x640xbf16, #tpu.memory_space<vmem>>, vector<1x16x512xbf16>
    %48 = vector.shape_cast %47 : vector<1x16x512xbf16> to vector<16x512xbf16>
    %c224 = arith.constant 224 : index
    %c0_50 = arith.constant 0 : index
    %49 = vector.load %arg9[%c224, %c0_50] : memref<400x512xbf16, #tpu.memory_space<vmem>>, vector<16x512xbf16>
    tpu.vector_store %arg9[%c224, %c0_50], %48 {strides = array<i32>} : memref<400x512xbf16, #tpu.memory_space<vmem>>, vector<16x512xbf16>,
    %c0_51 = arith.constant 0 : index
    %c0_52 = arith.constant 0 : index
    %c66 = arith.constant 66 : index
    %50 = vector.load %arg1[%c0_51, %c0_52, %c66] : memref<1x16x640xbf16, #tpu.memory_space<vmem>>, vector<1x16x512xbf16>
    %51 = vector.shape_cast %50 : vector<1x16x512xbf16> to vector<16x512xbf16>
    %c240 = arith.constant 240 : index
    %c0_53 = arith.constant 0 : index
    %52 = vector.load %arg9[%c240, %c0_53] : memref<400x512xbf16, #tpu.memory_space<vmem>>, vector<16x512xbf16>
    tpu.vector_store %arg9[%c240, %c0_53], %51 {strides = array<i32>} : memref<400x512xbf16, #tpu.memory_space<vmem>>, vector<16x512xbf16>,
    %c0_54 = arith.constant 0 : index
    %c0_55 = arith.constant 0 : index
    %c67 = arith.constant 67 : index
    %53 = vector.load %arg1[%c0_54, %c0_55, %c67] : memref<1x16x640xbf16, #tpu.memory_space<vmem>>, vector<1x16x512xbf16>
    %54 = vector.shape_cast %53 : vector<1x16x512xbf16> to vector<16x512xbf16>
    %c256 = arith.constant 256 : index
    %c0_56 = arith.constant 0 : index
    %55 = vector.load %arg9[%c256, %c0_56] : memref<400x512xbf16, #tpu.memory_space<vmem>>, vector<16x512xbf16>
    tpu.vector_store %arg9[%c256, %c0_56], %54 {strides = array<i32>} : memref<400x512xbf16, #tpu.memory_space<vmem>>, vector<16x512xbf16>,
    %c0_57 = arith.constant 0 : index
    %c0_58 = arith.constant 0 : index
    %c68 = arith.constant 68 : index
    %56 = vector.load %arg1[%c0_57, %c0_58, %c68] : memref<1x16x640xbf16, #tpu.memory_space<vmem>>, vector<1x16x512xbf16>
    %57 = vector.shape_cast %56 : vector<1x16x512xbf16> to vector<16x512xbf16>
    %c272 = arith.constant 272 : index
    %c0_59 = arith.constant 0 : index
    %58 = vector.load %arg9[%c272, %c0_59] : memref<400x512xbf16, #tpu.memory_space<vmem>>, vector<16x512xbf16>
    tpu.vector_store %arg9[%c272, %c0_59], %57 {strides = array<i32>} : memref<400x512xbf16, #tpu.memory_space<vmem>>, vector<16x512xbf16>,
    %c0_60 = arith.constant 0 : index
    %c0_61 = arith.constant 0 : index
    %c69 = arith.constant 69 : index
    %59 = vector.load %arg1[%c0_60, %c0_61, %c69] : memref<1x16x640xbf16, #tpu.memory_space<vmem>>, vector<1x16x512xbf16>
    %60 = vector.shape_cast %59 : vector<1x16x512xbf16> to vector<16x512xbf16>
    %c288 = arith.constant 288 : index
    %c0_62 = arith.constant 0 : index
    %61 = vector.load %arg9[%c288, %c0_62] : memref<400x512xbf16, #tpu.memory_space<vmem>>, vector<16x512xbf16>
    tpu.vector_store %arg9[%c288, %c0_62], %60 {strides = array<i32>} : memref<400x512xbf16, #tpu.memory_space<vmem>>, vector<16x512xbf16>,
    %c0_63 = arith.constant 0 : index
    %c0_64 = arith.constant 0 : index
    %c70 = arith.constant 70 : index
    %62 = vector.load %arg1[%c0_63, %c0_64, %c70] : memref<1x16x640xbf16, #tpu.memory_space<vmem>>, vector<1x16x512xbf16>
    %63 = vector.shape_cast %62 : vector<1x16x512xbf16> to vector<16x512xbf16>
    %c304 = arith.constant 304 : index
    %c0_65 = arith.constant 0 : index
    %64 = vector.load %arg9[%c304, %c0_65] : memref<400x512xbf16, #tpu.memory_space<vmem>>, vector<16x512xbf16>
    tpu.vector_store %arg9[%c304, %c0_65], %63 {strides = array<i32>} : memref<400x512xbf16, #tpu.memory_space<vmem>>, vector<16x512xbf16>,
    %c0_66 = arith.constant 0 : index
    %c0_67 = arith.constant 0 : index
    %c86 = arith.constant 86 : index
    %65 = vector.load %arg1[%c0_66, %c0_67, %c86] : memref<1x16x640xbf16, #tpu.memory_space<vmem>>, vector<1x16x512xbf16>
    %66 = vector.shape_cast %65 : vector<1x16x512xbf16> to vector<16x512xbf16>
    %c320 = arith.constant 320 : index
    %c0_68 = arith.constant 0 : index
    %67 = vector.load %arg9[%c320, %c0_68] : memref<400x512xbf16, #tpu.memory_space<vmem>>, vector<16x512xbf16>
    tpu.vector_store %arg9[%c320, %c0_68], %66 {strides = array<i32>} : memref<400x512xbf16, #tpu.memory_space<vmem>>, vector<16x512xbf16>,
    %c0_69 = arith.constant 0 : index
    %c0_70 = arith.constant 0 : index
    %c87 = arith.constant 87 : index
    %68 = vector.load %arg1[%c0_69, %c0_70, %c87] : memref<1x16x640xbf16, #tpu.memory_space<vmem>>, vector<1x16x512xbf16>
    %69 = vector.shape_cast %68 : vector<1x16x512xbf16> to vector<16x512xbf16>
    %c336 = arith.constant 336 : index
    %c0_71 = arith.constant 0 : index
    %70 = vector.load %arg9[%c336, %c0_71] : memref<400x512xbf16, #tpu.memory_space<vmem>>, vector<16x512xbf16>
    tpu.vector_store %arg9[%c336, %c0_71], %69 {strides = array<i32>} : memref<400x512xbf16, #tpu.memory_space<vmem>>, vector<16x512xbf16>,
    %c0_72 = arith.constant 0 : index
    %c0_73 = arith.constant 0 : index
    %c88 = arith.constant 88 : index
    %71 = vector.load %arg1[%c0_72, %c0_73, %c88] : memref<1x16x640xbf16, #tpu.memory_space<vmem>>, vector<1x16x512xbf16>
    %72 = vector.shape_cast %71 : vector<1x16x512xbf16> to vector<16x512xbf16>
    %c352 = arith.constant 352 : index
    %c0_74 = arith.constant 0 : index
    %73 = vector.load %arg9[%c352, %c0_74] : memref<400x512xbf16, #tpu.memory_space<vmem>>, vector<16x512xbf16>
    tpu.vector_store %arg9[%c352, %c0_74], %72 {strides = array<i32>} : memref<400x512xbf16, #tpu.memory_space<vmem>>, vector<16x512xbf16>,
    %c0_75 = arith.constant 0 : index
    %c0_76 = arith.constant 0 : index
    %c89 = arith.constant 89 : index
    %74 = vector.load %arg1[%c0_75, %c0_76, %c89] : memref<1x16x640xbf16, #tpu.memory_space<vmem>>, vector<1x16x512xbf16>
    %75 = vector.shape_cast %74 : vector<1x16x512xbf16> to vector<16x512xbf16>
    %c368 = arith.constant 368 : index
    %c0_77 = arith.constant 0 : index
    %76 = vector.load %arg9[%c368, %c0_77] : memref<400x512xbf16, #tpu.memory_space<vmem>>, vector<16x512xbf16>
    tpu.vector_store %arg9[%c368, %c0_77], %75 {strides = array<i32>} : memref<400x512xbf16, #tpu.memory_space<vmem>>, vector<16x512xbf16>,
    %c0_78 = arith.constant 0 : index
    %c0_79 = arith.constant 0 : index
    %c90 = arith.constant 90 : index
    %77 = vector.load %arg1[%c0_78, %c0_79, %c90] : memref<1x16x640xbf16, #tpu.memory_space<vmem>>, vector<1x16x512xbf16>
    %78 = vector.shape_cast %77 : vector<1x16x512xbf16> to vector<16x512xbf16>
    %c384 = arith.constant 384 : index
    %c0_80 = arith.constant 0 : index
    %79 = vector.load %arg9[%c384, %c0_80] : memref<400x512xbf16, #tpu.memory_space<vmem>>, vector<16x512xbf16>
    tpu.vector_store %arg9[%c384, %c0_80], %78 {strides = array<i32>} : memref<400x512xbf16, #tpu.memory_space<vmem>>, vector<16x512xbf16>,
    %c0_81 = arith.constant 0 : index
    %c0_82 = arith.constant 0 : index
    %80 = vector.load %arg2[%c0_81, %c0_82] : memref<16x400xbf16, #tpu.memory_space<vmem>>, vector<16x400xbf16>
    %c0_83 = arith.constant 0 : index
    %c0_84 = arith.constant 0 : index
    %81 = vector.load %arg9[%c0_83, %c0_84] : memref<400x512xbf16, #tpu.memory_space<vmem>>, vector<400x512xbf16>
    %cst = arith.constant dense<0.000000e+00> : vector<16x512xf32>
    %82 = tpu.matmul %80, %81, %cst {dimension_numbers = #tpu.dot_dimension_numbers<[1], [0], [0], [1], [0, 0, 1, 1], [], []>} : vector<16x400xbf16>, vector<400x512xbf16>, vector<16x512xf32> -> vector<16x512xf32>
    %83 = vector.broadcast %3 : vector<1x512xf32> to vector<16x512xf32>
    %84 = arith.mulf %82, %83 : vector<16x512xf32>
    %cst_85 = arith.constant dense<0.000000e+00> : vector<16xf32>
    %85 = vector.multi_reduction <add>, %84, %cst_85 [1] : vector<16x512xf32> to vector<16xf32>
    %86 = vector.shape_cast %85 : vector<16xf32> to vector<16x1xf32>
    %cst_86 = arith.constant 3.906250e-03 : f32
    %87 = vector.broadcast %cst_86 : f32 to vector<16x1xf32>
    %88 = arith.mulf %86, %87 : vector<16x1xf32>
    %89 = vector.broadcast %88 : vector<16x1xf32> to vector<16x512xf32>
    %90 = arith.subf %84, %89 : vector<16x512xf32>
    %91 = vector.broadcast %3 : vector<1x512xf32> to vector<16x512xf32>
    %92 = arith.mulf %90, %91 : vector<16x512xf32>
    %93 = arith.mulf %92, %92 : vector<16x512xf32>
    %cst_87 = arith.constant dense<0.000000e+00> : vector<16xf32>
    %94 = vector.multi_reduction <add>, %93, %cst_87 [1] : vector<16x512xf32> to vector<16xf32>
    %95 = vector.shape_cast %94 : vector<16xf32> to vector<16x1xf32>
    %cst_88 = arith.constant 3.906250e-03 : f32
    %96 = vector.broadcast %cst_88 : f32 to vector<16x1xf32>
    %97 = arith.mulf %95, %96 : vector<16x1xf32>
    %cst_89 = arith.constant 9.99999974E-6 : f32
    %98 = vector.broadcast %cst_89 : f32 to vector<16x1xf32>
    %99 = arith.addf %97, %98 : vector<16x1xf32>
    %100 = math.rsqrt %99 : vector<16x1xf32>
    %101 = vector.broadcast %100 : vector<16x1xf32> to vector<16x512xf32>
    %102 = arith.mulf %92, %101 : vector<16x512xf32>
    %cst_90 = arith.constant 0.000000e+00 : f32
    %103 = vector.broadcast %cst_90 : f32 to vector<16x512xf32>
    %104 = arith.cmpf oge, %102, %103 : vector<16x512xf32>
    %105 = vector.broadcast %0 : f32 to vector<16x512xf32>
    %106 = arith.mulf %105, %102 : vector<16x512xf32>
    %107 = arith.select %104, %102, %106 : vector<16x512xi1>, vector<16x512xf32>
    %108 = arith.truncf %107 : vector<16x512xf32> to vector<16x512xbf16>
    %c0_91 = arith.constant 0 : index
    %c0_92 = arith.constant 0 : index
    %109 = vector.load %arg11[%c0_91, %c0_92] : memref<16x512xbf16, #tpu.memory_space<vmem>>, vector<16x512xbf16>
    tpu.vector_store %arg11[%c0_91, %c0_92], %108 {strides = array<i32>} : memref<16x512xbf16, #tpu.memory_space<vmem>>, vector<16x512xbf16>,
    %c0_93 = arith.constant 0 : index
    %c0_94 = arith.constant 0 : index
    %110 = vector.load %arg11[%c0_93, %c0_94] : memref<16x512xbf16, #tpu.memory_space<vmem>>, vector<16x384xbf16>
    %c0_95 = arith.constant 0 : index
    %c0_96 = arith.constant 0 : index
    %111 = vector.load %arg10[%c0_95, %c0_96] : memref<400x384xbf16, #tpu.memory_space<vmem>>, vector<16x384xbf16>
    tpu.vector_store %arg10[%c0_95, %c0_96], %110 {strides = array<i32>} : memref<400x384xbf16, #tpu.memory_space<vmem>>, vector<16x384xbf16>,
    %c0_97 = arith.constant 0 : index
    %c1_98 = arith.constant 1 : index
    %112 = vector.load %arg11[%c0_97, %c1_98] : memref<16x512xbf16, #tpu.memory_space<vmem>>, vector<16x384xbf16>
    %c16_99 = arith.constant 16 : index
    %c0_100 = arith.constant 0 : index
    %113 = vector.load %arg10[%c16_99, %c0_100] : memref<400x384xbf16, #tpu.memory_space<vmem>>, vector<16x384xbf16>
    tpu.vector_store %arg10[%c16_99, %c0_100], %112 {strides = array<i32>} : memref<400x384xbf16, #tpu.memory_space<vmem>>, vector<16x384xbf16>,
    %c0_101 = arith.constant 0 : index
    %c2_102 = arith.constant 2 : index
    %114 = vector.load %arg11[%c0_101, %c2_102] : memref<16x512xbf16, #tpu.memory_space<vmem>>, vector<16x384xbf16>
    %c32_103 = arith.constant 32 : index
    %c0_104 = arith.constant 0 : index
    %115 = vector.load %arg10[%c32_103, %c0_104] : memref<400x384xbf16, #tpu.memory_space<vmem>>, vector<16x384xbf16>
    tpu.vector_store %arg10[%c32_103, %c0_104], %114 {strides = array<i32>} : memref<400x384xbf16, #tpu.memory_space<vmem>>, vector<16x384xbf16>,
    %c0_105 = arith.constant 0 : index
    %c3 = arith.constant 3 : index
    %116 = vector.load %arg11[%c0_105, %c3] : memref<16x512xbf16, #tpu.memory_space<vmem>>, vector<16x384xbf16>
    %c48_106 = arith.constant 48 : index
    %c0_107 = arith.constant 0 : index
    %117 = vector.load %arg10[%c48_106, %c0_107] : memref<400x384xbf16, #tpu.memory_space<vmem>>, vector<16x384xbf16>
    tpu.vector_store %arg10[%c48_106, %c0_107], %116 {strides = array<i32>} : memref<400x384xbf16, #tpu.memory_space<vmem>>, vector<16x384xbf16>,
    %c0_108 = arith.constant 0 : index
    %c4 = arith.constant 4 : index
    %118 = vector.load %arg11[%c0_108, %c4] : memref<16x512xbf16, #tpu.memory_space<vmem>>, vector<16x384xbf16>
    %c64_109 = arith.constant 64 : index
    %c0_110 = arith.constant 0 : index
    %119 = vector.load %arg10[%c64_109, %c0_110] : memref<400x384xbf16, #tpu.memory_space<vmem>>, vector<16x384xbf16>
    tpu.vector_store %arg10[%c64_109, %c0_110], %118 {strides = array<i32>} : memref<400x384xbf16, #tpu.memory_space<vmem>>, vector<16x384xbf16>,
    %c0_111 = arith.constant 0 : index
    %c20 = arith.constant 20 : index
    %120 = vector.load %arg11[%c0_111, %c20] : memref<16x512xbf16, #tpu.memory_space<vmem>>, vector<16x384xbf16>
    %c80_112 = arith.constant 80 : index
    %c0_113 = arith.constant 0 : index
    %121 = vector.load %arg10[%c80_112, %c0_113] : memref<400x384xbf16, #tpu.memory_space<vmem>>, vector<16x384xbf16>
    tpu.vector_store %arg10[%c80_112, %c0_113], %120 {strides = array<i32>} : memref<400x384xbf16, #tpu.memory_space<vmem>>, vector<16x384xbf16>,
    %c0_114 = arith.constant 0 : index
    %c21 = arith.constant 21 : index
    %122 = vector.load %arg11[%c0_114, %c21] : memref<16x512xbf16, #tpu.memory_space<vmem>>, vector<16x384xbf16>
    %c96_115 = arith.constant 96 : index
    %c0_116 = arith.constant 0 : index
    %123 = vector.load %arg10[%c96_115, %c0_116] : memref<400x384xbf16, #tpu.memory_space<vmem>>, vector<16x384xbf16>
    tpu.vector_store %arg10[%c96_115, %c0_116], %122 {strides = array<i32>} : memref<400x384xbf16, #tpu.memory_space<vmem>>, vector<16x384xbf16>,
    %c0_117 = arith.constant 0 : index
    %c22 = arith.constant 22 : index
    %124 = vector.load %arg11[%c0_117, %c22] : memref<16x512xbf16, #tpu.memory_space<vmem>>, vector<16x384xbf16>
    %c112_118 = arith.constant 112 : index
    %c0_119 = arith.constant 0 : index
    %125 = vector.load %arg10[%c112_118, %c0_119] : memref<400x384xbf16, #tpu.memory_space<vmem>>, vector<16x384xbf16>
    tpu.vector_store %arg10[%c112_118, %c0_119], %124 {strides = array<i32>} : memref<400x384xbf16, #tpu.memory_space<vmem>>, vector<16x384xbf16>,
    %c0_120 = arith.constant 0 : index
    %c23 = arith.constant 23 : index
    %126 = vector.load %arg11[%c0_120, %c23] : memref<16x512xbf16, #tpu.memory_space<vmem>>, vector<16x384xbf16>
    %c128_121 = arith.constant 128 : index
    %c0_122 = arith.constant 0 : index
    %127 = vector.load %arg10[%c128_121, %c0_122] : memref<400x384xbf16, #tpu.memory_space<vmem>>, vector<16x384xbf16>
    tpu.vector_store %arg10[%c128_121, %c0_122], %126 {strides = array<i32>} : memref<400x384xbf16, #tpu.memory_space<vmem>>, vector<16x384xbf16>,
    %c0_123 = arith.constant 0 : index
    %c24 = arith.constant 24 : index
    %128 = vector.load %arg11[%c0_123, %c24] : memref<16x512xbf16, #tpu.memory_space<vmem>>, vector<16x384xbf16>
    %c144_124 = arith.constant 144 : index
    %c0_125 = arith.constant 0 : index
    %129 = vector.load %arg10[%c144_124, %c0_125] : memref<400x384xbf16, #tpu.memory_space<vmem>>, vector<16x384xbf16>
    tpu.vector_store %arg10[%c144_124, %c0_125], %128 {strides = array<i32>} : memref<400x384xbf16, #tpu.memory_space<vmem>>, vector<16x384xbf16>,
    %c0_126 = arith.constant 0 : index
    %c40 = arith.constant 40 : index
    %130 = vector.load %arg11[%c0_126, %c40] : memref<16x512xbf16, #tpu.memory_space<vmem>>, vector<16x384xbf16>
    %c160_127 = arith.constant 160 : index
    %c0_128 = arith.constant 0 : index
    %131 = vector.load %arg10[%c160_127, %c0_128] : memref<400x384xbf16, #tpu.memory_space<vmem>>, vector<16x384xbf16>
    tpu.vector_store %arg10[%c160_127, %c0_128], %130 {strides = array<i32>} : memref<400x384xbf16, #tpu.memory_space<vmem>>, vector<16x384xbf16>,
    %c0_129 = arith.constant 0 : index
    %c41 = arith.constant 41 : index
    %132 = vector.load %arg11[%c0_129, %c41] : memref<16x512xbf16, #tpu.memory_space<vmem>>, vector<16x384xbf16>
    %c176_130 = arith.constant 176 : index
    %c0_131 = arith.constant 0 : index
    %133 = vector.load %arg10[%c176_130, %c0_131] : memref<400x384xbf16, #tpu.memory_space<vmem>>, vector<16x384xbf16>
    tpu.vector_store %arg10[%c176_130, %c0_131], %132 {strides = array<i32>} : memref<400x384xbf16, #tpu.memory_space<vmem>>, vector<16x384xbf16>,
    %c0_132 = arith.constant 0 : index
    %c42 = arith.constant 42 : index
    %134 = vector.load %arg11[%c0_132, %c42] : memref<16x512xbf16, #tpu.memory_space<vmem>>, vector<16x384xbf16>
    %c192_133 = arith.constant 192 : index
    %c0_134 = arith.constant 0 : index
    %135 = vector.load %arg10[%c192_133, %c0_134] : memref<400x384xbf16, #tpu.memory_space<vmem>>, vector<16x384xbf16>
    tpu.vector_store %arg10[%c192_133, %c0_134], %134 {strides = array<i32>} : memref<400x384xbf16, #tpu.memory_space<vmem>>, vector<16x384xbf16>,
    %c0_135 = arith.constant 0 : index
    %c43 = arith.constant 43 : index
    %136 = vector.load %arg11[%c0_135, %c43] : memref<16x512xbf16, #tpu.memory_space<vmem>>, vector<16x384xbf16>
    %c208_136 = arith.constant 208 : index
    %c0_137 = arith.constant 0 : index
    %137 = vector.load %arg10[%c208_136, %c0_137] : memref<400x384xbf16, #tpu.memory_space<vmem>>, vector<16x384xbf16>
    tpu.vector_store %arg10[%c208_136, %c0_137], %136 {strides = array<i32>} : memref<400x384xbf16, #tpu.memory_space<vmem>>, vector<16x384xbf16>,
    %c0_138 = arith.constant 0 : index
    %c44 = arith.constant 44 : index
    %138 = vector.load %arg11[%c0_138, %c44] : memref<16x512xbf16, #tpu.memory_space<vmem>>, vector<16x384xbf16>
    %c224_139 = arith.constant 224 : index
    %c0_140 = arith.constant 0 : index
    %139 = vector.load %arg10[%c224_139, %c0_140] : memref<400x384xbf16, #tpu.memory_space<vmem>>, vector<16x384xbf16>
    tpu.vector_store %arg10[%c224_139, %c0_140], %138 {strides = array<i32>} : memref<400x384xbf16, #tpu.memory_space<vmem>>, vector<16x384xbf16>,
    %c0_141 = arith.constant 0 : index
    %c60 = arith.constant 60 : index
    %140 = vector.load %arg11[%c0_141, %c60] : memref<16x512xbf16, #tpu.memory_space<vmem>>, vector<16x384xbf16>
    %c240_142 = arith.constant 240 : index
    %c0_143 = arith.constant 0 : index
    %141 = vector.load %arg10[%c240_142, %c0_143] : memref<400x384xbf16, #tpu.memory_space<vmem>>, vector<16x384xbf16>
    tpu.vector_store %arg10[%c240_142, %c0_143], %140 {strides = array<i32>} : memref<400x384xbf16, #tpu.memory_space<vmem>>, vector<16x384xbf16>,
    %c0_144 = arith.constant 0 : index
    %c61 = arith.constant 61 : index
    %142 = vector.load %arg11[%c0_144, %c61] : memref<16x512xbf16, #tpu.memory_space<vmem>>, vector<16x384xbf16>
    %c256_145 = arith.constant 256 : index
    %c0_146 = arith.constant 0 : index
    %143 = vector.load %arg10[%c256_145, %c0_146] : memref<400x384xbf16, #tpu.memory_space<vmem>>, vector<16x384xbf16>
    tpu.vector_store %arg10[%c256_145, %c0_146], %142 {strides = array<i32>} : memref<400x384xbf16, #tpu.memory_space<vmem>>, vector<16x384xbf16>,
    %c0_147 = arith.constant 0 : index
    %c62 = arith.constant 62 : index
    %144 = vector.load %arg11[%c0_147, %c62] : memref<16x512xbf16, #tpu.memory_space<vmem>>, vector<16x384xbf16>
    %c272_148 = arith.constant 272 : index
    %c0_149 = arith.constant 0 : index
    %145 = vector.load %arg10[%c272_148, %c0_149] : memref<400x384xbf16, #tpu.memory_space<vmem>>, vector<16x384xbf16>
    tpu.vector_store %arg10[%c272_148, %c0_149], %144 {strides = array<i32>} : memref<400x384xbf16, #tpu.memory_space<vmem>>, vector<16x384xbf16>,
    %c0_150 = arith.constant 0 : index
    %c63 = arith.constant 63 : index
    %146 = vector.load %arg11[%c0_150, %c63] : memref<16x512xbf16, #tpu.memory_space<vmem>>, vector<16x384xbf16>
    %c288_151 = arith.constant 288 : index
    %c0_152 = arith.constant 0 : index
    %147 = vector.load %arg10[%c288_151, %c0_152] : memref<400x384xbf16, #tpu.memory_space<vmem>>, vector<16x384xbf16>
    tpu.vector_store %arg10[%c288_151, %c0_152], %146 {strides = array<i32>} : memref<400x384xbf16, #tpu.memory_space<vmem>>, vector<16x384xbf16>,
    %c0_153 = arith.constant 0 : index
    %c64_154 = arith.constant 64 : index
    %148 = vector.load %arg11[%c0_153, %c64_154] : memref<16x512xbf16, #tpu.memory_space<vmem>>, vector<16x384xbf16>
    %c304_155 = arith.constant 304 : index
    %c0_156 = arith.constant 0 : index
    %149 = vector.load %arg10[%c304_155, %c0_156] : memref<400x384xbf16, #tpu.memory_space<vmem>>, vector<16x384xbf16>
    tpu.vector_store %arg10[%c304_155, %c0_156], %148 {strides = array<i32>} : memref<400x384xbf16, #tpu.memory_space<vmem>>, vector<16x384xbf16>,
    %c0_157 = arith.constant 0 : index
    %c80_158 = arith.constant 80 : index
    %150 = vector.load %arg11[%c0_157, %c80_158] : memref<16x512xbf16, #tpu.memory_space<vmem>>, vector<16x384xbf16>
    %c320_159 = arith.constant 320 : index
    %c0_160 = arith.constant 0 : index
    %151 = vector.load %arg10[%c320_159, %c0_160] : memref<400x384xbf16, #tpu.memory_space<vmem>>, vector<16x384xbf16>
    tpu.vector_store %arg10[%c320_159, %c0_160], %150 {strides = array<i32>} : memref<400x384xbf16, #tpu.memory_space<vmem>>, vector<16x384xbf16>,
    %c0_161 = arith.constant 0 : index
    %c81 = arith.constant 81 : index
    %152 = vector.load %arg11[%c0_161, %c81] : memref<16x512xbf16, #tpu.memory_space<vmem>>, vector<16x384xbf16>
    %c336_162 = arith.constant 336 : index
    %c0_163 = arith.constant 0 : index
    %153 = vector.load %arg10[%c336_162, %c0_163] : memref<400x384xbf16, #tpu.memory_space<vmem>>, vector<16x384xbf16>
    tpu.vector_store %arg10[%c336_162, %c0_163], %152 {strides = array<i32>} : memref<400x384xbf16, #tpu.memory_space<vmem>>, vector<16x384xbf16>,
    %c0_164 = arith.constant 0 : index
    %c82 = arith.constant 82 : index
    %154 = vector.load %arg11[%c0_164, %c82] : memref<16x512xbf16, #tpu.memory_space<vmem>>, vector<16x384xbf16>
    %c352_165 = arith.constant 352 : index
    %c0_166 = arith.constant 0 : index
    %155 = vector.load %arg10[%c352_165, %c0_166] : memref<400x384xbf16, #tpu.memory_space<vmem>>, vector<16x384xbf16>
    tpu.vector_store %arg10[%c352_165, %c0_166], %154 {strides = array<i32>} : memref<400x384xbf16, #tpu.memory_space<vmem>>, vector<16x384xbf16>,
    %c0_167 = arith.constant 0 : index
    %c83 = arith.constant 83 : index
    %156 = vector.load %arg11[%c0_167, %c83] : memref<16x512xbf16, #tpu.memory_space<vmem>>, vector<16x384xbf16>
    %c368_168 = arith.constant 368 : index
    %c0_169 = arith.constant 0 : index
    %157 = vector.load %arg10[%c368_168, %c0_169] : memref<400x384xbf16, #tpu.memory_space<vmem>>, vector<16x384xbf16>
    tpu.vector_store %arg10[%c368_168, %c0_169], %156 {strides = array<i32>} : memref<400x384xbf16, #tpu.memory_space<vmem>>, vector<16x384xbf16>,
    %c0_170 = arith.constant 0 : index
    %c84 = arith.constant 84 : index
    %158 = vector.load %arg11[%c0_170, %c84] : memref<16x512xbf16, #tpu.memory_space<vmem>>, vector<16x384xbf16>
    %c384_171 = arith.constant 384 : index
    %c0_172 = arith.constant 0 : index
    %159 = vector.load %arg10[%c384_171, %c0_172] : memref<400x384xbf16, #tpu.memory_space<vmem>>, vector<16x384xbf16>
    tpu.vector_store %arg10[%c384_171, %c0_172], %158 {strides = array<i32>} : memref<400x384xbf16, #tpu.memory_space<vmem>>, vector<16x384xbf16>,
    %c0_173 = arith.constant 0 : index
    %c0_174 = arith.constant 0 : index
    %160 = vector.load %arg3[%c0_173, %c0_174] : memref<16x400xbf16, #tpu.memory_space<vmem>>, vector<16x400xbf16>
    %c0_175 = arith.constant 0 : index
    %c0_176 = arith.constant 0 : index
    %161 = vector.load %arg10[%c0_175, %c0_176] : memref<400x384xbf16, #tpu.memory_space<vmem>>, vector<400x384xbf16>
    %cst_177 = arith.constant dense<0.000000e+00> : vector<16x384xf32>
    %162 = tpu.matmul %160, %161, %cst_177 {dimension_numbers = #tpu.dot_dimension_numbers<[1], [0], [0], [1], [0, 0, 1, 1], [], []>} : vector<16x400xbf16>, vector<400x384xbf16>, vector<16x384xf32> -> vector<16x384xf32>
    %163 = vector.broadcast %4 : vector<1x384xf32> to vector<16x384xf32>
    %164 = arith.mulf %162, %163 : vector<16x384xf32>
    %cst_178 = arith.constant dense<0.000000e+00> : vector<16xf32>
    %165 = vector.multi_reduction <add>, %164, %cst_178 [1] : vector<16x384xf32> to vector<16xf32>
    %166 = vector.shape_cast %165 : vector<16xf32> to vector<16x1xf32>
    %cst_179 = arith.constant 3.906250e-03 : f32
    %167 = vector.broadcast %cst_179 : f32 to vector<16x1xf32>
    %168 = arith.mulf %166, %167 : vector<16x1xf32>
    %169 = vector.broadcast %168 : vector<16x1xf32> to vector<16x384xf32>
    %170 = arith.subf %164, %169 : vector<16x384xf32>
    %171 = vector.broadcast %4 : vector<1x384xf32> to vector<16x384xf32>
    %172 = arith.mulf %170, %171 : vector<16x384xf32>
    %173 = arith.mulf %172, %172 : vector<16x384xf32>
    %cst_180 = arith.constant dense<0.000000e+00> : vector<16xf32>
    %174 = vector.multi_reduction <add>, %173, %cst_180 [1] : vector<16x384xf32> to vector<16xf32>
    %175 = vector.shape_cast %174 : vector<16xf32> to vector<16x1xf32>
    %cst_181 = arith.constant 3.906250e-03 : f32
    %176 = vector.broadcast %cst_181 : f32 to vector<16x1xf32>
    %177 = arith.mulf %175, %176 : vector<16x1xf32>
    %cst_182 = arith.constant 9.99999974E-6 : f32
    %178 = vector.broadcast %cst_182 : f32 to vector<16x1xf32>
    %179 = arith.addf %177, %178 : vector<16x1xf32>
    %180 = math.rsqrt %179 : vector<16x1xf32>
    %181 = vector.broadcast %180 : vector<16x1xf32> to vector<16x384xf32>
    %182 = arith.mulf %172, %181 : vector<16x384xf32>
    %cst_183 = arith.constant 0.000000e+00 : f32
    %183 = vector.broadcast %cst_183 : f32 to vector<16x384xf32>
    %184 = arith.cmpf oge, %182, %183 : vector<16x384xf32>
    %185 = vector.broadcast %1 : f32 to vector<16x384xf32>
    %186 = arith.mulf %185, %182 : vector<16x384xf32>
    %187 = arith.select %184, %182, %186 : vector<16x384xi1>, vector<16x384xf32>
    %c0_184 = arith.constant 0 : index
    %c0_185 = arith.constant 0 : index
    %c90_186 = arith.constant 90 : index
    %188 = vector.load %arg1[%c0_184, %c0_185, %c90_186] : memref<1x16x640xbf16, #tpu.memory_space<vmem>>, vector<1x16x384xbf16>
    %189 = vector.shape_cast %188 : vector<1x16x384xbf16> to vector<16x384xbf16>
    %c0_187 = arith.constant 0 : index
    %c0_188 = arith.constant 0 : index
    %190 = vector.load %arg4[%c0_187, %c0_188] : memref<16x16xbf16, #tpu.memory_space<vmem>>, vector<16x16xbf16>
    %cst_189 = arith.constant dense<0.000000e+00> : vector<16x384xf32>
    %191 = tpu.matmul %190, %189, %cst_189 {dimension_numbers = #tpu.dot_dimension_numbers<[1], [0], [0], [1], [0, 0, 1, 1], [], []>} : vector<16x16xbf16>, vector<16x384xbf16>, vector<16x384xf32> -> vector<16x384xf32>
    %192 = vector.broadcast %4 : vector<1x384xf32> to vector<16x384xf32>
    %193 = arith.mulf %191, %192 : vector<16x384xf32>
    %cst_190 = arith.constant dense<0.000000e+00> : vector<16xf32>
    %194 = vector.multi_reduction <add>, %193, %cst_190 [1] : vector<16x384xf32> to vector<16xf32>
    %195 = vector.shape_cast %194 : vector<16xf32> to vector<16x1xf32>
    %cst_191 = arith.constant 3.906250e-03 : f32
    %196 = vector.broadcast %cst_191 : f32 to vector<16x1xf32>
    %197 = arith.mulf %195, %196 : vector<16x1xf32>
    %198 = vector.broadcast %197 : vector<16x1xf32> to vector<16x384xf32>
    %199 = arith.subf %193, %198 : vector<16x384xf32>
    %200 = vector.broadcast %4 : vector<1x384xf32> to vector<16x384xf32>
    %201 = arith.mulf %199, %200 : vector<16x384xf32>
    %202 = arith.mulf %201, %201 : vector<16x384xf32>
    %cst_192 = arith.constant dense<0.000000e+00> : vector<16xf32>
    %203 = vector.multi_reduction <add>, %202, %cst_192 [1] : vector<16x384xf32> to vector<16xf32>
    %204 = vector.shape_cast %203 : vector<16xf32> to vector<16x1xf32>
    %cst_193 = arith.constant 3.906250e-03 : f32
    %205 = vector.broadcast %cst_193 : f32 to vector<16x1xf32>
    %206 = arith.mulf %204, %205 : vector<16x1xf32>
    %cst_194 = arith.constant 9.99999974E-6 : f32
    %207 = vector.broadcast %cst_194 : f32 to vector<16x1xf32>
    %208 = arith.addf %206, %207 : vector<16x1xf32>
    %209 = math.rsqrt %208 : vector<16x1xf32>
    %210 = vector.broadcast %209 : vector<16x1xf32> to vector<16x384xf32>
    %211 = arith.mulf %201, %210 : vector<16x384xf32>
    %212 = arith.addf %187, %211 : vector<16x384xf32>
    %cst_195 = arith.constant 0.000000e+00 : f32
    %213 = vector.broadcast %cst_195 : f32 to vector<16x384xf32>
    %214 = arith.cmpf oge, %212, %213 : vector<16x384xf32>
    %215 = vector.broadcast %2 : f32 to vector<16x384xf32>
    %216 = arith.mulf %215, %212 : vector<16x384xf32>
    %217 = arith.select %214, %212, %216 : vector<16x384xi1>, vector<16x384xf32>
    %c0_196 = arith.constant 0 : index
    %c0_197 = arith.constant 0 : index
    %c0_198 = arith.constant 0 : index
    %218 = vector.load %arg8[%c0_196, %c0_197, %c0_198] : memref<1x16x384xf32, #tpu.memory_space<vmem>>, vector<1x16x384xf32>
    %219 = vector.shape_cast %218 : vector<1x16x384xf32> to vector<16x384xf32>
    %220 = vector.shape_cast %217 : vector<16x384xf32> to vector<1x16x384xf32>
    tpu.vector_store %arg8[%c0_196, %c0_197, %c0_198], %220 {strides = array<i32>} : memref<1x16x384xf32, #tpu.memory_space<vmem>>, vector<1x16x384xf32>,
    return
  }
  func.func @transform_0(%arg0: i32) -> (i32, i32, i32) {
    %c0_i32 = arith.constant 0 : i32
    %c0_i32_0 = arith.constant 0 : i32
    %c0_i32_1 = arith.constant 0 : i32
    return %arg0, %c0_i32, %c0_i32_0 : i32, i32, i32
  }
  func.func @transform_1(%arg0: i32) -> (i32, i32) {
    %c0_i32 = arith.constant 0 : i32
    %c0_i32_0 = arith.constant 0 : i32
    %c0_i32_1 = arith.constant 0 : i32
    return %c0_i32, %c0_i32_0 : i32, i32
  }
  func.func @transform_2(%arg0: i32) -> (i32, i32) {
    %c0_i32 = arith.constant 0 : i32
    %c0_i32_0 = arith.constant 0 : i32
    %c0_i32_1 = arith.constant 0 : i32
    return %c0_i32, %c0_i32_0 : i32, i32
  }
  func.func @transform_3(%arg0: i32) -> (i32, i32) {
    %c0_i32 = arith.constant 0 : i32
    %c0_i32_0 = arith.constant 0 : i32
    %c0_i32_1 = arith.constant 0 : i32
    return %c0_i32, %c0_i32_0 : i32, i32
  }
  func.func @transform_4(%arg0: i32) -> (i32, i32) {
    %c0_i32 = arith.constant 0 : i32
    %c0_i32_0 = arith.constant 0 : i32
    %c0_i32_1 = arith.constant 0 : i32
    return %c0_i32, %c0_i32_0 : i32, i32
  }
  func.func @transform_5(%arg0: i32) -> (i32, i32) {
    %c0_i32 = arith.constant 0 : i32
    %c0_i32_0 = arith.constant 0 : i32
    %c0_i32_1 = arith.constant 0 : i32
    return %c0_i32, %c0_i32_0 : i32, i32
  }
  func.func @transform_6(%arg0: i32) -> i32 {
    %c0_i32 = arith.constant 0 : i32
    %c0_i32_0 = arith.constant 0 : i32
    return %c0_i32 : i32
  }
  func.func @transform_7(%arg0: i32) -> (i32, i32, i32) {
    %c0_i32 = arith.constant 0 : i32
    %c0_i32_0 = arith.constant 0 : i32
    %c0_i32_1 = arith.constant 0 : i32
    return %arg0, %c0_i32, %c0_i32_0 : i32, i32, i32
  }
}

</mosaic_0001>

<llo_original>
// kernel: tpu_custom_call.1
$region0: #{tpu_custom_call.1}
  #allocation0 [shape = 'u32[]', space=smem, size = 0x4, offset = 0x4, fixed_abs, tag = 'smem constant byte address 0x4 - core index']
  #allocation1 [shape = 'u32[72,128]{1,0:T(1,128)}', space=vmem, size = 0x9000, scoped, tag = 'internal scratch']
  #allocation2 [shape = 'bf16[400,512]{1,0:T(8,128)(2,1)}', space=vmem, size = 0x64000, scoped, tag = 'scratch operand']
  #allocation3 [shape = 'bf16[400,384]{1,0:T(8,128)(2,1)}', space=vmem, size = 0x4b000, scoped, tag = 'scratch operand']
  #allocation4 [shape = 'bf16[16,512]{1,0:T(8,128)(2,1)}', space=vmem, size = 0x4000, scoped, tag = 'scratch operand']
  %s0 = inlined_call_operand.hbm [shape: bf16[2,16,640], index: 0, kind: input, shape index: {}]
  %s1 = inlined_call_operand.hbm [shape: bf16[16,400], index: 1, kind: input, shape index: {}]
  %s2 = inlined_call_operand.hbm [shape: bf16[16,400], index: 2, kind: input, shape index: {}]
  %s3 = inlined_call_operand.hbm [shape: bf16[16,16], index: 3, kind: input, shape index: {}]
  %s4 = inlined_call_operand.hbm [shape: f32[1,512], index: 4, kind: input, shape index: {}]
  %s5 = inlined_call_operand.vmem [shape: f32[1,384], index: 5, kind: input, shape index: {}]
  %s6 = inlined_call_operand.vmem [shape: f32[3], index: 6, kind: input, shape index: {}]
  %s7 = inlined_call_operand.hbm [shape: f32[2,16,384], index: 7, kind: output, shape index: {}]
  %s8 = sld [smem:[#allocation0]]
  $region85: #{tpu_custom_call.1} parent=0
    _
  %s10 = ssub.s32 1, %s8
  %s11 = scalar_select 0, %s10, %s8
  $region1: #{tpu_custom_call.1} parent=0
    #allocation5 [shape = 'u8[40960]{0}', space=vmem, size = 0xa000, scoped, tag = 'input window, operand 0']
    #allocation6 [shape = 's32[2]{0}', space=sflag, size = 0x8, scoped, tag = 'scoped memory for tpu_custom_call.1']
    #allocation7 [shape = 's32[2]{0}', space=sflag, size = 0x8, scoped, tag = 'scoped memory for tpu_custom_call.1']
    #allocation8 [shape = 's32[2]{0}', space=sflag, size = 0x8, scoped, tag = 'scoped memory for tpu_custom_call.1']
    #allocation9 [shape = 'u8[16384]{0}', space=vmem, size = 0x4000, scoped, tag = 'input window, operand 1, single buffered']
    #allocation10 [shape = 's32[1]{0}', space=sflag, size = 0x4, scoped, tag = 'scoped memory for tpu_custom_call.1']
    #allocation11 [shape = 'u8[16384]{0}', space=vmem, size = 0x4000, scoped, tag = 'input window, operand 2, single buffered']
    #allocation12 [shape = 'u8[4096]{0}', space=vmem, size = 0x1000, scoped, tag = 'input window, operand 3, single buffered']
    #allocation13 [shape = 's32[1]{0}', space=sflag, size = 0x4, scoped, tag = 'scoped memory for tpu_custom_call.1']
    #allocation14 [shape = 'u8[2048]{0}', space=vmem, size = 0x800, scoped, tag = 'input window, operand 4, single buffered']
    #allocation15 [shape = 'u8[512]{0}', space=smem, size = 0x200, scoped, tag = 'input window, operand 6, single buffered']
    #allocation16 [shape = 'u8[49152]{0}', space=vmem, size = 0xc000, scoped, tag = 'output window, operand 0']
    %12 = vsyncpa [#allocation6], 0
    %s13 = scalar_lea.sflag [#allocation6], 1
    %14 = vsyncpa %s13, 0
    %15 = vsyncpa [#allocation10], 0
    %16 = vsyncpa [#allocation13], 0
    %17 = vsyncpa [#allocation8], 0
    %18 = vsyncpa [#allocation7], 0
    %s19 = scalar_lea.sflag [#allocation7], 1
    %20 = vsyncpa %s19, 0
    loop: start=0, step=1, limit=4
    $region2: #{tpu_custom_call.1} parent=1 // loop_pre_header
      _
    $region3: #{tpu_custom_call.1} parent=1 // loop_header
      %s22 = sphi 0, %s26
      %p23 = scmp.ge.s32.totalorder %s22, 4
      %s32 = sphi 0, %s34
      %s35 = sphi 0, %s32
      %s36 = sphi 0, %s35
      %s52 = sphi 0, %s36
      %s56 = sphi 0, %s56
      %s58 = sphi 0, %s56
      %s59 = sphi 0, %s58
      %s73 = sphi 0, %s59
      %s77 = sphi 0, %s77
      %s79 = sphi 0, %s77
      %s80 = sphi 0, %s79
      %s94 = sphi 0, %s80
      %s98 = sphi 0, %s98
      %s100 = sphi 0, %s98
      %s101 = sphi 0, %s100
      %s115 = sphi 0, %s101
      %s119 = sphi 0, %s119
      %s121 = sphi 0, %s119
      %s122 = sphi 0, %s121
      %s136 = sphi 0, %s122
      %s140 = sphi 0, %s140
      %s142 = sphi 0, %s140
      %s143 = sphi 0, %s142
      %s157 = sphi 0, %s143
      %s161 = sphi 0, %s161
      %s163 = sphi 0, %s161
      %s164 = sphi 0, %s163
      %s178 = sphi 0, %s164
      %s184 = sphi 0, %s186
      %s187 = sphi 0, %s184
      %s188 = sphi 0, %s187
      %s204 = sphi 0, %s188
    $region4: #{tpu_custom_call.1} parent=1 // loop_header_branch
      %25 = sbr.rel (%p23) target = $region8
    $region5: #{tpu_custom_call.1} parent=1 // loop_body
      %s27 = ssub.s32 %s22, 1
      %s28 = ssub.s32 %s22, 2
      %s29 = sadd.s32 %s22, 1
      %s30 = ssub.s32 %s22, %s29
      %p31 = scmp.eq.s32.totalorder %s30, 0
      %s33 = sadd.s32 %s32, 1
      %s34 = scalar_select %p31, %s32, %s33
      %p37 = pneg %p31
      %p38 = scmp.eq.s32.totalorder %s22, 1
      %p39 = por %p37, %p38
      %p40 = scmp.ne.s32.totalorder %s32, %s35
      %p41 = scmp.eq.s32.totalorder %s22, 0
      %p42 = por %p40, %p41
      %p43 = scmp.ne.s32.totalorder %s32, %s35
      %p44 = scmp.eq.s32.totalorder %s27, 1
      %p45 = por %p43, %p44
      %p46 = scmp.ne.s32.totalorder %s35, %s36
      %p47 = scmp.eq.s32.totalorder %s27, 0
      %p48 = por %p46, %p47
      %p49 = scmp.ne.s32.totalorder %s35, %s36
      %p50 = scmp.eq.s32.totalorder %s28, 1
      %p51 = por %p49, %p50
      %p53 = scmp.ne.s32.totalorder %s36, %s52
      %p54 = scmp.eq.s32.totalorder %s28, 0
      %p55 = por %p53, %p54
      %s57 = sadd.s32 %s56, 1
      %p60 = scmp.eq.s32.totalorder %s22, 1
      %p61 = scmp.ne.s32.totalorder %s56, %s58
      %p62 = scmp.eq.s32.totalorder %s22, 0
      %p63 = por %p61, %p62
      %p64 = scmp.ne.s32.totalorder %s56, %s58
      %p65 = scmp.eq.s32.totalorder %s27, 1
      %p66 = por %p64, %p65
      %p67 = scmp.ne.s32.totalorder %s58, %s59
      %p68 = scmp.eq.s32.totalorder %s27, 0
      %p69 = por %p67, %p68
      %p70 = scmp.ne.s32.totalorder %s58, %s59
      %p71 = scmp.eq.s32.totalorder %s28, 1
      %p72 = por %p70, %p71
      %p74 = scmp.ne.s32.totalorder %s59, %s73
      %p75 = scmp.eq.s32.totalorder %s28, 0
      %p76 = por %p74, %p75
      %s78 = sadd.s32 %s77, 1
      %p81 = scmp.eq.s32.totalorder %s22, 1
      %p82 = scmp.ne.s32.totalorder %s77, %s79
      %p83 = scmp.eq.s32.totalorder %s22, 0
      %p84 = por %p82, %p83
      %p85 = scmp.ne.s32.totalorder %s77, %s79
      %p86 = scmp.eq.s32.totalorder %s27, 1
      %p87 = por %p85, %p86
      %p88 = scmp.ne.s32.totalorder %s79, %s80
      %p89 = scmp.eq.s32.totalorder %s27, 0
      %p90 = por %p88, %p89
      %p91 = scmp.ne.s32.totalorder %s79, %s80
      %p92 = scmp.eq.s32.totalorder %s28, 1
      %p93 = por %p91, %p92
      %p95 = scmp.ne.s32.totalorder %s80, %s94
      %p96 = scmp.eq.s32.totalorder %s28, 0
      %p97 = por %p95, %p96
      %s99 = sadd.s32 %s98, 1
      %p102 = scmp.eq.s32.totalorder %s22, 1
      %p103 = scmp.ne.s32.totalorder %s98, %s100
      %p104 = scmp.eq.s32.totalorder %s22, 0
      %p105 = por %p103, %p104
      %p106 = scmp.ne.s32.totalorder %s98, %s100
      %p107 = scmp.eq.s32.totalorder %s27, 1
      %p108 = por %p106, %p107
      %p109 = scmp.ne.s32.totalorder %s100, %s101
      %p110 = scmp.eq.s32.totalorder %s27, 0
      %p111 = por %p109, %p110
      %p112 = scmp.ne.s32.totalorder %s100, %s101
      %p113 = scmp.eq.s32.totalorder %s28, 1
      %p114 = por %p112, %p113
      %p116 = scmp.ne.s32.totalorder %s101, %s115
      %p117 = scmp.eq.s32.totalorder %s28, 0
      %p118 = por %p116, %p117
      %s120 = sadd.s32 %s119, 1
      %p123 = scmp.eq.s32.totalorder %s22, 1
      %p124 = scmp.ne.s32.totalorder %s119, %s121
      %p125 = scmp.eq.s32.totalorder %s22, 0
      %p126 = por %p124, %p125
      %p127 = scmp.ne.s32.totalorder %s119, %s121
      %p128 = scmp.eq.s32.totalorder %s27, 1
      %p129 = por %p127, %p128
      %p130 = scmp.ne.s32.totalorder %s121, %s122
      %p131 = scmp.eq.s32.totalorder %s27, 0
      %p132 = por %p130, %p131
      %p133 = scmp.ne.s32.totalorder %s121, %s122
      %p134 = scmp.eq.s32.totalorder %s28, 1
      %p135 = por %p133, %p134
      %p137 = scmp.ne.s32.totalorder %s122, %s136
      %p138 = scmp.eq.s32.totalorder %s28, 0
      %p139 = por %p137, %p138
      %s141 = sadd.s32 %s140, 1
      %p144 = scmp.eq.s32.totalorder %s22, 1
      %p145 = scmp.ne.s32.totalorder %s140, %s142
      %p146 = scmp.eq.s32.totalorder %s22, 0
      %p147 = por %p145, %p146
      %p148 = scmp.ne.s32.totalorder %s140, %s142
      %p149 = scmp.eq.s32.totalorder %s27, 1
      %p150 = por %p148, %p149
      %p151 = scmp.ne.s32.totalorder %s142, %s143
      %p152 = scmp.eq.s32.totalorder %s27, 0
      %p153 = por %p151, %p152
      %p154 = scmp.ne.s32.totalorder %s142, %s143
      %p155 = scmp.eq.s32.totalorder %s28, 1
      %p156 = por %p154, %p155
      %p158 = scmp.ne.s32.totalorder %s143, %s157
      %p159 = scmp.eq.s32.totalorder %s28, 0
      %p160 = por %p158, %p159
      %s162 = sadd.s32 %s161, 1
      %p165 = scmp.eq.s32.totalorder %s22, 1
      %p166 = scmp.ne.s32.totalorder %s161, %s163
      %p167 = scmp.eq.s32.totalorder %s22, 0
      %p168 = por %p166, %p167
      %p169 = scmp.ne.s32.totalorder %s161, %s163
      %p170 = scmp.eq.s32.totalorder %s27, 1
      %p171 = por %p169, %p170
      %p172 = scmp.ne.s32.totalorder %s163, %s164
      %p173 = scmp.eq.s32.totalorder %s27, 0
      %p174 = por %p172, %p173
      %p175 = scmp.ne.s32.totalorder %s163, %s164
      %p176 = scmp.eq.s32.totalorder %s28, 1
      %p177 = por %p175, %p176
      %p179 = scmp.ne.s32.totalorder %s164, %s178
      %p180 = scmp.eq.s32.totalorder %s28, 0
      %p181 = por %p179, %p180
      %s182 = ssub.s32 %s22, %s29
      %p183 = scmp.eq.s32.totalorder %s182, 0
      %s185 = sadd.s32 %s184, 1
      %s186 = scalar_select %p183, %s184, %s185
      %p189 = pneg %p183
      %p190 = scmp.eq.s32.totalorder %s22, 1
      %p191 = por %p189, %p190
      %p192 = scmp.ne.s32.totalorder %s184, %s187
      %p193 = scmp.eq.s32.totalorder %s22, 0
      %p194 = por %p192, %p193
      %p195 = scmp.ne.s32.totalorder %s184, %s187
      %p196 = scmp.eq.s32.totalorder %s27, 1
      %p197 = por %p195, %p196
      %p198 = scmp.ne.s32.totalorder %s187, %s188
      %p199 = scmp.eq.s32.totalorder %s27, 0
      %p200 = por %p198, %p199
      %p201 = scmp.ne.s32.totalorder %s187, %s188
      %p202 = scmp.eq.s32.totalorder %s28, 1
      %p203 = por %p201, %p202
      %p205 = scmp.ne.s32.totalorder %s188, %s204
      %p206 = scmp.eq.s32.totalorder %s28, 0
      %p207 = por %p205, %p206
      %p208 = scmp.le.s32.totalorder 1, %s22
      %p209 = scmp.lt.s32.totalorder %s22, 3
      %p210 = pnand %p208, %p209
      %p211 = pneg %p210
      // Predicated region
      $region9: #{tpu_custom_call.1} parent=5 // pred_check
        _
      $region10: #{tpu_custom_call.1} parent=5 // pred_check_branch
        %213 = sbr.rel (%p210) target = $region12
      $region11: #{tpu_custom_call.1} parent=5 // pred_region
        %s214 = ssub.s32 %s22, 1
        // Predicated region
        $region13: #{tpu_custom_call.1} parent=11 // pred_check
          %p215 = pneg %p69
        $region14: #{tpu_custom_call.1} parent=11 // pred_check_branch
          %217 = sbr.rel (%p215) target = $region16
        $region15: #{tpu_custom_call.1} parent=11 // pred_region
          %219 = vsyncadd [#allocation10], 0
          %s220 = sshll.u32 %s1, 4
          %s221 = int_to_ptr.hbm [resolvable:$true] %s220
          %s222 = sshll.u32 [#allocation9], 4
          %s223 = int_to_ptr.vmem [resolvable:$true] %s222
          %228 = dma.hbm_to_vmem [thread:$0]  %s221, 512, %s223, [#allocation10], 256, 256, 16
        $region16: #{tpu_custom_call.1} parent=11 // pred_fallthru
          _
        // Predicated region
        $region17: #{tpu_custom_call.1} parent=11 // pred_check
          %p229 = pneg %p90
        $region18: #{tpu_custom_call.1} parent=11 // pred_check_branch
          %231 = sbr.rel (%p229) target = $region20
        $region19: #{tpu_custom_call.1} parent=11 // pred_region
          %233 = vsyncadd [#allocation10], 0
          %s234 = sshll.u32 %s2, 4
          %s235 = int_to_ptr.hbm [resolvable:$true] %s234
          %s236 = sshll.u32 [#allocation11], 4
          %s237 = int_to_ptr.vmem [resolvable:$true] %s236
          %242 = dma.hbm_to_vmem [thread:$0]  %s235, 512, %s237, [#allocation10], 256, 256, 16
        $region20: #{tpu_custom_call.1} parent=11 // pred_fallthru
          _
        // Predicated region
        $region21: #{tpu_custom_call.1} parent=11 // pred_check
          %p243 = pneg %p111
        $region22: #{tpu_custom_call.1} parent=11 // pred_check_branch
          %245 = sbr.rel (%p243) target = $region24
        $region23: #{tpu_custom_call.1} parent=11 // pred_region
          %247 = vsyncadd [#allocation13], 0
          %s248 = sshll.u32 %s3, 4
          %s249 = int_to_ptr.hbm [resolvable:$true] %s248
          %s250 = sshll.u32 [#allocation12], 4
          %s251 = int_to_ptr.vmem [resolvable:$true] %s250
          %256 = dma.hbm_to_vmem [thread:$0]  %s249, 128, %s251, [#allocation13], 64, 64, 4
        $region24: #{tpu_custom_call.1} parent=11 // pred_fallthru
          _
        // Predicated region
        $region25: #{tpu_custom_call.1} parent=11 // pred_check
          %p257 = pneg %p132
        $region26: #{tpu_custom_call.1} parent=11 // pred_check_branch
          %259 = sbr.rel (%p257) target = $region28
        $region27: #{tpu_custom_call.1} parent=11 // pred_region
          %261 = vsyncadd [#allocation13], 0
          %s263 = sshll.u32 %s4, 4
          %s264 = int_to_ptr.hbm [resolvable:$true] %s263
          %s265 = sshll.u32 [#allocation14], 4
          %s266 = int_to_ptr.vmem [resolvable:$true] %s265
          %268 = dma.hbm_to_vmem [thread:$0]  %s264, 64, %s266, [#allocation13]
        $region28: #{tpu_custom_call.1} parent=11 // pred_fallthru
          _
        // Predicated region
        $region29: #{tpu_custom_call.1} parent=11 // pred_check
          %p269 = pneg %p153
        $region30: #{tpu_custom_call.1} parent=11 // pred_check_branch
          %271 = sbr.rel (%p269) target = $region32
        $region31: #{tpu_custom_call.1} parent=11 // pred_region
          _
        $region32: #{tpu_custom_call.1} parent=11 // pred_fallthru
          _
        // Predicated region
        $region33: #{tpu_custom_call.1} parent=11 // pred_check
          %p272 = pneg %p174
        $region34: #{tpu_custom_call.1} parent=11 // pred_check_branch
          %274 = sbr.rel (%p272) target = $region36
        $region35: #{tpu_custom_call.1} parent=11 // pred_region
          %276 = vsyncadd [#allocation8], 0
          %s278 = sshll.u32 %s6, 4
          %s279 = int_to_ptr.vmem [resolvable:$true] %s278
          %281 = dma.vmem_to_smem %s279, 16, [#allocation15], [#allocation8]
        $region36: #{tpu_custom_call.1} parent=11 // pred_fallthru
          _
      $region12: #{tpu_custom_call.1} parent=5 // pred_fallthru
        _
      %p282 = scmp.lt.s32.totalorder %s22, 2
      // Predicated region
      $region37: #{tpu_custom_call.1} parent=5 // pred_check
        %p283 = pneg %p282
      $region38: #{tpu_custom_call.1} parent=5 // pred_check_branch
        %285 = sbr.rel (%p283) target = $region40
      $region39: #{tpu_custom_call.1} parent=5 // pred_region
        // Predicated region
        $region41: #{tpu_custom_call.1} parent=39 // pred_check
          %p286 = pneg %p42
        $region42: #{tpu_custom_call.1} parent=39 // pred_check_branch
          %288 = sbr.rel (%p286) target = $region44
        $region43: #{tpu_custom_call.1} parent=39 // pred_region
          %s289 = sand.u32 %s32, 1
          %s290 = scalar_lea.sflag [#allocation6], %s289
          %s291 = sand.u32 %s32, 1
          %s292 = smul.addr %s291, 40
          %s293 = scalar_lea.vmem [#allocation5], %s292
          %295 = vsyncadd %s290, 0
          %s296 = smul.addr %s22, 10
          %s297 = smul.addr %s296, 4
          %s298 = scalar_lea.hbm %s0, %s297
          %s299 = sshll.u32 %s298, 4
          %s300 = int_to_ptr.hbm [resolvable:$true] %s299
          %s301 = sshll.u32 %s293, 4
          %s302 = int_to_ptr.vmem [resolvable:$true] %s301
          %307 = dma.hbm_to_vmem [thread:$0]  %s300, 640, %s302, %s290, 320, 320, 20
        $region44: #{tpu_custom_call.1} parent=39 // pred_fallthru
          _
      $region40: #{tpu_custom_call.1} parent=5 // pred_fallthru
        _
      %p308 = scmp.le.s32.totalorder 1, %s22
      %p309 = scmp.lt.s32.totalorder %s22, 3
      %p310 = pnand %p308, %p309
      %p311 = pneg %p310
      // Predicated region
      $region45: #{tpu_custom_call.1} parent=5 // pred_check
        _
      $region46: #{tpu_custom_call.1} parent=5 // pred_check_branch
        %313 = sbr.rel (%p310) target = $region48
      $region47: #{tpu_custom_call.1} parent=5 // pred_region
        %s314 = ssub.s32 %s22, 1
        %s315 = sand.u32 %s35, 1
        %s316 = scalar_lea.sflag [#allocation6], %s315
        %s317 = sand.u32 %s35, 1
        %s318 = smul.addr %s317, 40
        %s319 = scalar_lea.vmem [#allocation5], %s318
        // Predicated region
        $region49: #{tpu_custom_call.1} parent=47 // pred_check
          %p320 = pneg %p48
        $region50: #{tpu_custom_call.1} parent=47 // pred_check_branch
          %322 = sbr.rel (%p320) target = $region52
        $region51: #{tpu_custom_call.1} parent=47 // pred_region
          %324 = dma.done %s316, 640
        $region52: #{tpu_custom_call.1} parent=47 // pred_fallthru
          _
        // Predicated region
        $region53: #{tpu_custom_call.1} parent=47 // pred_check
          %p325 = pneg %p69
        $region54: #{tpu_custom_call.1} parent=47 // pred_check_branch
          %327 = sbr.rel (%p325) target = $region56
        $region55: #{tpu_custom_call.1} parent=47 // pred_region
          %329 = dma.done [#allocation10], 512
        $region56: #{tpu_custom_call.1} parent=47 // pred_fallthru
          _
        // Predicated region
        $region57: #{tpu_custom_call.1} parent=47 // pred_check
          %p330 = pneg %p90
        $region58: #{tpu_custom_call.1} parent=47 // pred_check_branch
          %332 = sbr.rel (%p330) target = $region60
        $region59: #{tpu_custom_call.1} parent=47 // pred_region
          %334 = dma.done [#allocation10], 512
        $region60: #{tpu_custom_call.1} parent=47 // pred_fallthru
          _
        // Predicated region
        $region61: #{tpu_custom_call.1} parent=47 // pred_check
          %p335 = pneg %p111
        $region62: #{tpu_custom_call.1} parent=47 // pred_check_branch
          %337 = sbr.rel (%p335) target = $region64
        $region63: #{tpu_custom_call.1} parent=47 // pred_region
          %339 = dma.done [#allocation13], 128
        $region64: #{tpu_custom_call.1} parent=47 // pred_fallthru
          _
        // Predicated region
        $region65: #{tpu_custom_call.1} parent=47 // pred_check
          %p340 = pneg %p132
        $region66: #{tpu_custom_call.1} parent=47 // pred_check_branch
          %342 = sbr.rel (%p340) target = $region68
        $region67: #{tpu_custom_call.1} parent=47 // pred_region
          %344 = dma.done [#allocation13], 64
        $region68: #{tpu_custom_call.1} parent=47 // pred_fallthru
          _
        // Predicated region
        $region69: #{tpu_custom_call.1} parent=47 // pred_check
          %p345 = pneg %p174
        $region70: #{tpu_custom_call.1} parent=47 // pred_check_branch
          %347 = sbr.rel (%p345) target = $region72
        $region71: #{tpu_custom_call.1} parent=47 // pred_region
          %349 = dma.done [#allocation8], 16
        $region72: #{tpu_custom_call.1} parent=47 // pred_fallthru
          _
        %350 = sfence
        %s351 = sand.u32 %s35, 1
        %s352 = scalar_lea.sflag [#allocation6], %s351
        %s353 = sand.u32 %s35, 1
        %s354 = smul.addr %s353, 40
        %s355 = scalar_lea.vmem [#allocation5], %s354
        %p356 = pneg %p48
        %p357 = pneg %p45
        %p358 = pneg %p69
        %p359 = pneg %p66
        %p360 = pneg %p90
        %p361 = pneg %p87
        %p362 = pneg %p111
        %p363 = pneg %p108
        %p364 = pneg %p132
        %p365 = pneg %p129
        %p366 = pneg %p153
        %p367 = pneg %p150
        %p368 = pneg %p174
        %p369 = pneg %p171
        %p370 = pneg %p200
        %p371 = pneg %p197
        %s372 = sand.u32 %s187, 1
        %s373 = scalar_lea.sflag [#allocation7], %s372
        %s374 = sand.u32 %s187, 1
        %s375 = smul.addr %s374, 48
        %s376 = scalar_lea.vmem [#allocation16], %s375
        %s378 = sld [smem:[#allocation15]]
        %s379 = sld [smem:[#allocation15 + $0x1]]
        %s380 = sld [smem:[#allocation15 + $0x2]]
        %v381 = vld [vmem:[#allocation14] sm:$0xf]
        %v382 = vld [vmem:[%s5] sm:$0x7]
        %v383 = vld [vmem:[%s319] sm:$0xff]
        %v384 = vld [vmem:[%s319 + $0x8] sm:$0xff]
        %v385 = vld [vmem:[%s319 + $0x10] sm:$0xf]
        %v386 = vld [vmem:[%s319 + $0x14] sm:$0xff]
        %v387 = vld [vmem:[%s319 + $0x1c] sm:$0xff]
        %v388 = vld [vmem:[%s319 + $0x24] sm:$0xf]
        %395 = vrot.lane.b32.xlu0 %v383, 122
        %v396 = vpop.permute.xlu0 %395
        %397 = vrot.lane.b32.xlu0 %v384, 122
        %v398 = vpop.permute.xlu0 %397
        %399 = vrot.lane.b32.xlu0 %v385, 122
        %v400 = vpop.permute.xlu0 %399
        %401 = vrot.lane.b32.xlu0 %v386, 122
        %v402 = vpop.permute.xlu0 %401
        %403 = vrot.lane.b32.xlu0 %v387, 122
        %v404 = vpop.permute.xlu0 %403
        %405 = vrot.lane.b32.xlu0 %v388, 122
        %v406 = vpop.permute.xlu0 %405
        %v407 = vrot.slane %v396, 4
        %v408 = vrot.slane %v398, 4
        %v409 = vrot.slane %v400, 4
        %v410 = vrot.slane %v402, 4
        %v411 = vrot.slane %v404, 4
        %v412 = vrot.slane %v406, 4
        %vm413 = vcmask 1043456
        %v414 = vsel %vm413, %v407, %v408
        %vm415 = vcmask 998400
        %v416 = vsel %vm415, %v396, %v414
        %v417 = vsel %vm413, %v408, %v409
        %v418 = vsel %vm415, %v398, %v417
        %v419 = vsel %vm413, %v410, %v411
        %v420 = vsel %vm415, %v402, %v419
        %v421 = vsel %vm413, %v411, %v412
        %v422 = vsel %vm415, %v404, %v421
        %427 = vst [vmem:[#allocation2] sm:$0xff] %v416
        %428 = vst [vmem:[#allocation2 + $0x8] sm:$0xff] %v418
        %429 = vst [vmem:[#allocation2 + $0x10] sm:$0xff] %v420
        %430 = vst [vmem:[#allocation2 + $0x18] sm:$0xff] %v422
        %v431 = vld [vmem:[%s319] sm:$0xff]
        %v432 = vld [vmem:[%s319 + $0x8] sm:$0xff]
        %v433 = vld [vmem:[%s319 + $0x10] sm:$0xf]
        %v434 = vld [vmem:[%s319 + $0x14] sm:$0xff]
        %v435 = vld [vmem:[%s319 + $0x1c] sm:$0xff]
        %v436 = vld [vmem:[%s319 + $0x24] sm:$0xf]
        %443 = vrot.lane.b32.xlu0 %v431, 121
        %v444 = vpop.permute.xlu0 %443
        %445 = vrot.lane.b32.xlu0 %v432, 121
        %v446 = vpop.permute.xlu0 %445
        %447 = vrot.lane.b32.xlu0 %v433, 121
        %v448 = vpop.permute.xlu0 %447
        %449 = vrot.lane.b32.xlu0 %v434, 121
        %v450 = vpop.permute.xlu0 %449
        %451 = vrot.lane.b32.xlu0 %v435, 121
        %v452 = vpop.permute.xlu0 %451
        %453 = vrot.lane.b32.xlu0 %v436, 121
        %v454 = vpop.permute.xlu0 %453
        %v455 = vrot.slane %v444, 4
        %v456 = vrot.slane %v446, 4
        %v457 = vrot.slane %v448, 4
        %v458 = vrot.slane %v450, 4
        %v459 = vrot.slane %v452, 4
        %v460 = vrot.slane %v454, 4
        %v461 = vsel %vm413, %v455, %v456
        %vm462 = vcmask 990208
        %v463 = vsel %vm462, %v444, %v461
        %v464 = vsel %vm413, %v456, %v457
        %v465 = vsel %vm462, %v446, %v464
        %v466 = vsel %vm413, %v458, %v459
        %v467 = vsel %vm462, %v450, %v466
        %v468 = vsel %vm413, %v459, %v460
        %v469 = vsel %vm462, %v452, %v468
        %474 = vst [vmem:[#allocation2 + $0x20] sm:$0xff] %v463
        %475 = vst [vmem:[#allocation2 + $0x28] sm:$0xff] %v465
        %476 = vst [vmem:[#allocation2 + $0x30] sm:$0xff] %v467
        %477 = vst [vmem:[#allocation2 + $0x38] sm:$0xff] %v469
        %v478 = vld [vmem:[%s319] sm:$0xff]
        %v479 = vld [vmem:[%s319 + $0x8] sm:$0xff]
        %v480 = vld [vmem:[%s319 + $0x10] sm:$0xf]
        %v481 = vld [vmem:[%s319 + $0x14] sm:$0xff]
        %v482 = vld [vmem:[%s319 + $0x1c] sm:$0xff]
        %v483 = vld [vmem:[%s319 + $0x24] sm:$0xf]
        %490 = vrot.lane.b32.xlu0 %v478, 120
        %v491 = vpop.permute.xlu0 %490
        %492 = vrot.lane.b32.xlu0 %v479, 120
        %v493 = vpop.permute.xlu0 %492
        %494 = vrot.lane.b32.xlu0 %v480, 120
        %v495 = vpop.permute.xlu0 %494
        %496 = vrot.lane.b32.xlu0 %v481, 120
        %v497 = vpop.permute.xlu0 %496
        %498 = vrot.lane.b32.xlu0 %v482, 120
        %v499 = vpop.permute.xlu0 %498
        %500 = vrot.lane.b32.xlu0 %v483, 120
        %v501 = vpop.permute.xlu0 %500
        %v502 = vrot.slane %v491, 4
        %v503 = vrot.slane %v493, 4
        %v504 = vrot.slane %v495, 4
        %v505 = vrot.slane %v497, 4
        %v506 = vrot.slane %v499, 4
        %v507 = vrot.slane %v501, 4
        %v508 = vsel %vm413, %v502, %v503
        %vm509 = vcmask 982016
        %v510 = vsel %vm509, %v491, %v508
        %v511 = vsel %vm413, %v503, %v504
        %v512 = vsel %vm509, %v493, %v511
        %v513 = vsel %vm413, %v505, %v506
        %v514 = vsel %vm509, %v497, %v513
        %v515 = vsel %vm413, %v506, %v507
        %v516 = vsel %vm509, %v499, %v515
        %521 = vst [vmem:[#allocation2 + $0x40] sm:$0xff] %v510
        %522 = vst [vmem:[#allocation2 + $0x48] sm:$0xff] %v512
        %523 = vst [vmem:[#allocation2 + $0x50] sm:$0xff] %v514
        %524 = vst [vmem:[#allocation2 + $0x58] sm:$0xff] %v516
        %v525 = vld [vmem:[%s319] sm:$0xff]
        %v526 = vld [vmem:[%s319 + $0x8] sm:$0xff]
        %v527 = vld [vmem:[%s319 + $0x10] sm:$0xf]
        %v528 = vld [vmem:[%s319 + $0x14] sm:$0xff]
        %v529 = vld [vmem:[%s319 + $0x1c] sm:$0xff]
        %v530 = vld [vmem:[%s319 + $0x24] sm:$0xf]
        %537 = vrot.lane.b32.xlu0 %v525, 119
        %v538 = vpop.permute.xlu0 %537
        %539 = vrot.lane.b32.xlu0 %v526, 119
        %v540 = vpop.permute.xlu0 %539
        %541 = vrot.lane.b32.xlu0 %v527, 119
        %v542 = vpop.permute.xlu0 %541
        %543 = vrot.lane.b32.xlu0 %v528, 119
        %v544 = vpop.permute.xlu0 %543
        %545 = vrot.lane.b32.xlu0 %v529, 119
        %v546 = vpop.permute.xlu0 %545
        %547 = vrot.lane.b32.xlu0 %v530, 119
        %v548 = vpop.permute.xlu0 %547
        %v549 = vrot.slane %v538, 4
        %v550 = vrot.slane %v540, 4
        %v551 = vrot.slane %v542, 4
        %v552 = vrot.slane %v544, 4
        %v553 = vrot.slane %v546, 4
        %v554 = vrot.slane %v548, 4
        %v555 = vsel %vm413, %v549, %v550
        %vm556 = vcmask 973824
        %v557 = vsel %vm556, %v538, %v555
        %v558 = vsel %vm413, %v550, %v551
        %v559 = vsel %vm556, %v540, %v558
        %v560 = vsel %vm413, %v552, %v553
        %v561 = vsel %vm556, %v544, %v560
        %v562 = vsel %vm413, %v553, %v554
        %v563 = vsel %vm556, %v546, %v562
        %568 = vst [vmem:[#allocation2 + $0x60] sm:$0xff] %v557
        %569 = vst [vmem:[#allocation2 + $0x68] sm:$0xff] %v559
        %570 = vst [vmem:[#allocation2 + $0x70] sm:$0xff] %v561
        %571 = vst [vmem:[#allocation2 + $0x78] sm:$0xff] %v563
        %v572 = vld [vmem:[%s319] sm:$0xff]
        %v573 = vld [vmem:[%s319 + $0x8] sm:$0xff]
        %v574 = vld [vmem:[%s319 + $0x10] sm:$0xf]
        %v575 = vld [vmem:[%s319 + $0x14] sm:$0xff]
        %v576 = vld [vmem:[%s319 + $0x1c] sm:$0xff]
        %v577 = vld [vmem:[%s319 + $0x24] sm:$0xf]
        %584 = vrot.lane.b32.xlu0 %v572, 118
        %v585 = vpop.permute.xlu0 %584
        %586 = vrot.lane.b32.xlu0 %v573, 118
        %v587 = vpop.permute.xlu0 %586
        %588 = vrot.lane.b32.xlu0 %v574, 118
        %v589 = vpop.permute.xlu0 %588
        %590 = vrot.lane.b32.xlu0 %v575, 118
        %v591 = vpop.permute.xlu0 %590
        %592 = vrot.lane.b32.xlu0 %v576, 118
        %v593 = vpop.permute.xlu0 %592
        %594 = vrot.lane.b32.xlu0 %v577, 118
        %v595 = vpop.permute.xlu0 %594
        %v596 = vrot.slane %v585, 4
        %v597 = vrot.slane %v587, 4
        %v598 = vrot.slane %v589, 4
        %v599 = vrot.slane %v591, 4
        %v600 = vrot.slane %v593, 4
        %v601 = vrot.slane %v595, 4
        %v602 = vsel %vm413, %v596, %v597
        %vm603 = vcmask 965632
        %v604 = vsel %vm603, %v585, %v602
        %v605 = vsel %vm413, %v597, %v598
        %v606 = vsel %vm603, %v587, %v605
        %v607 = vsel %vm413, %v599, %v600
        %v608 = vsel %vm603, %v591, %v607
        %v609 = vsel %vm413, %v600, %v601
        %v610 = vsel %vm603, %v593, %v609
        %615 = vst [vmem:[#allocation2 + $0x80] sm:$0xff] %v604
        %616 = vst [vmem:[#allocation2 + $0x88] sm:$0xff] %v606
        %617 = vst [vmem:[#allocation2 + $0x90] sm:$0xff] %v608
        %618 = vst [vmem:[#allocation2 + $0x98] sm:$0xff] %v610
        %v619 = vld [vmem:[%s319] sm:$0xff]
        %v620 = vld [vmem:[%s319 + $0x8] sm:$0xff]
        %v621 = vld [vmem:[%s319 + $0x10] sm:$0xf]
        %v622 = vld [vmem:[%s319 + $0x14] sm:$0xff]
        %v623 = vld [vmem:[%s319 + $0x1c] sm:$0xff]
        %v624 = vld [vmem:[%s319 + $0x24] sm:$0xf]
        %631 = vrot.lane.b32.xlu0 %v619, 102
        %v632 = vpop.permute.xlu0 %631
        %633 = vrot.lane.b32.xlu0 %v620, 102
        %v634 = vpop.permute.xlu0 %633
        %635 = vrot.lane.b32.xlu0 %v621, 102
        %v636 = vpop.permute.xlu0 %635
        %637 = vrot.lane.b32.xlu0 %v622, 102
        %v638 = vpop.permute.xlu0 %637
        %639 = vrot.lane.b32.xlu0 %v623, 102
        %v640 = vpop.permute.xlu0 %639
        %641 = vrot.lane.b32.xlu0 %v624, 102
        %v642 = vpop.permute.xlu0 %641
        %v643 = vrot.slane %v632, 4
        %v644 = vrot.slane %v634, 4
        %v645 = vrot.slane %v636, 4
        %v646 = vrot.slane %v638, 4
        %v647 = vrot.slane %v640, 4
        %v648 = vrot.slane %v642, 4
        %v649 = vsel %vm413, %v643, %v644
        %vm650 = vcmask 834560
        %v651 = vsel %vm650, %v632, %v649
        %v652 = vsel %vm413, %v644, %v645
        %v653 = vsel %vm650, %v634, %v652
        %v654 = vsel %vm413, %v646, %v647
        %v655 = vsel %vm650, %v638, %v654
        %v656 = vsel %vm413, %v647, %v648
        %v657 = vsel %vm650, %v640, %v656
        %662 = vst [vmem:[#allocation2 + $0xa0] sm:$0xff] %v651
        %663 = vst [vmem:[#allocation2 + $0xa8] sm:$0xff] %v653
        %664 = vst [vmem:[#allocation2 + $0xb0] sm:$0xff] %v655
        %665 = vst [vmem:[#allocation2 + $0xb8] sm:$0xff] %v657
        %v666 = vld [vmem:[%s319] sm:$0xff]
        %v667 = vld [vmem:[%s319 + $0x8] sm:$0xff]
        %v668 = vld [vmem:[%s319 + $0x10] sm:$0xf]
        %v669 = vld [vmem:[%s319 + $0x14] sm:$0xff]
        %v670 = vld [vmem:[%s319 + $0x1c] sm:$0xff]
        %v671 = vld [vmem:[%s319 + $0x24] sm:$0xf]
        %678 = vrot.lane.b32.xlu0 %v666, 101
        %v679 = vpop.permute.xlu0 %678
        %680 = vrot.lane.b32.xlu0 %v667, 101
        %v681 = vpop.permute.xlu0 %680
        %682 = vrot.lane.b32.xlu0 %v668, 101
        %v683 = vpop.permute.xlu0 %682
        %684 = vrot.lane.b32.xlu0 %v669, 101
        %v685 = vpop.permute.xlu0 %684
        %686 = vrot.lane.b32.xlu0 %v670, 101
        %v687 = vpop.permute.xlu0 %686
        %688 = vrot.lane.b32.xlu0 %v671, 101
        %v689 = vpop.permute.xlu0 %688
        %v690 = vrot.slane %v679, 4
        %v691 = vrot.slane %v681, 4
        %v692 = vrot.slane %v683, 4
        %v693 = vrot.slane %v685, 4
        %v694 = vrot.slane %v687, 4
        %v695 = vrot.slane %v689, 4
        %v696 = vsel %vm413, %v690, %v691
        %vm697 = vcmask 826368
        %v698 = vsel %vm697, %v679, %v696
        %v699 = vsel %vm413, %v691, %v692
        %v700 = vsel %vm697, %v681, %v699
        %v701 = vsel %vm413, %v693, %v694
        %v702 = vsel %vm697, %v685, %v701
        %v703 = vsel %vm413, %v694, %v695
        %v704 = vsel %vm697, %v687, %v703
        %709 = vst [vmem:[#allocation2 + $0xc0] sm:$0xff] %v698
        %710 = vst [vmem:[#allocation2 + $0xc8] sm:$0xff] %v700
        %711 = vst [vmem:[#allocation2 + $0xd0] sm:$0xff] %v702
        %712 = vst [vmem:[#allocation2 + $0xd8] sm:$0xff] %v704
        %v713 = vld [vmem:[%s319] sm:$0xff]
        %v714 = vld [vmem:[%s319 + $0x8] sm:$0xff]
        %v715 = vld [vmem:[%s319 + $0x10] sm:$0xf]
        %v716 = vld [vmem:[%s319 + $0x14] sm:$0xff]
        %v717 = vld [vmem:[%s319 + $0x1c] sm:$0xff]
        %v718 = vld [vmem:[%s319 + $0x24] sm:$0xf]
        %725 = vrot.lane.b32.xlu0 %v713, 100
        %v726 = vpop.permute.xlu0 %725
        %727 = vrot.lane.b32.xlu0 %v714, 100
        %v728 = vpop.permute.xlu0 %727
        %729 = vrot.lane.b32.xlu0 %v715, 100
        %v730 = vpop.permute.xlu0 %729
        %731 = vrot.lane.b32.xlu0 %v716, 100
        %v732 = vpop.permute.xlu0 %731
        %733 = vrot.lane.b32.xlu0 %v717, 100
        %v734 = vpop.permute.xlu0 %733
        %735 = vrot.lane.b32.xlu0 %v718, 100
        %v736 = vpop.permute.xlu0 %735
        %v737 = vrot.slane %v726, 4
        %v738 = vrot.slane %v728, 4
        %v739 = vrot.slane %v730, 4
        %v740 = vrot.slane %v732, 4
        %v741 = vrot.slane %v734, 4
        %v742 = vrot.slane %v736, 4
        %v743 = vsel %vm413, %v737, %v738
        %vm744 = vcmask 818176
        %v745 = vsel %vm744, %v726, %v743
        %v746 = vsel %vm413, %v738, %v739
        %v747 = vsel %vm744, %v728, %v746
        %v748 = vsel %vm413, %v740, %v741
        %v749 = vsel %vm744, %v732, %v748
        %v750 = vsel %vm413, %v741, %v742
        %v751 = vsel %vm744, %v734, %v750
        %756 = vst [vmem:[#allocation2 + $0xe0] sm:$0xff] %v745
        %757 = vst [vmem:[#allocation2 + $0xe8] sm:$0xff] %v747
        %758 = vst [vmem:[#allocation2 + $0xf0] sm:$0xff] %v749
        %759 = vst [vmem:[#allocation2 + $0xf8] sm:$0xff] %v751
        %v760 = vld [vmem:[%s319] sm:$0xff]
        %v761 = vld [vmem:[%s319 + $0x8] sm:$0xff]
        %v762 = vld [vmem:[%s319 + $0x10] sm:$0xf]
        %v763 = vld [vmem:[%s319 + $0x14] sm:$0xff]
        %v764 = vld [vmem:[%s319 + $0x1c] sm:$0xff]
        %v765 = vld [vmem:[%s319 + $0x24] sm:$0xf]
        %772 = vrot.lane.b32.xlu0 %v760, 99
        %v773 = vpop.permute.xlu0 %772
        %774 = vrot.lane.b32.xlu0 %v761, 99
        %v775 = vpop.permute.xlu0 %774
        %776 = vrot.lane.b32.xlu0 %v762, 99
        %v777 = vpop.permute.xlu0 %776
        %778 = vrot.lane.b32.xlu0 %v763, 99
        %v779 = vpop.permute.xlu0 %778
        %780 = vrot.lane.b32.xlu0 %v764, 99
        %v781 = vpop.permute.xlu0 %780
        %782 = vrot.lane.b32.xlu0 %v765, 99
        %v783 = vpop.permute.xlu0 %782
        %v784 = vrot.slane %v773, 4
        %v785 = vrot.slane %v775, 4
        %v786 = vrot.slane %v777, 4
        %v787 = vrot.slane %v779, 4
        %v788 = vrot.slane %v781, 4
        %v789 = vrot.slane %v783, 4
        %v790 = vsel %vm413, %v784, %v785
        %vm791 = vcmask 809984
        %v792 = vsel %vm791, %v773, %v790
        %v793 = vsel %vm413, %v785, %v786
        %v794 = vsel %vm791, %v775, %v793
        %v795 = vsel %vm413, %v787, %v788
        %v796 = vsel %vm791, %v779, %v795
        %v797 = vsel %vm413, %v788, %v789
        %v798 = vsel %vm791, %v781, %v797
        %803 = vst [vmem:[#allocation2 + $0x100] sm:$0xff] %v792
        %804 = vst [vmem:[#allocation2 + $0x108] sm:$0xff] %v794
        %805 = vst [vmem:[#allocation2 + $0x110] sm:$0xff] %v796
        %806 = vst [vmem:[#allocation2 + $0x118] sm:$0xff] %v798
        %v807 = vld [vmem:[%s319] sm:$0xff]
        %v808 = vld [vmem:[%s319 + $0x8] sm:$0xff]
        %v809 = vld [vmem:[%s319 + $0x10] sm:$0xf]
        %v810 = vld [vmem:[%s319 + $0x14] sm:$0xff]
        %v811 = vld [vmem:[%s319 + $0x1c] sm:$0xff]
        %v812 = vld [vmem:[%s319 + $0x24] sm:$0xf]
        %819 = vrot.lane.b32.xlu0 %v807, 98
        %v820 = vpop.permute.xlu0 %819
        %821 = vrot.lane.b32.xlu0 %v808, 98
        %v822 = vpop.permute.xlu0 %821
        %823 = vrot.lane.b32.xlu0 %v809, 98
        %v824 = vpop.permute.xlu0 %823
        %825 = vrot.lane.b32.xlu0 %v810, 98
        %v826 = vpop.permute.xlu0 %825
        %827 = vrot.lane.b32.xlu0 %v811, 98
        %v828 = vpop.permute.xlu0 %827
        %829 = vrot.lane.b32.xlu0 %v812, 98
        %v830 = vpop.permute.xlu0 %829
        %v831 = vrot.slane %v820, 4
        %v832 = vrot.slane %v822, 4
        %v833 = vrot.slane %v824, 4
        %v834 = vrot.slane %v826, 4
        %v835 = vrot.slane %v828, 4
        %v836 = vrot.slane %v830, 4
        %v837 = vsel %vm413, %v831, %v832
        %vm838 = vcmask 801792
        %v839 = vsel %vm838, %v820, %v837
        %v840 = vsel %vm413, %v832, %v833
        %v841 = vsel %vm838, %v822, %v840
        %v842 = vsel %vm413, %v834, %v835
        %v843 = vsel %vm838, %v826, %v842
        %v844 = vsel %vm413, %v835, %v836
        %v845 = vsel %vm838, %v828, %v844
        %850 = vst [vmem:[#allocation2 + $0x120] sm:$0xff] %v839
        %851 = vst [vmem:[#allocation2 + $0x128] sm:$0xff] %v841
        %852 = vst [vmem:[#allocation2 + $0x130] sm:$0xff] %v843
        %853 = vst [vmem:[#allocation2 + $0x138] sm:$0xff] %v845
        %v854 = vld [vmem:[%s319] sm:$0xff]
        %v855 = vld [vmem:[%s319 + $0x8] sm:$0xff]
        %v856 = vld [vmem:[%s319 + $0x10] sm:$0xf]
        %v857 = vld [vmem:[%s319 + $0x14] sm:$0xff]
        %v858 = vld [vmem:[%s319 + $0x1c] sm:$0xff]
        %v859 = vld [vmem:[%s319 + $0x24] sm:$0xf]
        %866 = vrot.lane.b32.xlu0 %v854, 82
        %v867 = vpop.permute.xlu0 %866
        %868 = vrot.lane.b32.xlu0 %v855, 82
        %v869 = vpop.permute.xlu0 %868
        %870 = vrot.lane.b32.xlu0 %v856, 82
        %v871 = vpop.permute.xlu0 %870
        %872 = vrot.lane.b32.xlu0 %v857, 82
        %v873 = vpop.permute.xlu0 %872
        %874 = vrot.lane.b32.xlu0 %v858, 82
        %v875 = vpop.permute.xlu0 %874
        %876 = vrot.lane.b32.xlu0 %v859, 82
        %v877 = vpop.permute.xlu0 %876
        %v878 = vrot.slane %v867, 4
        %v879 = vrot.slane %v869, 4
        %v880 = vrot.slane %v871, 4
        %v881 = vrot.slane %v873, 4
        %v882 = vrot.slane %v875, 4
        %v883 = vrot.slane %v877, 4
        %v884 = vsel %vm413, %v878, %v879
        %vm885 = vcmask 670720
        %v886 = vsel %vm885, %v867, %v884
        %v887 = vsel %vm413, %v879, %v880
        %v888 = vsel %vm885, %v869, %v887
        %v889 = vsel %vm413, %v881, %v882
        %v890 = vsel %vm885, %v873, %v889
        %v891 = vsel %vm413, %v882, %v883
        %v892 = vsel %vm885, %v875, %v891
        %897 = vst [vmem:[#allocation2 + $0x140] sm:$0xff] %v886
        %898 = vst [vmem:[#allocation2 + $0x148] sm:$0xff] %v888
        %899 = vst [vmem:[#allocation2 + $0x150] sm:$0xff] %v890
        %900 = vst [vmem:[#allocation2 + $0x158] sm:$0xff] %v892
        %v901 = vld [vmem:[%s319] sm:$0xff]
        %v902 = vld [vmem:[%s319 + $0x8] sm:$0xff]
        %v903 = vld [vmem:[%s319 + $0x10] sm:$0xf]
        %v904 = vld [vmem:[%s319 + $0x14] sm:$0xff]
        %v905 = vld [vmem:[%s319 + $0x1c] sm:$0xff]
        %v906 = vld [vmem:[%s319 + $0x24] sm:$0xf]
        %913 = vrot.lane.b32.xlu0 %v901, 81
        %v914 = vpop.permute.xlu0 %913
        %915 = vrot.lane.b32.xlu0 %v902, 81
        %v916 = vpop.permute.xlu0 %915
        %917 = vrot.lane.b32.xlu0 %v903, 81
        %v918 = vpop.permute.xlu0 %917
        %919 = vrot.lane.b32.xlu0 %v904, 81
        %v920 = vpop.permute.xlu0 %919
        %921 = vrot.lane.b32.xlu0 %v905, 81
        %v922 = vpop.permute.xlu0 %921
        %923 = vrot.lane.b32.xlu0 %v906, 81
        %v924 = vpop.permute.xlu0 %923
        %v925 = vrot.slane %v914, 4
        %v926 = vrot.slane %v916, 4
        %v927 = vrot.slane %v918, 4
        %v928 = vrot.slane %v920, 4
        %v929 = vrot.slane %v922, 4
        %v930 = vrot.slane %v924, 4
        %v931 = vsel %vm413, %v925, %v926
        %vm932 = vcmask 662528
        %v933 = vsel %vm932, %v914, %v931
        %v934 = vsel %vm413, %v926, %v927
        %v935 = vsel %vm932, %v916, %v934
        %v936 = vsel %vm413, %v928, %v929
        %v937 = vsel %vm932, %v920, %v936
        %v938 = vsel %vm413, %v929, %v930
        %v939 = vsel %vm932, %v922, %v938
        %944 = vst [vmem:[#allocation2 + $0x160] sm:$0xff] %v933
        %945 = vst [vmem:[#allocation2 + $0x168] sm:$0xff] %v935
        %946 = vst [vmem:[#allocation2 + $0x170] sm:$0xff] %v937
        %947 = vst [vmem:[#allocation2 + $0x178] sm:$0xff] %v939
        %v948 = vld [vmem:[%s319] sm:$0xff]
        %v949 = vld [vmem:[%s319 + $0x8] sm:$0xff]
        %v950 = vld [vmem:[%s319 + $0x10] sm:$0xf]
        %v951 = vld [vmem:[%s319 + $0x14] sm:$0xff]
        %v952 = vld [vmem:[%s319 + $0x1c] sm:$0xff]
        %v953 = vld [vmem:[%s319 + $0x24] sm:$0xf]
        %960 = vrot.lane.b32.xlu0 %v948, 80
        %v961 = vpop.permute.xlu0 %960
        %962 = vrot.lane.b32.xlu0 %v949, 80
        %v963 = vpop.permute.xlu0 %962
        %964 = vrot.lane.b32.xlu0 %v950, 80
        %v965 = vpop.permute.xlu0 %964
        %966 = vrot.lane.b32.xlu0 %v951, 80
        %v967 = vpop.permute.xlu0 %966
        %968 = vrot.lane.b32.xlu0 %v952, 80
        %v969 = vpop.permute.xlu0 %968
        %970 = vrot.lane.b32.xlu0 %v953, 80
        %v971 = vpop.permute.xlu0 %970
        %v972 = vrot.slane %v961, 4
        %v973 = vrot.slane %v963, 4
        %v974 = vrot.slane %v965, 4
        %v975 = vrot.slane %v967, 4
        %v976 = vrot.slane %v969, 4
        %v977 = vrot.slane %v971, 4
        %v978 = vsel %vm413, %v972, %v973
        %vm979 = vcmask 654336
        %v980 = vsel %vm979, %v961, %v978
        %v981 = vsel %vm413, %v973, %v974
        %v982 = vsel %vm979, %v963, %v981
        %v983 = vsel %vm413, %v975, %v976
        %v984 = vsel %vm979, %v967, %v983
        %v985 = vsel %vm413, %v976, %v977
        %v986 = vsel %vm979, %v969, %v985
        %991 = vst [vmem:[#allocation2 + $0x180] sm:$0xff] %v980
        %992 = vst [vmem:[#allocation2 + $0x188] sm:$0xff] %v982
        %993 = vst [vmem:[#allocation2 + $0x190] sm:$0xff] %v984
        %994 = vst [vmem:[#allocation2 + $0x198] sm:$0xff] %v986
        %v995 = vld [vmem:[%s319] sm:$0xff]
        %v996 = vld [vmem:[%s319 + $0x8] sm:$0xff]
        %v997 = vld [vmem:[%s319 + $0x10] sm:$0xf]
        %v998 = vld [vmem:[%s319 + $0x14] sm:$0xff]
        %v999 = vld [vmem:[%s319 + $0x1c] sm:$0xff]
        %v1000 = vld [vmem:[%s319 + $0x24] sm:$0xf]
        %1007 = vrot.lane.b32.xlu0 %v995, 79
        %v1008 = vpop.permute.xlu0 %1007
        %1009 = vrot.lane.b32.xlu0 %v996, 79
        %v1010 = vpop.permute.xlu0 %1009
        %1011 = vrot.lane.b32.xlu0 %v997, 79
        %v1012 = vpop.permute.xlu0 %1011
        %1013 = vrot.lane.b32.xlu0 %v998, 79
        %v1014 = vpop.permute.xlu0 %1013
        %1015 = vrot.lane.b32.xlu0 %v999, 79
        %v1016 = vpop.permute.xlu0 %1015
        %1017 = vrot.lane.b32.xlu0 %v1000, 79
        %v1018 = vpop.permute.xlu0 %1017
        %v1019 = vrot.slane %v1008, 4
        %v1020 = vrot.slane %v1010, 4
        %v1021 = vrot.slane %v1012, 4
        %v1022 = vrot.slane %v1014, 4
        %v1023 = vrot.slane %v1016, 4
        %v1024 = vrot.slane %v1018, 4
        %v1025 = vsel %vm413, %v1019, %v1020
        %vm1026 = vcmask 646144
        %v1027 = vsel %vm1026, %v1008, %v1025
        %v1028 = vsel %vm413, %v1020, %v1021
        %v1029 = vsel %vm1026, %v1010, %v1028
        %v1030 = vsel %vm413, %v1022, %v1023
        %v1031 = vsel %vm1026, %v1014, %v1030
        %v1032 = vsel %vm413, %v1023, %v1024
        %v1033 = vsel %vm1026, %v1016, %v1032
        %1038 = vst [vmem:[#allocation2 + $0x1a0] sm:$0xff] %v1027
        %1039 = vst [vmem:[#allocation2 + $0x1a8] sm:$0xff] %v1029
        %1040 = vst [vmem:[#allocation2 + $0x1b0] sm:$0xff] %v1031
        %1041 = vst [vmem:[#allocation2 + $0x1b8] sm:$0xff] %v1033
        %v1042 = vld [vmem:[%s319] sm:$0xff]
        %v1043 = vld [vmem:[%s319 + $0x8] sm:$0xff]
        %v1044 = vld [vmem:[%s319 + $0x10] sm:$0xf]
        %v1045 = vld [vmem:[%s319 + $0x14] sm:$0xff]
        %v1046 = vld [vmem:[%s319 + $0x1c] sm:$0xff]
        %v1047 = vld [vmem:[%s319 + $0x24] sm:$0xf]
        %1054 = vrot.lane.b32.xlu0 %v1042, 78
        %v1055 = vpop.permute.xlu0 %1054
        %1056 = vrot.lane.b32.xlu0 %v1043, 78
        %v1057 = vpop.permute.xlu0 %1056
        %1058 = vrot.lane.b32.xlu0 %v1044, 78
        %v1059 = vpop.permute.xlu0 %1058
        %1060 = vrot.lane.b32.xlu0 %v1045, 78
        %v1061 = vpop.permute.xlu0 %1060
        %1062 = vrot.lane.b32.xlu0 %v1046, 78
        %v1063 = vpop.permute.xlu0 %1062
        %1064 = vrot.lane.b32.xlu0 %v1047, 78
        %v1065 = vpop.permute.xlu0 %1064
        %v1066 = vrot.slane %v1055, 4
        %v1067 = vrot.slane %v1057, 4
        %v1068 = vrot.slane %v1059, 4
        %v1069 = vrot.slane %v1061, 4
        %v1070 = vrot.slane %v1063, 4
        %v1071 = vrot.slane %v1065, 4
        %v1072 = vsel %vm413, %v1066, %v1067
        %vm1073 = vcmask 637952
        %v1074 = vsel %vm1073, %v1055, %v1072
        %v1075 = vsel %vm413, %v1067, %v1068
        %v1076 = vsel %vm1073, %v1057, %v1075
        %v1077 = vsel %vm413, %v1069, %v1070
        %v1078 = vsel %vm1073, %v1061, %v1077
        %v1079 = vsel %vm413, %v1070, %v1071
        %v1080 = vsel %vm1073, %v1063, %v1079
        %1085 = vst [vmem:[#allocation2 + $0x1c0] sm:$0xff] %v1074
        %1086 = vst [vmem:[#allocation2 + $0x1c8] sm:$0xff] %v1076
        %1087 = vst [vmem:[#allocation2 + $0x1d0] sm:$0xff] %v1078
        %1088 = vst [vmem:[#allocation2 + $0x1d8] sm:$0xff] %v1080
        %v1089 = vld [vmem:[%s319] sm:$0xff]
        %v1090 = vld [vmem:[%s319 + $0x8] sm:$0xff]
        %v1091 = vld [vmem:[%s319 + $0x10] sm:$0xf]
        %v1092 = vld [vmem:[%s319 + $0x14] sm:$0xff]
        %v1093 = vld [vmem:[%s319 + $0x1c] sm:$0xff]
        %v1094 = vld [vmem:[%s319 + $0x24] sm:$0xf]
        %1101 = vrot.lane.b32.xlu0 %v1089, 62
        %v1102 = vpop.permute.xlu0 %1101
        %1103 = vrot.lane.b32.xlu0 %v1090, 62
        %v1104 = vpop.permute.xlu0 %1103
        %1105 = vrot.lane.b32.xlu0 %v1091, 62
        %v1106 = vpop.permute.xlu0 %1105
        %1107 = vrot.lane.b32.xlu0 %v1092, 62
        %v1108 = vpop.permute.xlu0 %1107
        %1109 = vrot.lane.b32.xlu0 %v1093, 62
        %v1110 = vpop.permute.xlu0 %1109
        %1111 = vrot.lane.b32.xlu0 %v1094, 62
        %v1112 = vpop.permute.xlu0 %1111
        %v1113 = vrot.slane %v1102, 4
        %v1114 = vrot.slane %v1104, 4
        %v1115 = vrot.slane %v1106, 4
        %v1116 = vrot.slane %v1108, 4
        %v1117 = vrot.slane %v1110, 4
        %v1118 = vrot.slane %v1112, 4
        %v1119 = vsel %vm413, %v1113, %v1114
        %vm1120 = vcmask 506880
        %v1121 = vsel %vm1120, %v1102, %v1119
        %v1122 = vsel %vm413, %v1114, %v1115
        %v1123 = vsel %vm1120, %v1104, %v1122
        %v1124 = vsel %vm413, %v1116, %v1117
        %v1125 = vsel %vm1120, %v1108, %v1124
        %v1126 = vsel %vm413, %v1117, %v1118
        %v1127 = vsel %vm1120, %v1110, %v1126
        %1132 = vst [vmem:[#allocation2 + $0x1e0] sm:$0xff] %v1121
        %1133 = vst [vmem:[#allocation2 + $0x1e8] sm:$0xff] %v1123
        %1134 = vst [vmem:[#allocation2 + $0x1f0] sm:$0xff] %v1125
        %1135 = vst [vmem:[#allocation2 + $0x1f8] sm:$0xff] %v1127
        %v1136 = vld [vmem:[%s319] sm:$0xff]
        %v1137 = vld [vmem:[%s319 + $0x8] sm:$0xff]
        %v1138 = vld [vmem:[%s319 + $0x10] sm:$0xf]
        %v1139 = vld [vmem:[%s319 + $0x14] sm:$0xff]
        %v1140 = vld [vmem:[%s319 + $0x1c] sm:$0xff]
        %v1141 = vld [vmem:[%s319 + $0x24] sm:$0xf]
        %1148 = vrot.lane.b32.xlu0 %v1136, 61
        %v1149 = vpop.permute.xlu0 %1148
        %1150 = vrot.lane.b32.xlu0 %v1137, 61
        %v1151 = vpop.permute.xlu0 %1150
        %1152 = vrot.lane.b32.xlu0 %v1138, 61
        %v1153 = vpop.permute.xlu0 %1152
        %1154 = vrot.lane.b32.xlu0 %v1139, 61
        %v1155 = vpop.permute.xlu0 %1154
        %1156 = vrot.lane.b32.xlu0 %v1140, 61
        %v1157 = vpop.permute.xlu0 %1156
        %1158 = vrot.lane.b32.xlu0 %v1141, 61
        %v1159 = vpop.permute.xlu0 %1158
        %v1160 = vrot.slane %v1149, 4
        %v1161 = vrot.slane %v1151, 4
        %v1162 = vrot.slane %v1153, 4
        %v1163 = vrot.slane %v1155, 4
        %v1164 = vrot.slane %v1157, 4
        %v1165 = vrot.slane %v1159, 4
        %v1166 = vsel %vm413, %v1160, %v1161
        %vm1167 = vcmask 498688
        %v1168 = vsel %vm1167, %v1149, %v1166
        %v1169 = vsel %vm413, %v1161, %v1162
        %v1170 = vsel %vm1167, %v1151, %v1169
        %v1171 = vsel %vm413, %v1163, %v1164
        %v1172 = vsel %vm1167, %v1155, %v1171
        %v1173 = vsel %vm413, %v1164, %v1165
        %v1174 = vsel %vm1167, %v1157, %v1173
        %1179 = vst [vmem:[#allocation2 + $0x200] sm:$0xff] %v1168
        %1180 = vst [vmem:[#allocation2 + $0x208] sm:$0xff] %v1170
        %1181 = vst [vmem:[#allocation2 + $0x210] sm:$0xff] %v1172
        %1182 = vst [vmem:[#allocation2 + $0x218] sm:$0xff] %v1174
        %v1183 = vld [vmem:[%s319] sm:$0xff]
        %v1184 = vld [vmem:[%s319 + $0x8] sm:$0xff]
        %v1185 = vld [vmem:[%s319 + $0x10] sm:$0xf]
        %v1186 = vld [vmem:[%s319 + $0x14] sm:$0xff]
        %v1187 = vld [vmem:[%s319 + $0x1c] sm:$0xff]
        %v1188 = vld [vmem:[%s319 + $0x24] sm:$0xf]
        %1195 = vrot.lane.b32.xlu0 %v1183, 60
        %v1196 = vpop.permute.xlu0 %1195
        %1197 = vrot.lane.b32.xlu0 %v1184, 60
        %v1198 = vpop.permute.xlu0 %1197
        %1199 = vrot.lane.b32.xlu0 %v1185, 60
        %v1200 = vpop.permute.xlu0 %1199
        %1201 = vrot.lane.b32.xlu0 %v1186, 60
        %v1202 = vpop.permute.xlu0 %1201
        %1203 = vrot.lane.b32.xlu0 %v1187, 60
        %v1204 = vpop.permute.xlu0 %1203
        %1205 = vrot.lane.b32.xlu0 %v1188, 60
        %v1206 = vpop.permute.xlu0 %1205
        %v1207 = vrot.slane %v1196, 4
        %v1208 = vrot.slane %v1198, 4
        %v1209 = vrot.slane %v1200, 4
        %v1210 = vrot.slane %v1202, 4
        %v1211 = vrot.slane %v1204, 4
        %v1212 = vrot.slane %v1206, 4
        %v1213 = vsel %vm413, %v1207, %v1208
        %vm1214 = vcmask 490496
        %v1215 = vsel %vm1214, %v1196, %v1213
        %v1216 = vsel %vm413, %v1208, %v1209
        %v1217 = vsel %vm1214, %v1198, %v1216
        %v1218 = vsel %vm413, %v1210, %v1211
        %v1219 = vsel %vm1214, %v1202, %v1218
        %v1220 = vsel %vm413, %v1211, %v1212
        %v1221 = vsel %vm1214, %v1204, %v1220
        %1226 = vst [vmem:[#allocation2 + $0x220] sm:$0xff] %v1215
        %1227 = vst [vmem:[#allocation2 + $0x228] sm:$0xff] %v1217
        %1228 = vst [vmem:[#allocation2 + $0x230] sm:$0xff] %v1219
        %1229 = vst [vmem:[#allocation2 + $0x238] sm:$0xff] %v1221
        %v1230 = vld [vmem:[%s319] sm:$0xff]
        %v1231 = vld [vmem:[%s319 + $0x8] sm:$0xff]
        %v1232 = vld [vmem:[%s319 + $0x10] sm:$0xf]
        %v1233 = vld [vmem:[%s319 + $0x14] sm:$0xff]
        %v1234 = vld [vmem:[%s319 + $0x1c] sm:$0xff]
        %v1235 = vld [vmem:[%s319 + $0x24] sm:$0xf]
        %1242 = vrot.lane.b32.xlu0 %v1230, 59
        %v1243 = vpop.permute.xlu0 %1242
        %1244 = vrot.lane.b32.xlu0 %v1231, 59
        %v1245 = vpop.permute.xlu0 %1244
        %1246 = vrot.lane.b32.xlu0 %v1232, 59
        %v1247 = vpop.permute.xlu0 %1246
        %1248 = vrot.lane.b32.xlu0 %v1233, 59
        %v1249 = vpop.permute.xlu0 %1248
        %1250 = vrot.lane.b32.xlu0 %v1234, 59
        %v1251 = vpop.permute.xlu0 %1250
        %1252 = vrot.lane.b32.xlu0 %v1235, 59
        %v1253 = vpop.permute.xlu0 %1252
        %v1254 = vrot.slane %v1243, 4
        %v1255 = vrot.slane %v1245, 4
        %v1256 = vrot.slane %v1247, 4
        %v1257 = vrot.slane %v1249, 4
        %v1258 = vrot.slane %v1251, 4
        %v1259 = vrot.slane %v1253, 4
        %v1260 = vsel %vm413, %v1254, %v1255
        %vm1261 = vcmask 482304
        %v1262 = vsel %vm1261, %v1243, %v1260
        %v1263 = vsel %vm413, %v1255, %v1256
        %v1264 = vsel %vm1261, %v1245, %v1263
        %v1265 = vsel %vm413, %v1257, %v1258
        %v1266 = vsel %vm1261, %v1249, %v1265
        %v1267 = vsel %vm413, %v1258, %v1259
        %v1268 = vsel %vm1261, %v1251, %v1267
        %1273 = vst [vmem:[#allocation2 + $0x240] sm:$0xff] %v1262
        %1274 = vst [vmem:[#allocation2 + $0x248] sm:$0xff] %v1264
        %1275 = vst [vmem:[#allocation2 + $0x250] sm:$0xff] %v1266
        %1276 = vst [vmem:[#allocation2 + $0x258] sm:$0xff] %v1268
        %v1277 = vld [vmem:[%s319] sm:$0xff]
        %v1278 = vld [vmem:[%s319 + $0x8] sm:$0xff]
        %v1279 = vld [vmem:[%s319 + $0x10] sm:$0xf]
        %v1280 = vld [vmem:[%s319 + $0x14] sm:$0xff]
        %v1281 = vld [vmem:[%s319 + $0x1c] sm:$0xff]
        %v1282 = vld [vmem:[%s319 + $0x24] sm:$0xf]
        %1289 = vrot.lane.b32.xlu0 %v1277, 58
        %v1290 = vpop.permute.xlu0 %1289
        %1291 = vrot.lane.b32.xlu0 %v1278, 58
        %v1292 = vpop.permute.xlu0 %1291
        %1293 = vrot.lane.b32.xlu0 %v1279, 58
        %v1294 = vpop.permute.xlu0 %1293
        %1295 = vrot.lane.b32.xlu0 %v1280, 58
        %v1296 = vpop.permute.xlu0 %1295
        %1297 = vrot.lane.b32.xlu0 %v1281, 58
        %v1298 = vpop.permute.xlu0 %1297
        %1299 = vrot.lane.b32.xlu0 %v1282, 58
        %v1300 = vpop.permute.xlu0 %1299
        %v1301 = vrot.slane %v1290, 4
        %v1302 = vrot.slane %v1292, 4
        %v1303 = vrot.slane %v1294, 4
        %v1304 = vrot.slane %v1296, 4
        %v1305 = vrot.slane %v1298, 4
        %v1306 = vrot.slane %v1300, 4
        %v1307 = vsel %vm413, %v1301, %v1302
        %vm1308 = vcmask 474112
        %v1309 = vsel %vm1308, %v1290, %v1307
        %v1310 = vsel %vm413, %v1302, %v1303
        %v1311 = vsel %vm1308, %v1292, %v1310
        %v1312 = vsel %vm413, %v1304, %v1305
        %v1313 = vsel %vm1308, %v1296, %v1312
        %v1314 = vsel %vm413, %v1305, %v1306
        %v1315 = vsel %vm1308, %v1298, %v1314
        %1320 = vst [vmem:[#allocation2 + $0x260] sm:$0xff] %v1309
        %1321 = vst [vmem:[#allocation2 + $0x268] sm:$0xff] %v1311
        %1322 = vst [vmem:[#allocation2 + $0x270] sm:$0xff] %v1313
        %1323 = vst [vmem:[#allocation2 + $0x278] sm:$0xff] %v1315
        %v1324 = vld [vmem:[%s319] sm:$0xff]
        %v1325 = vld [vmem:[%s319 + $0x8] sm:$0xff]
        %v1326 = vld [vmem:[%s319 + $0x10] sm:$0xf]
        %v1327 = vld [vmem:[%s319 + $0x14] sm:$0xff]
        %v1328 = vld [vmem:[%s319 + $0x1c] sm:$0xff]
        %v1329 = vld [vmem:[%s319 + $0x24] sm:$0xf]
        %1336 = vrot.lane.b32.xlu0 %v1324, 42
        %v1337 = vpop.permute.xlu0 %1336
        %1338 = vrot.lane.b32.xlu0 %v1325, 42
        %v1339 = vpop.permute.xlu0 %1338
        %1340 = vrot.lane.b32.xlu0 %v1326, 42
        %v1341 = vpop.permute.xlu0 %1340
        %1342 = vrot.lane.b32.xlu0 %v1327, 42
        %v1343 = vpop.permute.xlu0 %1342
        %1344 = vrot.lane.b32.xlu0 %v1328, 42
        %v1345 = vpop.permute.xlu0 %1344
        %1346 = vrot.lane.b32.xlu0 %v1329, 42
        %v1347 = vpop.permute.xlu0 %1346
        %v1348 = vrot.slane %v1337, 4
        %v1349 = vrot.slane %v1339, 4
        %v1350 = vrot.slane %v1341, 4
        %v1351 = vrot.slane %v1343, 4
        %v1352 = vrot.slane %v1345, 4
        %v1353 = vrot.slane %v1347, 4
        %v1354 = vsel %vm413, %v1348, %v1349
        %vm1355 = vcmask 343040
        %v1356 = vsel %vm1355, %v1337, %v1354
        %v1357 = vsel %vm413, %v1349, %v1350
        %v1358 = vsel %vm1355, %v1339, %v1357
        %v1359 = vsel %vm413, %v1351, %v1352
        %v1360 = vsel %vm1355, %v1343, %v1359
        %v1361 = vsel %vm413, %v1352, %v1353
        %v1362 = vsel %vm1355, %v1345, %v1361
        %1367 = vst [vmem:[#allocation2 + $0x280] sm:$0xff] %v1356
        %1368 = vst [vmem:[#allocation2 + $0x288] sm:$0xff] %v1358
        %1369 = vst [vmem:[#allocation2 + $0x290] sm:$0xff] %v1360
        %1370 = vst [vmem:[#allocation2 + $0x298] sm:$0xff] %v1362
        %v1371 = vld [vmem:[%s319] sm:$0xff]
        %v1372 = vld [vmem:[%s319 + $0x8] sm:$0xff]
        %v1373 = vld [vmem:[%s319 + $0x10] sm:$0xf]
        %v1374 = vld [vmem:[%s319 + $0x14] sm:$0xff]
        %v1375 = vld [vmem:[%s319 + $0x1c] sm:$0xff]
        %v1376 = vld [vmem:[%s319 + $0x24] sm:$0xf]
        %1383 = vrot.lane.b32.xlu0 %v1371, 41
        %v1384 = vpop.permute.xlu0 %1383
        %1385 = vrot.lane.b32.xlu0 %v1372, 41
        %v1386 = vpop.permute.xlu0 %1385
        %1387 = vrot.lane.b32.xlu0 %v1373, 41
        %v1388 = vpop.permute.xlu0 %1387
        %1389 = vrot.lane.b32.xlu0 %v1374, 41
        %v1390 = vpop.permute.xlu0 %1389
        %1391 = vrot.lane.b32.xlu0 %v1375, 41
        %v1392 = vpop.permute.xlu0 %1391
        %1393 = vrot.lane.b32.xlu0 %v1376, 41
        %v1394 = vpop.permute.xlu0 %1393
        %v1395 = vrot.slane %v1384, 4
        %v1396 = vrot.slane %v1386, 4
        %v1397 = vrot.slane %v1388, 4
        %v1398 = vrot.slane %v1390, 4
        %v1399 = vrot.slane %v1392, 4
        %v1400 = vrot.slane %v1394, 4
        %v1401 = vsel %vm413, %v1395, %v1396
        %vm1402 = vcmask 334848
        %v1403 = vsel %vm1402, %v1384, %v1401
        %v1404 = vsel %vm413, %v1396, %v1397
        %v1405 = vsel %vm1402, %v1386, %v1404
        %v1406 = vsel %vm413, %v1398, %v1399
        %v1407 = vsel %vm1402, %v1390, %v1406
        %v1408 = vsel %vm413, %v1399, %v1400
        %v1409 = vsel %vm1402, %v1392, %v1408
        %1414 = vst [vmem:[#allocation2 + $0x2a0] sm:$0xff] %v1403
        %1415 = vst [vmem:[#allocation2 + $0x2a8] sm:$0xff] %v1405
        %1416 = vst [vmem:[#allocation2 + $0x2b0] sm:$0xff] %v1407
        %1417 = vst [vmem:[#allocation2 + $0x2b8] sm:$0xff] %v1409
        %v1418 = vld [vmem:[%s319] sm:$0xff]
        %v1419 = vld [vmem:[%s319 + $0x8] sm:$0xff]
        %v1420 = vld [vmem:[%s319 + $0x10] sm:$0xf]
        %v1421 = vld [vmem:[%s319 + $0x14] sm:$0xff]
        %v1422 = vld [vmem:[%s319 + $0x1c] sm:$0xff]
        %v1423 = vld [vmem:[%s319 + $0x24] sm:$0xf]
        %1430 = vrot.lane.b32.xlu0 %v1418, 40
        %v1431 = vpop.permute.xlu0 %1430
        %1432 = vrot.lane.b32.xlu0 %v1419, 40
        %v1433 = vpop.permute.xlu0 %1432
        %1434 = vrot.lane.b32.xlu0 %v1420, 40
        %v1435 = vpop.permute.xlu0 %1434
        %1436 = vrot.lane.b32.xlu0 %v1421, 40
        %v1437 = vpop.permute.xlu0 %1436
        %1438 = vrot.lane.b32.xlu0 %v1422, 40
        %v1439 = vpop.permute.xlu0 %1438
        %1440 = vrot.lane.b32.xlu0 %v1423, 40
        %v1441 = vpop.permute.xlu0 %1440
        %v1442 = vrot.slane %v1431, 4
        %v1443 = vrot.slane %v1433, 4
        %v1444 = vrot.slane %v1435, 4
        %v1445 = vrot.slane %v1437, 4
        %v1446 = vrot.slane %v1439, 4
        %v1447 = vrot.slane %v1441, 4
        %v1448 = vsel %vm413, %v1442, %v1443
        %vm1449 = vcmask 326656
        %v1450 = vsel %vm1449, %v1431, %v1448
        %v1451 = vsel %vm413, %v1443, %v1444
        %v1452 = vsel %vm1449, %v1433, %v1451
        %v1453 = vsel %vm413, %v1445, %v1446
        %v1454 = vsel %vm1449, %v1437, %v1453
        %v1455 = vsel %vm413, %v1446, %v1447
        %v1456 = vsel %vm1449, %v1439, %v1455
        %1461 = vst [vmem:[#allocation2 + $0x2c0] sm:$0xff] %v1450
        %1462 = vst [vmem:[#allocation2 + $0x2c8] sm:$0xff] %v1452
        %1463 = vst [vmem:[#allocation2 + $0x2d0] sm:$0xff] %v1454
        %1464 = vst [vmem:[#allocation2 + $0x2d8] sm:$0xff] %v1456
        %v1465 = vld [vmem:[%s319] sm:$0xff]
        %v1466 = vld [vmem:[%s319 + $0x8] sm:$0xff]
        %v1467 = vld [vmem:[%s319 + $0x10] sm:$0xf]
        %v1468 = vld [vmem:[%s319 + $0x14] sm:$0xff]
        %v1469 = vld [vmem:[%s319 + $0x1c] sm:$0xff]
        %v1470 = vld [vmem:[%s319 + $0x24] sm:$0xf]
        %1477 = vrot.lane.b32.xlu0 %v1465, 39
        %v1478 = vpop.permute.xlu0 %1477
        %1479 = vrot.lane.b32.xlu0 %v1466, 39
        %v1480 = vpop.permute.xlu0 %1479
        %1481 = vrot.lane.b32.xlu0 %v1467, 39
        %v1482 = vpop.permute.xlu0 %1481
        %1483 = vrot.lane.b32.xlu0 %v1468, 39
        %v1484 = vpop.permute.xlu0 %1483
        %1485 = vrot.lane.b32.xlu0 %v1469, 39
        %v1486 = vpop.permute.xlu0 %1485
        %1487 = vrot.lane.b32.xlu0 %v1470, 39
        %v1488 = vpop.permute.xlu0 %1487
        %v1489 = vrot.slane %v1478, 4
        %v1490 = vrot.slane %v1480, 4
        %v1491 = vrot.slane %v1482, 4
        %v1492 = vrot.slane %v1484, 4
        %v1493 = vrot.slane %v1486, 4
        %v1494 = vrot.slane %v1488, 4
        %v1495 = vsel %vm413, %v1489, %v1490
        %vm1496 = vcmask 318464
        %v1497 = vsel %vm1496, %v1478, %v1495
        %v1498 = vsel %vm413, %v1490, %v1491
        %v1499 = vsel %vm1496, %v1480, %v1498
        %v1500 = vsel %vm413, %v1492, %v1493
        %v1501 = vsel %vm1496, %v1484, %v1500
        %v1502 = vsel %vm413, %v1493, %v1494
        %v1503 = vsel %vm1496, %v1486, %v1502
        %1508 = vst [vmem:[#allocation2 + $0x2e0] sm:$0xff] %v1497
        %1509 = vst [vmem:[#allocation2 + $0x2e8] sm:$0xff] %v1499
        %1510 = vst [vmem:[#allocation2 + $0x2f0] sm:$0xff] %v1501
        %1511 = vst [vmem:[#allocation2 + $0x2f8] sm:$0xff] %v1503
        %v1512 = vld [vmem:[%s319] sm:$0xff]
        %v1513 = vld [vmem:[%s319 + $0x8] sm:$0xff]
        %v1514 = vld [vmem:[%s319 + $0x10] sm:$0xf]
        %v1515 = vld [vmem:[%s319 + $0x14] sm:$0xff]
        %v1516 = vld [vmem:[%s319 + $0x1c] sm:$0xff]
        %v1517 = vld [vmem:[%s319 + $0x24] sm:$0xf]
        %1524 = vrot.lane.b32.xlu0 %v1512, 38
        %v1525 = vpop.permute.xlu0 %1524
        %1526 = vrot.lane.b32.xlu0 %v1513, 38
        %v1527 = vpop.permute.xlu0 %1526
        %1528 = vrot.lane.b32.xlu0 %v1514, 38
        %v1529 = vpop.permute.xlu0 %1528
        %1530 = vrot.lane.b32.xlu0 %v1515, 38
        %v1531 = vpop.permute.xlu0 %1530
        %1532 = vrot.lane.b32.xlu0 %v1516, 38
        %v1533 = vpop.permute.xlu0 %1532
        %1534 = vrot.lane.b32.xlu0 %v1517, 38
        %v1535 = vpop.permute.xlu0 %1534
        %v1536 = vrot.slane %v1525, 4
        %v1537 = vrot.slane %v1527, 4
        %v1538 = vrot.slane %v1529, 4
        %v1539 = vrot.slane %v1531, 4
        %v1540 = vrot.slane %v1533, 4
        %v1541 = vrot.slane %v1535, 4
        %v1542 = vsel %vm413, %v1536, %v1537
        %vm1543 = vcmask 310272
        %v1544 = vsel %vm1543, %v1525, %v1542
        %v1545 = vsel %vm413, %v1537, %v1538
        %v1546 = vsel %vm1543, %v1527, %v1545
        %v1547 = vsel %vm413, %v1539, %v1540
        %v1548 = vsel %vm1543, %v1531, %v1547
        %v1549 = vsel %vm413, %v1540, %v1541
        %v1550 = vsel %vm1543, %v1533, %v1549
        %1555 = vst [vmem:[#allocation2 + $0x300] sm:$0xff] %v1544
        %1556 = vst [vmem:[#allocation2 + $0x308] sm:$0xff] %v1546
        %1557 = vst [vmem:[#allocation2 + $0x310] sm:$0xff] %v1548
        %1558 = vst [vmem:[#allocation2 + $0x318] sm:$0xff] %v1550
        %v1559 = vld [vmem:[#allocation9] sm:$0xff]
        %v1560 = vld [vmem:[#allocation9 + $0x8] sm:$0xff]
        %v1561 = vld [vmem:[#allocation9 + $0x10] sm:$0xff]
        %v1562 = vld [vmem:[#allocation9 + $0x18] sm:$0xff]
        %v1563 = vld [vmem:[#allocation2] sm:$0xff]
        %v1564 = vld [vmem:[#allocation2 + $0x8] sm:$0xff]
        %v1565 = vld [vmem:[#allocation2 + $0x10] sm:$0xff]
        %v1566 = vld [vmem:[#allocation2 + $0x18] sm:$0xff]
        %v1567 = vld [vmem:[#allocation2 + $0x20] sm:$0xff]
        %v1568 = vld [vmem:[#allocation2 + $0x28] sm:$0xff]
        %v1569 = vld [vmem:[#allocation2 + $0x30] sm:$0xff]
        %v1570 = vld [vmem:[#allocation2 + $0x38] sm:$0xff]
        %v1571 = vld [vmem:[#allocation2 + $0x40] sm:$0xff]
        %v1572 = vld [vmem:[#allocation2 + $0x48] sm:$0xff]
        %v1573 = vld [vmem:[#allocation2 + $0x50] sm:$0xff]
        %v1574 = vld [vmem:[#allocation2 + $0x58] sm:$0xff]
        %v1575 = vld [vmem:[#allocation2 + $0x60] sm:$0xff]
        %v1576 = vld [vmem:[#allocation2 + $0x68] sm:$0xff]
        %v1577 = vld [vmem:[#allocation2 + $0x70] sm:$0xff]
        %v1578 = vld [vmem:[#allocation2 + $0x78] sm:$0xff]
        %v1579 = vld [vmem:[#allocation2 + $0x80] sm:$0xff]
        %v1580 = vld [vmem:[#allocation2 + $0x88] sm:$0xff]
        %v1581 = vld [vmem:[#allocation2 + $0x90] sm:$0xff]
        %v1582 = vld [vmem:[#allocation2 + $0x98] sm:$0xff]
        %v1583 = vld [vmem:[#allocation2 + $0xa0] sm:$0xff]
        %v1584 = vld [vmem:[#allocation2 + $0xa8] sm:$0xff]
        %v1585 = vld [vmem:[#allocation2 + $0xb0] sm:$0xff]
        %v1586 = vld [vmem:[#allocation2 + $0xb8] sm:$0xff]
        %v1587 = vld [vmem:[#allocation2 + $0xc0] sm:$0xff]
        %v1588 = vld [vmem:[#allocation2 + $0xc8] sm:$0xff]
        %v1589 = vld [vmem:[#allocation2 + $0xd0] sm:$0xff]
        %v1590 = vld [vmem:[#allocation2 + $0xd8] sm:$0xff]
        %v1591 = vld [vmem:[#allocation2 + $0xe0] sm:$0xff]
        %v1592 = vld [vmem:[#allocation2 + $0xe8] sm:$0xff]
        %v1593 = vld [vmem:[#allocation2 + $0xf0] sm:$0xff]
        %v1594 = vld [vmem:[#allocation2 + $0xf8] sm:$0xff]
        %v1595 = vld [vmem:[#allocation2 + $0x100] sm:$0xff]
        %v1596 = vld [vmem:[#allocation2 + $0x108] sm:$0xff]
        %v1597 = vld [vmem:[#allocation2 + $0x110] sm:$0xff]
        %v1598 = vld [vmem:[#allocation2 + $0x118] sm:$0xff]
        %v1599 = vld [vmem:[#allocation2 + $0x120] sm:$0xff]
        %v1600 = vld [vmem:[#allocation2 + $0x128] sm:$0xff]
        %v1601 = vld [vmem:[#allocation2 + $0x130] sm:$0xff]
        %v1602 = vld [vmem:[#allocation2 + $0x138] sm:$0xff]
        %v1603 = vld [vmem:[#allocation2 + $0x140] sm:$0xff]
        %v1604 = vld [vmem:[#allocation2 + $0x148] sm:$0xff]
        %v1605 = vld [vmem:[#allocation2 + $0x150] sm:$0xff]
        %v1606 = vld [vmem:[#allocation2 + $0x158] sm:$0xff]
        %v1607 = vld [vmem:[#allocation2 + $0x160] sm:$0xff]
        %v1608 = vld [vmem:[#allocation2 + $0x168] sm:$0xff]
        %v1609 = vld [vmem:[#allocation2 + $0x170] sm:$0xff]
        %v1610 = vld [vmem:[#allocation2 + $0x178] sm:$0xff]
        %v1611 = vld [vmem:[#allocation2 + $0x180] sm:$0xff]
        %v1612 = vld [vmem:[#allocation2 + $0x188] sm:$0xff]
        %v1613 = vld [vmem:[#allocation2 + $0x190] sm:$0xff]
        %v1614 = vld [vmem:[#allocation2 + $0x198] sm:$0xff]
        %v1615 = vld [vmem:[#allocation2 + $0x1a0] sm:$0xff]
        %v1616 = vld [vmem:[#allocation2 + $0x1a8] sm:$0xff]
        %v1617 = vld [vmem:[#allocation2 + $0x1b0] sm:$0xff]
        %v1618 = vld [vmem:[#allocation2 + $0x1b8] sm:$0xff]
        %v1619 = vld [vmem:[#allocation2 + $0x1c0] sm:$0xff]
        %v1620 = vld [vmem:[#allocation2 + $0x1c8] sm:$0xff]
        %v1621 = vld [vmem:[#allocation2 + $0x1d0] sm:$0xff]
        %v1622 = vld [vmem:[#allocation2 + $0x1d8] sm:$0xff]
        %v1623 = vld [vmem:[#allocation2 + $0x1e0] sm:$0xff]
        %v1624 = vld [vmem:[#allocation2 + $0x1e8] sm:$0xff]
        %v1625 = vld [vmem:[#allocation2 + $0x1f0] sm:$0xff]
        %v1626 = vld [vmem:[#allocation2 + $0x1f8] sm:$0xff]
        %v1627 = vld [vmem:[#allocation2 + $0x200] sm:$0xff]
        %v1628 = vld [vmem:[#allocation2 + $0x208] sm:$0xff]
        %v1629 = vld [vmem:[#allocation2 + $0x210] sm:$0xff]
        %v1630 = vld [vmem:[#allocation2 + $0x218] sm:$0xff]
        %v1631 = vld [vmem:[#allocation2 + $0x220] sm:$0xff]
        %v1632 = vld [vmem:[#allocation2 + $0x228] sm:$0xff]
        %v1633 = vld [vmem:[#allocation2 + $0x230] sm:$0xff]
        %v1634 = vld [vmem:[#allocation2 + $0x238] sm:$0xff]
        %v1635 = vld [vmem:[#allocation2 + $0x240] sm:$0xff]
        %v1636 = vld [vmem:[#allocation2 + $0x248] sm:$0xff]
        %v1637 = vld [vmem:[#allocation2 + $0x250] sm:$0xff]
        %v1638 = vld [vmem:[#allocation2 + $0x258] sm:$0xff]
        %v1639 = vld [vmem:[#allocation2 + $0x260] sm:$0xff]
        %v1640 = vld [vmem:[#allocation2 + $0x268] sm:$0xff]
        %v1641 = vld [vmem:[#allocation2 + $0x270] sm:$0xff]
        %v1642 = vld [vmem:[#allocation2 + $0x278] sm:$0xff]
        %v1643 = vld [vmem:[#allocation2 + $0x280] sm:$0xff]
        %v1644 = vld [vmem:[#allocation2 + $0x288] sm:$0xff]
        %v1645 = vld [vmem:[#allocation2 + $0x290] sm:$0xff]
        %v1646 = vld [vmem:[#allocation2 + $0x298] sm:$0xff]
        %v1647 = vld [vmem:[#allocation2 + $0x2a0] sm:$0xff]
        %v1648 = vld [vmem:[#allocation2 + $0x2a8] sm:$0xff]
        %v1649 = vld [vmem:[#allocation2 + $0x2b0] sm:$0xff]
        %v1650 = vld [vmem:[#allocation2 + $0x2b8] sm:$0xff]
        %v1651 = vld [vmem:[#allocation2 + $0x2c0] sm:$0xff]
        %v1652 = vld [vmem:[#allocation2 + $0x2c8] sm:$0xff]
        %v1653 = vld [vmem:[#allocation2 + $0x2d0] sm:$0xff]
        %v1654 = vld [vmem:[#allocation2 + $0x2d8] sm:$0xff]
        %v1655 = vld [vmem:[#allocation2 + $0x2e0] sm:$0xff]
        %v1656 = vld [vmem:[#allocation2 + $0x2e8] sm:$0xff]
        %v1657 = vld [vmem:[#allocation2 + $0x2f0] sm:$0xff]
        %v1658 = vld [vmem:[#allocation2 + $0x2f8] sm:$0xff]
        %v1659 = vld [vmem:[#allocation2 + $0x300] sm:$0xff]
        %v1660 = vld [vmem:[#allocation2 + $0x308] sm:$0xff]
        %v1661 = vld [vmem:[#allocation2 + $0x310] sm:$0xff]
        %v1662 = vld [vmem:[#allocation2 + $0x318] sm:$0xff]
        %v1667 = vunpack.c.l.b16 %v1559
        %v1668 = vunpack.c.h.b16 %v1559
        %v1669 = vunpack.c.l.b16 %v1560
        %v1670 = vunpack.c.h.b16 %v1560
        %v1671 = vunpack.c.l.b16 %v1561
        %v1672 = vunpack.c.h.b16 %v1561
        %v1673 = vunpack.c.l.b16 %v1562
        %v1674 = vunpack.c.h.b16 %v1562
        %v1675 = vpack.c.b16 %v1671, %v1667
        %v1676 = vpack.c.b16 %v1672, %v1668
        %v1677 = vpack.c.b16 %v1673, %v1669
        %v1678 = vpack.c.b16 %v1674, %v1670
        %v1782 = vunpack.c.l.b16 %v1563
        %v1783 = vunpack.c.h.b16 %v1563
        %v1784 = vunpack.c.l.b16 %v1564
        %v1785 = vunpack.c.h.b16 %v1564
        %v1786 = vunpack.c.l.b16 %v1565
        %v1787 = vunpack.c.h.b16 %v1565
        %v1788 = vunpack.c.l.b16 %v1566
        %v1789 = vunpack.c.h.b16 %v1566
        %v1790 = vunpack.c.l.b16 %v1567
        %v1791 = vunpack.c.h.b16 %v1567
        %v1792 = vunpack.c.l.b16 %v1568
        %v1793 = vunpack.c.h.b16 %v1568
        %v1794 = vunpack.c.l.b16 %v1569
        %v1795 = vunpack.c.h.b16 %v1569
        %v1796 = vunpack.c.l.b16 %v1570
        %v1797 = vunpack.c.h.b16 %v1570
        %v1798 = vunpack.c.l.b16 %v1571
        %v1799 = vunpack.c.h.b16 %v1571
        %v1800 = vunpack.c.l.b16 %v1572
        %v1801 = vunpack.c.h.b16 %v1572
        %v1802 = vunpack.c.l.b16 %v1573
        %v1803 = vunpack.c.h.b16 %v1573
        %v1804 = vunpack.c.l.b16 %v1574
        %v1805 = vunpack.c.h.b16 %v1574
        %v1806 = vunpack.c.l.b16 %v1575
        %v1807 = vunpack.c.h.b16 %v1575
        %v1808 = vunpack.c.l.b16 %v1576
        %v1809 = vunpack.c.h.b16 %v1576
        %v1810 = vunpack.c.l.b16 %v1577
        %v1811 = vunpack.c.h.b16 %v1577
        %v1812 = vunpack.c.l.b16 %v1578
        %v1813 = vunpack.c.h.b16 %v1578
        %v1814 = vunpack.c.l.b16 %v1579
        %v1815 = vunpack.c.h.b16 %v1579
        %v1816 = vunpack.c.l.b16 %v1580
        %v1817 = vunpack.c.h.b16 %v1580
        %v1818 = vunpack.c.l.b16 %v1581
        %v1819 = vunpack.c.h.b16 %v1581
        %v1820 = vunpack.c.l.b16 %v1582
        %v1821 = vunpack.c.h.b16 %v1582
        %v1822 = vunpack.c.l.b16 %v1583
        %v1823 = vunpack.c.h.b16 %v1583
        %v1824 = vunpack.c.l.b16 %v1584
        %v1825 = vunpack.c.h.b16 %v1584
        %v1826 = vunpack.c.l.b16 %v1585
        %v1827 = vunpack.c.h.b16 %v1585
        %v1828 = vunpack.c.l.b16 %v1586
        %v1829 = vunpack.c.h.b16 %v1586
        %v1830 = vunpack.c.l.b16 %v1587
        %v1831 = vunpack.c.h.b16 %v1587
        %v1832 = vunpack.c.l.b16 %v1588
        %v1833 = vunpack.c.h.b16 %v1588
        %v1834 = vunpack.c.l.b16 %v1589
        %v1835 = vunpack.c.h.b16 %v1589
        %v1836 = vunpack.c.l.b16 %v1590
        %v1837 = vunpack.c.h.b16 %v1590
        %v1838 = vunpack.c.l.b16 %v1591
        %v1839 = vunpack.c.h.b16 %v1591
        %v1840 = vunpack.c.l.b16 %v1592
        %v1841 = vunpack.c.h.b16 %v1592
        %v1842 = vunpack.c.l.b16 %v1593
        %v1843 = vunpack.c.h.b16 %v1593
        %v1844 = vunpack.c.l.b16 %v1594
        %v1845 = vunpack.c.h.b16 %v1594
        %v1846 = vunpack.c.l.b16 %v1595
        %v1847 = vunpack.c.h.b16 %v1595
        %v1848 = vunpack.c.l.b16 %v1596
        %v1849 = vunpack.c.h.b16 %v1596
        %v1850 = vunpack.c.l.b16 %v1597
        %v1851 = vunpack.c.h.b16 %v1597
        %v1852 = vunpack.c.l.b16 %v1598
        %v1853 = vunpack.c.h.b16 %v1598
        %v1854 = vunpack.c.l.b16 %v1599
        %v1855 = vunpack.c.h.b16 %v1599
        %v1856 = vunpack.c.l.b16 %v1600
        %v1857 = vunpack.c.h.b16 %v1600
        %v1858 = vunpack.c.l.b16 %v1601
        %v1859 = vunpack.c.h.b16 %v1601
        %v1860 = vunpack.c.l.b16 %v1602
        %v1861 = vunpack.c.h.b16 %v1602
        %v1862 = vunpack.c.l.b16 %v1603
        %v1863 = vunpack.c.h.b16 %v1603
        %v1864 = vunpack.c.l.b16 %v1604
        %v1865 = vunpack.c.h.b16 %v1604
        %v1866 = vunpack.c.l.b16 %v1605
        %v1867 = vunpack.c.h.b16 %v1605
        %v1868 = vunpack.c.l.b16 %v1606
        %v1869 = vunpack.c.h.b16 %v1606
        %v1870 = vunpack.c.l.b16 %v1607
        %v1871 = vunpack.c.h.b16 %v1607
        %v1872 = vunpack.c.l.b16 %v1608
        %v1873 = vunpack.c.h.b16 %v1608
        %v1874 = vunpack.c.l.b16 %v1609
        %v1875 = vunpack.c.h.b16 %v1609
        %v1876 = vunpack.c.l.b16 %v1610
        %v1877 = vunpack.c.h.b16 %v1610
        %v1878 = vunpack.c.l.b16 %v1611
        %v1879 = vunpack.c.h.b16 %v1611
        %v1880 = vunpack.c.l.b16 %v1612
        %v1881 = vunpack.c.h.b16 %v1612
        %v1882 = vunpack.c.l.b16 %v1613
        %v1883 = vunpack.c.h.b16 %v1613
        %v1884 = vunpack.c.l.b16 %v1614
        %v1885 = vunpack.c.h.b16 %v1614
        %v1886 = vunpack.c.l.b16 %v1615
        %v1887 = vunpack.c.h.b16 %v1615
        %v1888 = vunpack.c.l.b16 %v1616
        %v1889 = vunpack.c.h.b16 %v1616
        %v1890 = vunpack.c.l.b16 %v1617
        %v1891 = vunpack.c.h.b16 %v1617
        %v1892 = vunpack.c.l.b16 %v1618
        %v1893 = vunpack.c.h.b16 %v1618
        %v1894 = vunpack.c.l.b16 %v1619
        %v1895 = vunpack.c.h.b16 %v1619
        %v1896 = vunpack.c.l.b16 %v1620
        %v1897 = vunpack.c.h.b16 %v1620
        %v1898 = vunpack.c.l.b16 %v1621
        %v1899 = vunpack.c.h.b16 %v1621
        %v1900 = vunpack.c.l.b16 %v1622
        %v1901 = vunpack.c.h.b16 %v1622
        %v1902 = vunpack.c.l.b16 %v1623
        %v1903 = vunpack.c.h.b16 %v1623
        %v1904 = vunpack.c.l.b16 %v1624
        %v1905 = vunpack.c.h.b16 %v1624
        %v1906 = vunpack.c.l.b16 %v1625
        %v1907 = vunpack.c.h.b16 %v1625
        %v1908 = vunpack.c.l.b16 %v1626
        %v1909 = vunpack.c.h.b16 %v1626
        %v1910 = vunpack.c.l.b16 %v1627
        %v1911 = vunpack.c.h.b16 %v1627
        %v1912 = vunpack.c.l.b16 %v1628
        %v1913 = vunpack.c.h.b16 %v1628
        %v1914 = vunpack.c.l.b16 %v1629
        %v1915 = vunpack.c.h.b16 %v1629
        %v1916 = vunpack.c.l.b16 %v1630
        %v1917 = vunpack.c.h.b16 %v1630
        %v1918 = vunpack.c.l.b16 %v1631
        %v1919 = vunpack.c.h.b16 %v1631
        %v1920 = vunpack.c.l.b16 %v1632
        %v1921 = vunpack.c.h.b16 %v1632
        %v1922 = vunpack.c.l.b16 %v1633
        %v1923 = vunpack.c.h.b16 %v1633
        %v1924 = vunpack.c.l.b16 %v1634
        %v1925 = vunpack.c.h.b16 %v1634
        %v1926 = vunpack.c.l.b16 %v1635
        %v1927 = vunpack.c.h.b16 %v1635
        %v1928 = vunpack.c.l.b16 %v1636
        %v1929 = vunpack.c.h.b16 %v1636
        %v1930 = vunpack.c.l.b16 %v1637
        %v1931 = vunpack.c.h.b16 %v1637
        %v1932 = vunpack.c.l.b16 %v1638
        %v1933 = vunpack.c.h.b16 %v1638
        %v1934 = vunpack.c.l.b16 %v1639
        %v1935 = vunpack.c.h.b16 %v1639
        %v1936 = vunpack.c.l.b16 %v1640
        %v1937 = vunpack.c.h.b16 %v1640
        %v1938 = vunpack.c.l.b16 %v1641
        %v1939 = vunpack.c.h.b16 %v1641
        %v1940 = vunpack.c.l.b16 %v1642
        %v1941 = vunpack.c.h.b16 %v1642
        %v1942 = vunpack.c.l.b16 %v1643
        %v1943 = vunpack.c.h.b16 %v1643
        %v1944 = vunpack.c.l.b16 %v1644
        %v1945 = vunpack.c.h.b16 %v1644
        %v1946 = vunpack.c.l.b16 %v1645
        %v1947 = vunpack.c.h.b16 %v1645
        %v1948 = vunpack.c.l.b16 %v1646
        %v1949 = vunpack.c.h.b16 %v1646
        %v1950 = vunpack.c.l.b16 %v1647
        %v1951 = vunpack.c.h.b16 %v1647
        %v1952 = vunpack.c.l.b16 %v1648
        %v1953 = vunpack.c.h.b16 %v1648
        %v1954 = vunpack.c.l.b16 %v1649
        %v1955 = vunpack.c.h.b16 %v1649
        %v1956 = vunpack.c.l.b16 %v1650
        %v1957 = vunpack.c.h.b16 %v1650
        %v1958 = vunpack.c.l.b16 %v1651
        %v1959 = vunpack.c.h.b16 %v1651
        %v1960 = vunpack.c.l.b16 %v1652
        %v1961 = vunpack.c.h.b16 %v1652
        %v1962 = vunpack.c.l.b16 %v1653
        %v1963 = vunpack.c.h.b16 %v1653
        %v1964 = vunpack.c.l.b16 %v1654
        %v1965 = vunpack.c.h.b16 %v1654
        %v1966 = vunpack.c.l.b16 %v1655
        %v1967 = vunpack.c.h.b16 %v1655
        %v1968 = vunpack.c.l.b16 %v1656
        %v1969 = vunpack.c.h.b16 %v1656
        %v1970 = vunpack.c.l.b16 %v1657
        %v1971 = vunpack.c.h.b16 %v1657
        %v1972 = vunpack.c.l.b16 %v1658
        %v1973 = vunpack.c.h.b16 %v1658
        %v1974 = vunpack.c.l.b16 %v1659
        %v1975 = vunpack.c.h.b16 %v1659
        %v1976 = vunpack.c.l.b16 %v1660
        %v1977 = vunpack.c.h.b16 %v1660
        %v1978 = vunpack.c.l.b16 %v1661
        %v1979 = vunpack.c.h.b16 %v1661
        %v1980 = vunpack.c.l.b16 %v1662
        %v1981 = vunpack.c.h.b16 %v1662
        %v1982 = vpack.c.b16 %v1786, %v1782
        %v1983 = vpack.c.b16 %v1787, %v1783
        %v1984 = vpack.c.b16 %v1788, %v1784
        %v1985 = vpack.c.b16 %v1789, %v1785
        %v1986 = vpack.c.b16 %v1794, %v1790
        %v1987 = vpack.c.b16 %v1795, %v1791
        %v1988 = vpack.c.b16 %v1796, %v1792
        %v1989 = vpack.c.b16 %v1797, %v1793
        %v1990 = vpack.c.b16 %v1802, %v1798
        %v1991 = vpack.c.b16 %v1803, %v1799
        %v1992 = vpack.c.b16 %v1804, %v1800
        %v1993 = vpack.c.b16 %v1805, %v1801
        %v1994 = vpack.c.b16 %v1810, %v1806
        %v1995 = vpack.c.b16 %v1811, %v1807
        %v1996 = vpack.c.b16 %v1812, %v1808
        %v1997 = vpack.c.b16 %v1813, %v1809
        %v1998 = vpack.c.b16 %v1818, %v1814
        %v1999 = vpack.c.b16 %v1819, %v1815
        %v2000 = vpack.c.b16 %v1820, %v1816
        %v2001 = vpack.c.b16 %v1821, %v1817
        %v2002 = vpack.c.b16 %v1826, %v1822
        %v2003 = vpack.c.b16 %v1827, %v1823
        %v2004 = vpack.c.b16 %v1828, %v1824
        %v2005 = vpack.c.b16 %v1829, %v1825
        %v2006 = vpack.c.b16 %v1834, %v1830
        %v2007 = vpack.c.b16 %v1835, %v1831
        %v2008 = vpack.c.b16 %v1836, %v1832
        %v2009 = vpack.c.b16 %v1837, %v1833
        %v2010 = vpack.c.b16 %v1842, %v1838
        %v2011 = vpack.c.b16 %v1843, %v1839
        %v2012 = vpack.c.b16 %v1844, %v1840
        %v2013 = vpack.c.b16 %v1845, %v1841
        %v2014 = vpack.c.b16 %v1850, %v1846
        %v2015 = vpack.c.b16 %v1851, %v1847
        %v2016 = vpack.c.b16 %v1852, %v1848
        %v2017 = vpack.c.b16 %v1853, %v1849
        %v2018 = vpack.c.b16 %v1858, %v1854
        %v2019 = vpack.c.b16 %v1859, %v1855
        %v2020 = vpack.c.b16 %v1860, %v1856
        %v2021 = vpack.c.b16 %v1861, %v1857
        %v2022 = vpack.c.b16 %v1866, %v1862
        %v2023 = vpack.c.b16 %v1867, %v1863
        %v2024 = vpack.c.b16 %v1868, %v1864
        %v2025 = vpack.c.b16 %v1869, %v1865
        %v2026 = vpack.c.b16 %v1874, %v1870
        %v2027 = vpack.c.b16 %v1875, %v1871
        %v2028 = vpack.c.b16 %v1876, %v1872
        %v2029 = vpack.c.b16 %v1877, %v1873
        %v2030 = vpack.c.b16 %v1882, %v1878
        %v2031 = vpack.c.b16 %v1883, %v1879
        %v2032 = vpack.c.b16 %v1884, %v1880
        %v2033 = vpack.c.b16 %v1885, %v1881
        %v2034 = vpack.c.b16 %v1890, %v1886
        %v2035 = vpack.c.b16 %v1891, %v1887
        %v2036 = vpack.c.b16 %v1892, %v1888
        %v2037 = vpack.c.b16 %v1893, %v1889
        %v2038 = vpack.c.b16 %v1898, %v1894
        %v2039 = vpack.c.b16 %v1899, %v1895
        %v2040 = vpack.c.b16 %v1900, %v1896
        %v2041 = vpack.c.b16 %v1901, %v1897
        %v2042 = vpack.c.b16 %v1906, %v1902
        %v2043 = vpack.c.b16 %v1907, %v1903
        %v2044 = vpack.c.b16 %v1908, %v1904
        %v2045 = vpack.c.b16 %v1909, %v1905
        %v2046 = vpack.c.b16 %v1914, %v1910
        %v2047 = vpack.c.b16 %v1915, %v1911
        %v2048 = vpack.c.b16 %v1916, %v1912
        %v2049 = vpack.c.b16 %v1917, %v1913
        %v2050 = vpack.c.b16 %v1922, %v1918
        %v2051 = vpack.c.b16 %v1923, %v1919
        %v2052 = vpack.c.b16 %v1924, %v1920
        %v2053 = vpack.c.b16 %v1925, %v1921
        %v2054 = vpack.c.b16 %v1930, %v1926
        %v2055 = vpack.c.b16 %v1931, %v1927
        %v2056 = vpack.c.b16 %v1932, %v1928
        %v2057 = vpack.c.b16 %v1933, %v1929
        %v2058 = vpack.c.b16 %v1938, %v1934
        %v2059 = vpack.c.b16 %v1939, %v1935
        %v2060 = vpack.c.b16 %v1940, %v1936
        %v2061 = vpack.c.b16 %v1941, %v1937
        %v2062 = vpack.c.b16 %v1946, %v1942
        %v2063 = vpack.c.b16 %v1947, %v1943
        %v2064 = vpack.c.b16 %v1948, %v1944
        %v2065 = vpack.c.b16 %v1949, %v1945
        %v2066 = vpack.c.b16 %v1954, %v1950
        %v2067 = vpack.c.b16 %v1955, %v1951
        %v2068 = vpack.c.b16 %v1956, %v1952
        %v2069 = vpack.c.b16 %v1957, %v1953
        %v2070 = vpack.c.b16 %v1962, %v1958
        %v2071 = vpack.c.b16 %v1963, %v1959
        %v2072 = vpack.c.b16 %v1964, %v1960
        %v2073 = vpack.c.b16 %v1965, %v1961
        %v2074 = vpack.c.b16 %v1970, %v1966
        %v2075 = vpack.c.b16 %v1971, %v1967
        %v2076 = vpack.c.b16 %v1972, %v1968
        %v2077 = vpack.c.b16 %v1973, %v1969
        %v2078 = vpack.c.b16 %v1978, %v1974
        %v2079 = vpack.c.b16 %v1979, %v1975
        %v2080 = vpack.c.b16 %v1980, %v1976
        %v2081 = vpack.c.b16 %v1981, %v1977
        %vm2182 = vcmask 130048
        %v2184 = vsel %vm2182, %v1678, 0
        %2186 = vmatpush.bf16.msra.mxu0 %v2010
        %2187 = vmatpush.bf16.msra.mxu0 %v2006
        %2188 = vmatpush.bf16.msra.mxu0 %v2002
        %2189 = vmatpush.bf16.msra.mxu0 %v1998
        %2190 = vmatpush.bf16.msra.mxu0 %v1994
        %2191 = vmatpush.bf16.msra.mxu0 %v1990
        %2192 = vmatpush.bf16.msra.mxu0 %v1986
        %2193 = vmatpush.bf16.msra.mxu0 %v1982
        %2194 = vmatmul.bf16.gmra.mxu0 %v1675
        %v2195 = vpop.f32.mrf.mxu0
        %v2196 = vadd.f32 0.0, %v2195
        %v2197 = vpop.f32.mrf.mxu0
        %v2198 = vadd.f32 0.0, %v2197
        %2199 = vdwg.mxu0
        %2200 = vmatpush.bf16.msra.mxu0 %v2042
        %2201 = vmatpush.bf16.msra.mxu0 %v2038
        %2202 = vmatpush.bf16.msra.mxu0 %v2034
        %2203 = vmatpush.bf16.msra.mxu0 %v2030
        %2204 = vmatpush.bf16.msra.mxu0 %v2026
        %2205 = vmatpush.bf16.msra.mxu0 %v2022
        %2206 = vmatpush.bf16.msra.mxu0 %v2018
        %2207 = vmatpush.bf16.msra.mxu0 %v2014
        %2208 = vmatmul.bf16.gmra.mxu0 %v1676
        %v2209 = vpop.f32.mrf.mxu0
        %v2210 = vadd.f32 %v2196, %v2209
        %v2211 = vpop.f32.mrf.mxu0
        %v2212 = vadd.f32 %v2198, %v2211
        %2213 = vdwg.mxu0
        %2214 = vmatpush.bf16.msra.mxu0 %v2074
        %2215 = vmatpush.bf16.msra.mxu0 %v2070
        %2216 = vmatpush.bf16.msra.mxu0 %v2066
        %2217 = vmatpush.bf16.msra.mxu0 %v2062
        %2218 = vmatpush.bf16.msra.mxu0 %v2058
        %2219 = vmatpush.bf16.msra.mxu0 %v2054
        %2220 = vmatpush.bf16.msra.mxu0 %v2050
        %2221 = vmatpush.bf16.msra.mxu0 %v2046
        %2222 = vmatmul.bf16.gmra.mxu0 %v1677
        %v2223 = vpop.f32.mrf.mxu0
        %v2224 = vadd.f32 %v2210, %v2223
        %v2225 = vpop.f32.mrf.mxu0
        %v2226 = vadd.f32 %v2212, %v2225
        %2227 = vdwg.mxu0
        %2228 = vmatpush.bf16.msra.mxu0 0
        %2229 = vmatpush.bf16.msra.mxu0 0
        %2230 = vmatpush.bf16.msra.mxu0 0
        %2231 = vmatpush.bf16.msra.mxu0 0
        %2232 = vmatpush.bf16.msra.mxu0 0
        %2233 = vmatpush.bf16.msra.mxu0 0
        %2234 = vmatpush.bf16.msra.mxu0 0
        %2235 = vmatpush.bf16.msra.mxu0 %v2078
        %2236 = vmatmul.bf16.gmra.mxu0 %v2184
        %v2237 = vpop.f32.mrf.mxu0
        %v2238 = vadd.f32 %v2224, %v2237
        %v2239 = vpop.f32.mrf.mxu0
        %v2240 = vadd.f32 %v2226, %v2239
        %2241 = vdwg.mxu0
        %2242 = vmatpush.bf16.msra.mxu0 %v2011
        %2243 = vmatpush.bf16.msra.mxu0 %v2007
        %2244 = vmatpush.bf16.msra.mxu0 %v2003
        %2245 = vmatpush.bf16.msra.mxu0 %v1999
        %2246 = vmatpush.bf16.msra.mxu0 %v1995
        %2247 = vmatpush.bf16.msra.mxu0 %v1991
        %2248 = vmatpush.bf16.msra.mxu0 %v1987
        %2249 = vmatpush.bf16.msra.mxu0 %v1983
        %2250 = vmatmul.bf16.gmra.mxu0 %v1675
        %v2251 = vpop.f32.mrf.mxu0
        %v2252 = vadd.f32 0.0, %v2251
        %v2253 = vpop.f32.mrf.mxu0
        %v2254 = vadd.f32 0.0, %v2253
        %2255 = vdwg.mxu0
        %2256 = vmatpush.bf16.msra.mxu0 %v2043
        %2257 = vmatpush.bf16.msra.mxu0 %v2039
        %2258 = vmatpush.bf16.msra.mxu0 %v2035
        %2259 = vmatpush.bf16.msra.mxu0 %v2031
        %2260 = vmatpush.bf16.msra.mxu0 %v2027
        %2261 = vmatpush.bf16.msra.mxu0 %v2023
        %2262 = vmatpush.bf16.msra.mxu0 %v2019
        %2263 = vmatpush.bf16.msra.mxu0 %v2015
        %2264 = vmatmul.bf16.gmra.mxu0 %v1676
        %v2265 = vpop.f32.mrf.mxu0
        %v2266 = vadd.f32 %v2252, %v2265
        %v2267 = vpop.f32.mrf.mxu0
        %v2268 = vadd.f32 %v2254, %v2267
        %2269 = vdwg.mxu0
        %2270 = vmatpush.bf16.msra.mxu0 %v2075
        %2271 = vmatpush.bf16.msra.mxu0 %v2071
        %2272 = vmatpush.bf16.msra.mxu0 %v2067
        %2273 = vmatpush.bf16.msra.mxu0 %v2063
        %2274 = vmatpush.bf16.msra.mxu0 %v2059
        %2275 = vmatpush.bf16.msra.mxu0 %v2055
        %2276 = vmatpush.bf16.msra.mxu0 %v2051
        %2277 = vmatpush.bf16.msra.mxu0 %v2047
        %2278 = vmatmul.bf16.gmra.mxu0 %v1677
        %v2279 = vpop.f32.mrf.mxu0
        %v2280 = vadd.f32 %v2266, %v2279
        %v2281 = vpop.f32.mrf.mxu0
        %v2282 = vadd.f32 %v2268, %v2281
        %2283 = vdwg.mxu0
        %2284 = vmatpush.bf16.msra.mxu0 0
        %2285 = vmatpush.bf16.msra.mxu0 0
        %2286 = vmatpush.bf16.msra.mxu0 0
        %2287 = vmatpush.bf16.msra.mxu0 0
        %2288 = vmatpush.bf16.msra.mxu0 0
        %2289 = vmatpush.bf16.msra.mxu0 0
        %2290 = vmatpush.bf16.msra.mxu0 0
        %2291 = vmatpush.bf16.msra.mxu0 %v2079
        %2292 = vmatmul.bf16.gmra.mxu0 %v2184
        %v2293 = vpop.f32.mrf.mxu0
        %v2294 = vadd.f32 %v2280, %v2293
        %v2295 = vpop.f32.mrf.mxu0
        %v2296 = vadd.f32 %v2282, %v2295
        %2297 = vdwg.mxu0
        %2298 = vmatpush.bf16.msra.mxu0 %v2012
        %2299 = vmatpush.bf16.msra.mxu0 %v2008
        %2300 = vmatpush.bf16.msra.mxu0 %v2004
        %2301 = vmatpush.bf16.msra.mxu0 %v2000
        %2302 = vmatpush.bf16.msra.mxu0 %v1996
        %2303 = vmatpush.bf16.msra.mxu0 %v1992
        %2304 = vmatpush.bf16.msra.mxu0 %v1988
        %2305 = vmatpush.bf16.msra.mxu0 %v1984
        %2306 = vmatmul.bf16.gmra.mxu0 %v1675
        %v2307 = vpop.f32.mrf.mxu0
        %v2308 = vadd.f32 0.0, %v2307
        %v2309 = vpop.f32.mrf.mxu0
        %v2310 = vadd.f32 0.0, %v2309
        %2311 = vdwg.mxu0
        %2312 = vmatpush.bf16.msra.mxu0 %v2044
        %2313 = vmatpush.bf16.msra.mxu0 %v2040
        %2314 = vmatpush.bf16.msra.mxu0 %v2036
        %2315 = vmatpush.bf16.msra.mxu0 %v2032
        %2316 = vmatpush.bf16.msra.mxu0 %v2028
        %2317 = vmatpush.bf16.msra.mxu0 %v2024
        %2318 = vmatpush.bf16.msra.mxu0 %v2020
        %2319 = vmatpush.bf16.msra.mxu0 %v2016
        %2320 = vmatmul.bf16.gmra.mxu0 %v1676
        %v2321 = vpop.f32.mrf.mxu0
        %v2322 = vadd.f32 %v2308, %v2321
        %v2323 = vpop.f32.mrf.mxu0
        %v2324 = vadd.f32 %v2310, %v2323
        %2325 = vdwg.mxu0
        %2326 = vmatpush.bf16.msra.mxu0 %v2076
        %2327 = vmatpush.bf16.msra.mxu0 %v2072
        %2328 = vmatpush.bf16.msra.mxu0 %v2068
        %2329 = vmatpush.bf16.msra.mxu0 %v2064
        %2330 = vmatpush.bf16.msra.mxu0 %v2060
        %2331 = vmatpush.bf16.msra.mxu0 %v2056
        %2332 = vmatpush.bf16.msra.mxu0 %v2052
        %2333 = vmatpush.bf16.msra.mxu0 %v2048
        %2334 = vmatmul.bf16.gmra.mxu0 %v1677
        %v2335 = vpop.f32.mrf.mxu0
        %v2336 = vadd.f32 %v2322, %v2335
        %v2337 = vpop.f32.mrf.mxu0
        %v2338 = vadd.f32 %v2324, %v2337
        %2339 = vdwg.mxu0
        %2340 = vmatpush.bf16.msra.mxu0 0
        %2341 = vmatpush.bf16.msra.mxu0 0
        %2342 = vmatpush.bf16.msra.mxu0 0
        %2343 = vmatpush.bf16.msra.mxu0 0
        %2344 = vmatpush.bf16.msra.mxu0 0
        %2345 = vmatpush.bf16.msra.mxu0 0
        %2346 = vmatpush.bf16.msra.mxu0 0
        %2347 = vmatpush.bf16.msra.mxu0 %v2080
        %2348 = vmatmul.bf16.gmra.mxu0 %v2184
        %v2349 = vpop.f32.mrf.mxu0
        %v2350 = vadd.f32 %v2336, %v2349
        %v2351 = vpop.f32.mrf.mxu0
        %v2352 = vadd.f32 %v2338, %v2351
        %2353 = vdwg.mxu0
        %2354 = vmatpush.bf16.msra.mxu0 %v2013
        %2355 = vmatpush.bf16.msra.mxu0 %v2009
        %2356 = vmatpush.bf16.msra.mxu0 %v2005
        %2357 = vmatpush.bf16.msra.mxu0 %v2001
        %2358 = vmatpush.bf16.msra.mxu0 %v1997
        %2359 = vmatpush.bf16.msra.mxu0 %v1993
        %2360 = vmatpush.bf16.msra.mxu0 %v1989
        %2361 = vmatpush.bf16.msra.mxu0 %v1985
        %2362 = vmatmul.bf16.gmra.mxu0 %v1675
        %v2363 = vpop.f32.mrf.mxu0
        %v2364 = vadd.f32 0.0, %v2363
        %v2365 = vpop.f32.mrf.mxu0
        %v2366 = vadd.f32 0.0, %v2365
        %2367 = vdwg.mxu0
        %2368 = vmatpush.bf16.msra.mxu0 %v2045
        %2369 = vmatpush.bf16.msra.mxu0 %v2041
        %2370 = vmatpush.bf16.msra.mxu0 %v2037
        %2371 = vmatpush.bf16.msra.mxu0 %v2033
        %2372 = vmatpush.bf16.msra.mxu0 %v2029
        %2373 = vmatpush.bf16.msra.mxu0 %v2025
        %2374 = vmatpush.bf16.msra.mxu0 %v2021
        %2375 = vmatpush.bf16.msra.mxu0 %v2017
        %2376 = vmatmul.bf16.gmra.mxu0 %v1676
        %v2377 = vpop.f32.mrf.mxu0
        %v2378 = vadd.f32 %v2364, %v2377
        %v2379 = vpop.f32.mrf.mxu0
        %v2380 = vadd.f32 %v2366, %v2379
        %2381 = vdwg.mxu0
        %2382 = vmatpush.bf16.msra.mxu0 %v2077
        %2383 = vmatpush.bf16.msra.mxu0 %v2073
        %2384 = vmatpush.bf16.msra.mxu0 %v2069
        %2385 = vmatpush.bf16.msra.mxu0 %v2065
        %2386 = vmatpush.bf16.msra.mxu0 %v2061
        %2387 = vmatpush.bf16.msra.mxu0 %v2057
        %2388 = vmatpush.bf16.msra.mxu0 %v2053
        %2389 = vmatpush.bf16.msra.mxu0 %v2049
        %2390 = vmatmul.bf16.gmra.mxu0 %v1677
        %v2391 = vpop.f32.mrf.mxu0
        %v2392 = vadd.f32 %v2378, %v2391
        %v2393 = vpop.f32.mrf.mxu0
        %v2394 = vadd.f32 %v2380, %v2393
        %2395 = vdwg.mxu0
        %2396 = vmatpush.bf16.msra.mxu0 0
        %2397 = vmatpush.bf16.msra.mxu0 0
        %2398 = vmatpush.bf16.msra.mxu0 0
        %2399 = vmatpush.bf16.msra.mxu0 0
        %2400 = vmatpush.bf16.msra.mxu0 0
        %2401 = vmatpush.bf16.msra.mxu0 0
        %2402 = vmatpush.bf16.msra.mxu0 0
        %2403 = vmatpush.bf16.msra.mxu0 %v2081
        %2404 = vmatmul.bf16.gmra.mxu0 %v2184
        %v2405 = vpop.f32.mrf.mxu0
        %v2406 = vadd.f32 %v2392, %v2405
        %v2407 = vpop.f32.mrf.mxu0
        %v2408 = vadd.f32 %v2394, %v2407
        %2409 = vdwg.mxu0
        %v2411 = vperm.slane %v381, 0
        %v2412 = vperm.slane %v381, 1
        %v2413 = vperm.slane %v381, 2
        %v2414 = vperm.slane %v381, 3
        %v2419 = vmul.f32 %v2238, %v2411
        %v2420 = vmul.f32 %v2294, %v2412
        %v2421 = vmul.f32 %v2350, %v2413
        %v2422 = vmul.f32 %v2406, %v2414
        %v2423 = vmul.f32 %v2240, %v2411
        %v2424 = vmul.f32 %v2296, %v2412
        %v2425 = vmul.f32 %v2352, %v2413
        %v2426 = vmul.f32 %v2408, %v2414
        %v2427 = vadd.f32 %v2419, %v2420
        %v2428 = vadd.f32 %v2427, %v2421
        %v2429 = vadd.f32 %v2428, %v2422
        %2430 = vadd.xlane.f32.xlu0 %v2429
        %v2431 = vpop.xlane.xlu0 %2430
        %v2432 = vadd.f32 %v2423, %v2424
        %v2433 = vadd.f32 %v2432, %v2425
        %v2434 = vadd.f32 %v2433, %v2426
        %2435 = vadd.xlane.f32.xlu0 %v2434
        %v2436 = vpop.xlane.xlu0 %2435
        %v2437 = vmul.f32 %v2431, 0.00390625
        %v2438 = vmul.f32 %v2436, 0.00390625
        %v2439 = vsub.f32 %v2419, %v2437
        %v2440 = vsub.f32 %v2420, %v2437
        %v2441 = vsub.f32 %v2421, %v2437
        %v2442 = vsub.f32 %v2422, %v2437
        %v2443 = vsub.f32 %v2423, %v2438
        %v2444 = vsub.f32 %v2424, %v2438
        %v2445 = vsub.f32 %v2425, %v2438
        %v2446 = vsub.f32 %v2426, %v2438
        %v2447 = vmul.f32 %v2439, %v2411
        %v2448 = vmul.f32 %v2440, %v2412
        %v2449 = vmul.f32 %v2441, %v2413
        %v2450 = vmul.f32 %v2442, %v2414
        %v2451 = vmul.f32 %v2443, %v2411
        %v2452 = vmul.f32 %v2444, %v2412
        %v2453 = vmul.f32 %v2445, %v2413
        %v2454 = vmul.f32 %v2446, %v2414
        %v2455 = vmul.f32 %v2447, %v2447
        %v2456 = vmul.f32 %v2448, %v2448
        %v2457 = vmul.f32 %v2449, %v2449
        %v2458 = vmul.f32 %v2450, %v2450
        %v2459 = vmul.f32 %v2451, %v2451
        %v2460 = vmul.f32 %v2452, %v2452
        %v2461 = vmul.f32 %v2453, %v2453
        %v2462 = vmul.f32 %v2454, %v2454
        %v2463 = vadd.f32 %v2455, %v2456
        %v2464 = vadd.f32 %v2463, %v2457
        %v2465 = vadd.f32 %v2464, %v2458
        %2466 = vadd.xlane.f32.xlu0 %v2465
        %v2467 = vpop.xlane.xlu0 %2466
        %v2468 = vadd.f32 %v2459, %v2460
        %v2469 = vadd.f32 %v2468, %v2461
        %v2470 = vadd.f32 %v2469, %v2462
        %2471 = vadd.xlane.f32.xlu0 %v2470
        %v2472 = vpop.xlane.xlu0 %2471
        %v2473 = vmul.f32 %v2467, 0.00390625
        %v2474 = vmul.f32 %v2472, 0.00390625
        %v2475 = vadd.f32 %v2473, 1e-05
        %v2476 = vadd.f32 %v2474, 1e-05
        %v2477 = vrsqrt.pop %v2475
        %v2478 = vmul.f32 %v2477, %v2475
        %v2479 = vmul.f32 %v2478, %v2477
        %v2480 = vmul.f32 0.5, %v2479
        %v2481 = vsub.f32 1.5, %v2480
        %v2482 = vmul.f32 %v2477, %v2481
        %vm2483 = vweird.f32 %v2475
        %vm2484 = vweird.f32 %v2477
        %vm2485 = vmor %vm2483, %vm2484
        %v2486 = vsel %vm2485, %v2477, %v2482
        %v2487 = vrsqrt.pop %v2476
        %v2488 = vmul.f32 %v2487, %v2476
        %v2489 = vmul.f32 %v2488, %v2487
        %v2490 = vmul.f32 0.5, %v2489
        %v2491 = vsub.f32 1.5, %v2490
        %v2492 = vmul.f32 %v2487, %v2491
        %vm2493 = vweird.f32 %v2476
        %vm2494 = vweird.f32 %v2487
        %vm2495 = vmor %vm2493, %vm2494
        %v2496 = vsel %vm2495, %v2487, %v2492
        %v2497 = vmul.f32 %v2447, %v2486
        %v2498 = vmul.f32 %v2448, %v2486
        %v2499 = vmul.f32 %v2449, %v2486
        %v2500 = vmul.f32 %v2450, %v2486
        %v2501 = vmul.f32 %v2451, %v2496
        %v2502 = vmul.f32 %v2452, %v2496
        %v2503 = vmul.f32 %v2453, %v2496
        %v2504 = vmul.f32 %v2454, %v2496
        %vm2505 = vcmp.ge.f32.partialorder %v2497, 0.0
        %vm2506 = vcmp.ge.f32.partialorder %v2498, 0.0
        %vm2507 = vcmp.ge.f32.partialorder %v2499, 0.0
        %vm2508 = vcmp.ge.f32.partialorder %v2500, 0.0
        %vm2509 = vcmp.ge.f32.partialorder %v2501, 0.0
        %vm2510 = vcmp.ge.f32.partialorder %v2502, 0.0
        %vm2511 = vcmp.ge.f32.partialorder %v2503, 0.0
        %vm2512 = vcmp.ge.f32.partialorder %v2504, 0.0
        %v2513 = vstv %s378
        %v2514 = vmul.f32 %v2513, %v2497
        %v2515 = vmul.f32 %v2513, %v2498
        %v2516 = vmul.f32 %v2513, %v2499
        %v2517 = vmul.f32 %v2513, %v2500
        %v2518 = vmul.f32 %v2513, %v2501
        %v2519 = vmul.f32 %v2513, %v2502
        %v2520 = vmul.f32 %v2513, %v2503
        %v2521 = vmul.f32 %v2513, %v2504
        %v2522 = vsel %vm2505, %v2497, %v2514
        %v2523 = vsel %vm2506, %v2498, %v2515
        %v2524 = vsel %vm2507, %v2499, %v2516
        %v2525 = vsel %vm2508, %v2500, %v2517
        %v2526 = vsel %vm2509, %v2501, %v2518
        %v2527 = vsel %vm2510, %v2502, %v2519
        %v2528 = vsel %vm2511, %v2503, %v2520
        %v2529 = vsel %vm2512, %v2504, %v2521
        %v2530 = vpack.c.bf16 %v2523, %v2522
        %v2531 = vpack.c.bf16 %v2525, %v2524
        %v2532 = vpack.c.bf16 %v2527, %v2526
        %v2533 = vpack.c.bf16 %v2529, %v2528
        %2534 = vst [vmem:[#allocation4] sm:$0xff] %v2530
        %2535 = vst [vmem:[#allocation4 + $0x8] sm:$0xff] %v2531
        %2536 = vst [vmem:[#allocation4 + $0x10] sm:$0xff] %v2532
        %2537 = vst [vmem:[#allocation4 + $0x18] sm:$0xff] %v2533
        %v2538 = vld [vmem:[#allocation4] sm:$0xff]
        %v2539 = vld [vmem:[#allocation4 + $0x8] sm:$0xf]
        %v2540 = vld [vmem:[#allocation4 + $0x10] sm:$0xff]
        %v2541 = vld [vmem:[#allocation4 + $0x18] sm:$0xf]
        %2542 = vst [vmem:[#allocation3] sm:$0xff] %v2538
        %2543 = vst [vmem:[#allocation3 + $0x8] sm:$0xf] %v2539
        %2544 = vst [vmem:[#allocation3 + $0xc] sm:$0xff] %v2540
        %2545 = vst [vmem:[#allocation3 + $0x14] sm:$0xf] %v2541
        %v2546 = vld [vmem:[#allocation4] sm:$0xff]
        %v2547 = vld [vmem:[#allocation4 + $0x8] sm:$0xff]
        %v2548 = vld [vmem:[#allocation4 + $0x10] sm:$0xff]
        %v2549 = vld [vmem:[#allocation4 + $0x18] sm:$0xff]
        %2554 = vrot.lane.b32.xlu0 %v2546, 127
        %v2555 = vpop.permute.xlu0 %2554
        %2556 = vrot.lane.b32.xlu0 %v2547, 127
        %v2557 = vpop.permute.xlu0 %2556
        %2558 = vrot.lane.b32.xlu0 %v2548, 127
        %v2559 = vpop.permute.xlu0 %2558
        %2560 = vrot.lane.b32.xlu0 %v2549, 127
        %v2561 = vpop.permute.xlu0 %2560
        %v2562 = vrot.slane %v2555, 4
        %v2563 = vrot.slane %v2557, 4
        %v2564 = vrot.slane %v2559, 4
        %v2565 = vrot.slane %v2561, 4
        %v2566 = vsel %vm413, %v2562, %v2563
        %vm2567 = vcmask 1039360
        %v2568 = vsel %vm2567, %v2555, %v2566
        %v2569 = vsel %vm2567, %v2557, %v2563
        %v2570 = vsel %vm413, %v2564, %v2565
        %v2571 = vsel %vm2567, %v2559, %v2570
        %v2572 = vsel %vm2567, %v2561, %v2565
        %2577 = vst [vmem:[#allocation3 + $0x18] sm:$0xff] %v2568
        %2578 = vst [vmem:[#allocation3 + $0x20] sm:$0xf] %v2569
        %2579 = vst [vmem:[#allocation3 + $0x24] sm:$0xff] %v2571
        %2580 = vst [vmem:[#allocation3 + $0x2c] sm:$0xf] %v2572
        %v2581 = vld [vmem:[#allocation4] sm:$0xff]
        %v2582 = vld [vmem:[#allocation4 + $0x8] sm:$0xff]
        %v2583 = vld [vmem:[#allocation4 + $0x10] sm:$0xff]
        %v2584 = vld [vmem:[#allocation4 + $0x18] sm:$0xff]
        %2589 = vrot.lane.b32.xlu0 %v2581, 126
        %v2590 = vpop.permute.xlu0 %2589
        %2591 = vrot.lane.b32.xlu0 %v2582, 126
        %v2592 = vpop.permute.xlu0 %2591
        %2593 = vrot.lane.b32.xlu0 %v2583, 126
        %v2594 = vpop.permute.xlu0 %2593
        %2595 = vrot.lane.b32.xlu0 %v2584, 126
        %v2596 = vpop.permute.xlu0 %2595
        %v2597 = vrot.slane %v2590, 4
        %v2598 = vrot.slane %v2592, 4
        %v2599 = vrot.slane %v2594, 4
        %v2600 = vrot.slane %v2596, 4
        %v2601 = vsel %vm413, %v2597, %v2598
        %vm2602 = vcmask 1031168
        %v2603 = vsel %vm2602, %v2590, %v2601
        %v2604 = vsel %vm2602, %v2592, %v2598
        %v2605 = vsel %vm413, %v2599, %v2600
        %v2606 = vsel %vm2602, %v2594, %v2605
        %v2607 = vsel %vm2602, %v2596, %v2600
        %2612 = vst [vmem:[#allocation3 + $0x30] sm:$0xff] %v2603
        %2613 = vst [vmem:[#allocation3 + $0x38] sm:$0xf] %v2604
        %2614 = vst [vmem:[#allocation3 + $0x3c] sm:$0xff] %v2606
        %2615 = vst [vmem:[#allocation3 + $0x44] sm:$0xf] %v2607
        %v2616 = vld [vmem:[#allocation4] sm:$0xff]
        %v2617 = vld [vmem:[#allocation4 + $0x8] sm:$0xff]
        %v2618 = vld [vmem:[#allocation4 + $0x10] sm:$0xff]
        %v2619 = vld [vmem:[#allocation4 + $0x18] sm:$0xff]
        %2624 = vrot.lane.b32.xlu0 %v2616, 125
        %v2625 = vpop.permute.xlu0 %2624
        %2626 = vrot.lane.b32.xlu0 %v2617, 125
        %v2627 = vpop.permute.xlu0 %2626
        %2628 = vrot.lane.b32.xlu0 %v2618, 125
        %v2629 = vpop.permute.xlu0 %2628
        %2630 = vrot.lane.b32.xlu0 %v2619, 125
        %v2631 = vpop.permute.xlu0 %2630
        %v2632 = vrot.slane %v2625, 4
        %v2633 = vrot.slane %v2627, 4
        %v2634 = vrot.slane %v2629, 4
        %v2635 = vrot.slane %v2631, 4
        %v2636 = vsel %vm413, %v2632, %v2633
        %vm2637 = vcmask 1022976
        %v2638 = vsel %vm2637, %v2625, %v2636
        %v2639 = vsel %vm2637, %v2627, %v2633
        %v2640 = vsel %vm413, %v2634, %v2635
        %v2641 = vsel %vm2637, %v2629, %v2640
        %v2642 = vsel %vm2637, %v2631, %v2635
        %2647 = vst [vmem:[#allocation3 + $0x48] sm:$0xff] %v2638
        %2648 = vst [vmem:[#allocation3 + $0x50] sm:$0xf] %v2639
        %2649 = vst [vmem:[#allocation3 + $0x54] sm:$0xff] %v2641
        %2650 = vst [vmem:[#allocation3 + $0x5c] sm:$0xf] %v2642
        %v2651 = vld [vmem:[#allocation4] sm:$0xff]
        %v2652 = vld [vmem:[#allocation4 + $0x8] sm:$0xff]
        %v2653 = vld [vmem:[#allocation4 + $0x10] sm:$0xff]
        %v2654 = vld [vmem:[#allocation4 + $0x18] sm:$0xff]
        %2659 = vrot.lane.b32.xlu0 %v2651, 124
        %v2660 = vpop.permute.xlu0 %2659
        %2661 = vrot.lane.b32.xlu0 %v2652, 124
        %v2662 = vpop.permute.xlu0 %2661
        %2663 = vrot.lane.b32.xlu0 %v2653, 124
        %v2664 = vpop.permute.xlu0 %2663
        %2665 = vrot.lane.b32.xlu0 %v2654, 124
        %v2666 = vpop.permute.xlu0 %2665
        %v2667 = vrot.slane %v2660, 4
        %v2668 = vrot.slane %v2662, 4
        %v2669 = vrot.slane %v2664, 4
        %v2670 = vrot.slane %v2666, 4
        %v2671 = vsel %vm413, %v2667, %v2668
        %vm2672 = vcmask 1014784
        %v2673 = vsel %vm2672, %v2660, %v2671
        %v2674 = vsel %vm2672, %v2662, %v2668
        %v2675 = vsel %vm413, %v2669, %v2670
        %v2676 = vsel %vm2672, %v2664, %v2675
        %v2677 = vsel %vm2672, %v2666, %v2670
        %2682 = vst [vmem:[#allocation3 + $0x60] sm:$0xff] %v2673
        %2683 = vst [vmem:[#allocation3 + $0x68] sm:$0xf] %v2674
        %2684 = vst [vmem:[#allocation3 + $0x6c] sm:$0xff] %v2676
        %2685 = vst [vmem:[#allocation3 + $0x74] sm:$0xf] %v2677
        %v2686 = vld [vmem:[#allocation4] sm:$0xff]
        %v2687 = vld [vmem:[#allocation4 + $0x8] sm:$0xff]
        %v2688 = vld [vmem:[#allocation4 + $0x10] sm:$0xff]
        %v2689 = vld [vmem:[#allocation4 + $0x18] sm:$0xff]
        %2694 = vrot.lane.b32.xlu0 %v2686, 108
        %v2695 = vpop.permute.xlu0 %2694
        %2696 = vrot.lane.b32.xlu0 %v2687, 108
        %v2697 = vpop.permute.xlu0 %2696
        %2698 = vrot.lane.b32.xlu0 %v2688, 108
        %v2699 = vpop.permute.xlu0 %2698
        %2700 = vrot.lane.b32.xlu0 %v2689, 108
        %v2701 = vpop.permute.xlu0 %2700
        %v2702 = vrot.slane %v2695, 4
        %v2703 = vrot.slane %v2697, 4
        %v2704 = vrot.slane %v2699, 4
        %v2705 = vrot.slane %v2701, 4
        %v2706 = vsel %vm413, %v2702, %v2703
        %vm2707 = vcmask 883712
        %v2708 = vsel %vm2707, %v2695, %v2706
        %v2709 = vsel %vm2707, %v2697, %v2703
        %v2710 = vsel %vm413, %v2704, %v2705
        %v2711 = vsel %vm2707, %v2699, %v2710
        %v2712 = vsel %vm2707, %v2701, %v2705
        %2717 = vst [vmem:[#allocation3 + $0x78] sm:$0xff] %v2708
        %2718 = vst [vmem:[#allocation3 + $0x80] sm:$0xf] %v2709
        %2719 = vst [vmem:[#allocation3 + $0x84] sm:$0xff] %v2711
        %2720 = vst [vmem:[#allocation3 + $0x8c] sm:$0xf] %v2712
        %v2721 = vld [vmem:[#allocation4] sm:$0xff]
        %v2722 = vld [vmem:[#allocation4 + $0x8] sm:$0xff]
        %v2723 = vld [vmem:[#allocation4 + $0x10] sm:$0xff]
        %v2724 = vld [vmem:[#allocation4 + $0x18] sm:$0xff]
        %2729 = vrot.lane.b32.xlu0 %v2721, 107
        %v2730 = vpop.permute.xlu0 %2729
        %2731 = vrot.lane.b32.xlu0 %v2722, 107
        %v2732 = vpop.permute.xlu0 %2731
        %2733 = vrot.lane.b32.xlu0 %v2723, 107
        %v2734 = vpop.permute.xlu0 %2733
        %2735 = vrot.lane.b32.xlu0 %v2724, 107
        %v2736 = vpop.permute.xlu0 %2735
        %v2737 = vrot.slane %v2730, 4
        %v2738 = vrot.slane %v2732, 4
        %v2739 = vrot.slane %v2734, 4
        %v2740 = vrot.slane %v2736, 4
        %v2741 = vsel %vm413, %v2737, %v2738
        %vm2742 = vcmask 875520
        %v2743 = vsel %vm2742, %v2730, %v2741
        %v2744 = vsel %vm2742, %v2732, %v2738
        %v2745 = vsel %vm413, %v2739, %v2740
        %v2746 = vsel %vm2742, %v2734, %v2745
        %v2747 = vsel %vm2742, %v2736, %v2740
        %2752 = vst [vmem:[#allocation3 + $0x90] sm:$0xff] %v2743
        %2753 = vst [vmem:[#allocation3 + $0x98] sm:$0xf] %v2744
        %2754 = vst [vmem:[#allocation3 + $0x9c] sm:$0xff] %v2746
        %2755 = vst [vmem:[#allocation3 + $0xa4] sm:$0xf] %v2747
        %v2756 = vld [vmem:[#allocation4] sm:$0xff]
        %v2757 = vld [vmem:[#allocation4 + $0x8] sm:$0xff]
        %v2758 = vld [vmem:[#allocation4 + $0x10] sm:$0xff]
        %v2759 = vld [vmem:[#allocation4 + $0x18] sm:$0xff]
        %2764 = vrot.lane.b32.xlu0 %v2756, 106
        %v2765 = vpop.permute.xlu0 %2764
        %2766 = vrot.lane.b32.xlu0 %v2757, 106
        %v2767 = vpop.permute.xlu0 %2766
        %2768 = vrot.lane.b32.xlu0 %v2758, 106
        %v2769 = vpop.permute.xlu0 %2768
        %2770 = vrot.lane.b32.xlu0 %v2759, 106
        %v2771 = vpop.permute.xlu0 %2770
        %v2772 = vrot.slane %v2765, 4
        %v2773 = vrot.slane %v2767, 4
        %v2774 = vrot.slane %v2769, 4
        %v2775 = vrot.slane %v2771, 4
        %v2776 = vsel %vm413, %v2772, %v2773
        %vm2777 = vcmask 867328
        %v2778 = vsel %vm2777, %v2765, %v2776
        %v2779 = vsel %vm2777, %v2767, %v2773
        %v2780 = vsel %vm413, %v2774, %v2775
        %v2781 = vsel %vm2777, %v2769, %v2780
        %v2782 = vsel %vm2777, %v2771, %v2775
        %2787 = vst [vmem:[#allocation3 + $0xa8] sm:$0xff] %v2778
        %2788 = vst [vmem:[#allocation3 + $0xb0] sm:$0xf] %v2779
        %2789 = vst [vmem:[#allocation3 + $0xb4] sm:$0xff] %v2781
        %2790 = vst [vmem:[#allocation3 + $0xbc] sm:$0xf] %v2782
        %v2791 = vld [vmem:[#allocation4] sm:$0xff]
        %v2792 = vld [vmem:[#allocation4 + $0x8] sm:$0xff]
        %v2793 = vld [vmem:[#allocation4 + $0x10] sm:$0xff]
        %v2794 = vld [vmem:[#allocation4 + $0x18] sm:$0xff]
        %2799 = vrot.lane.b32.xlu0 %v2791, 105
        %v2800 = vpop.permute.xlu0 %2799
        %2801 = vrot.lane.b32.xlu0 %v2792, 105
        %v2802 = vpop.permute.xlu0 %2801
        %2803 = vrot.lane.b32.xlu0 %v2793, 105
        %v2804 = vpop.permute.xlu0 %2803
        %2805 = vrot.lane.b32.xlu0 %v2794, 105
        %v2806 = vpop.permute.xlu0 %2805
        %v2807 = vrot.slane %v2800, 4
        %v2808 = vrot.slane %v2802, 4
        %v2809 = vrot.slane %v2804, 4
        %v2810 = vrot.slane %v2806, 4
        %v2811 = vsel %vm413, %v2807, %v2808
        %vm2812 = vcmask 859136
        %v2813 = vsel %vm2812, %v2800, %v2811
        %v2814 = vsel %vm2812, %v2802, %v2808
        %v2815 = vsel %vm413, %v2809, %v2810
        %v2816 = vsel %vm2812, %v2804, %v2815
        %v2817 = vsel %vm2812, %v2806, %v2810
        %2822 = vst [vmem:[#allocation3 + $0xc0] sm:$0xff] %v2813
        %2823 = vst [vmem:[#allocation3 + $0xc8] sm:$0xf] %v2814
        %2824 = vst [vmem:[#allocation3 + $0xcc] sm:$0xff] %v2816
        %2825 = vst [vmem:[#allocation3 + $0xd4] sm:$0xf] %v2817
        %v2826 = vld [vmem:[#allocation4] sm:$0xff]
        %v2827 = vld [vmem:[#allocation4 + $0x8] sm:$0xff]
        %v2828 = vld [vmem:[#allocation4 + $0x10] sm:$0xff]
        %v2829 = vld [vmem:[#allocation4 + $0x18] sm:$0xff]
        %2834 = vrot.lane.b32.xlu0 %v2826, 104
        %v2835 = vpop.permute.xlu0 %2834
        %2836 = vrot.lane.b32.xlu0 %v2827, 104
        %v2837 = vpop.permute.xlu0 %2836
        %2838 = vrot.lane.b32.xlu0 %v2828, 104
        %v2839 = vpop.permute.xlu0 %2838
        %2840 = vrot.lane.b32.xlu0 %v2829, 104
        %v2841 = vpop.permute.xlu0 %2840
        %v2842 = vrot.slane %v2835, 4
        %v2843 = vrot.slane %v2837, 4
        %v2844 = vrot.slane %v2839, 4
        %v2845 = vrot.slane %v2841, 4
        %v2846 = vsel %vm413, %v2842, %v2843
        %vm2847 = vcmask 850944
        %v2848 = vsel %vm2847, %v2835, %v2846
        %v2849 = vsel %vm2847, %v2837, %v2843
        %v2850 = vsel %vm413, %v2844, %v2845
        %v2851 = vsel %vm2847, %v2839, %v2850
        %v2852 = vsel %vm2847, %v2841, %v2845
        %2857 = vst [vmem:[#allocation3 + $0xd8] sm:$0xff] %v2848
        %2858 = vst [vmem:[#allocation3 + $0xe0] sm:$0xf] %v2849
        %2859 = vst [vmem:[#allocation3 + $0xe4] sm:$0xff] %v2851
        %2860 = vst [vmem:[#allocation3 + $0xec] sm:$0xf] %v2852
        %v2861 = vld [vmem:[#allocation4] sm:$0xff]
        %v2862 = vld [vmem:[#allocation4 + $0x8] sm:$0xff]
        %v2863 = vld [vmem:[#allocation4 + $0x10] sm:$0xff]
        %v2864 = vld [vmem:[#allocation4 + $0x18] sm:$0xff]
        %2869 = vrot.lane.b32.xlu0 %v2861, 88
        %v2870 = vpop.permute.xlu0 %2869
        %2871 = vrot.lane.b32.xlu0 %v2862, 88
        %v2872 = vpop.permute.xlu0 %2871
        %2873 = vrot.lane.b32.xlu0 %v2863, 88
        %v2874 = vpop.permute.xlu0 %2873
        %2875 = vrot.lane.b32.xlu0 %v2864, 88
        %v2876 = vpop.permute.xlu0 %2875
        %v2877 = vrot.slane %v2870, 4
        %v2878 = vrot.slane %v2872, 4
        %v2879 = vrot.slane %v2874, 4
        %v2880 = vrot.slane %v2876, 4
        %v2881 = vsel %vm413, %v2877, %v2878
        %vm2882 = vcmask 719872
        %v2883 = vsel %vm2882, %v2870, %v2881
        %v2884 = vsel %vm2882, %v2872, %v2878
        %v2885 = vsel %vm413, %v2879, %v2880
        %v2886 = vsel %vm2882, %v2874, %v2885
        %v2887 = vsel %vm2882, %v2876, %v2880
        %2892 = vst [vmem:[#allocation3 + $0xf0] sm:$0xff] %v2883
        %2893 = vst [vmem:[#allocation3 + $0xf8] sm:$0xf] %v2884
        %2894 = vst [vmem:[#allocation3 + $0xfc] sm:$0xff] %v2886
        %2895 = vst [vmem:[#allocation3 + $0x104] sm:$0xf] %v2887
        %v2896 = vld [vmem:[#allocation4] sm:$0xff]
        %v2897 = vld [vmem:[#allocation4 + $0x8] sm:$0xff]
        %v2898 = vld [vmem:[#allocation4 + $0x10] sm:$0xff]
        %v2899 = vld [vmem:[#allocation4 + $0x18] sm:$0xff]
        %2904 = vrot.lane.b32.xlu0 %v2896, 87
        %v2905 = vpop.permute.xlu0 %2904
        %2906 = vrot.lane.b32.xlu0 %v2897, 87
        %v2907 = vpop.permute.xlu0 %2906
        %2908 = vrot.lane.b32.xlu0 %v2898, 87
        %v2909 = vpop.permute.xlu0 %2908
        %2910 = vrot.lane.b32.xlu0 %v2899, 87
        %v2911 = vpop.permute.xlu0 %2910
        %v2912 = vrot.slane %v2905, 4
        %v2913 = vrot.slane %v2907, 4
        %v2914 = vrot.slane %v2909, 4
        %v2915 = vrot.slane %v2911, 4
        %v2916 = vsel %vm413, %v2912, %v2913
        %vm2917 = vcmask 711680
        %v2918 = vsel %vm2917, %v2905, %v2916
        %v2919 = vsel %vm2917, %v2907, %v2913
        %v2920 = vsel %vm413, %v2914, %v2915
        %v2921 = vsel %vm2917, %v2909, %v2920
        %v2922 = vsel %vm2917, %v2911, %v2915
        %2927 = vst [vmem:[#allocation3 + $0x108] sm:$0xff] %v2918
        %2928 = vst [vmem:[#allocation3 + $0x110] sm:$0xf] %v2919
        %2929 = vst [vmem:[#allocation3 + $0x114] sm:$0xff] %v2921
        %2930 = vst [vmem:[#allocation3 + $0x11c] sm:$0xf] %v2922
        %v2931 = vld [vmem:[#allocation4] sm:$0xff]
        %v2932 = vld [vmem:[#allocation4 + $0x8] sm:$0xff]
        %v2933 = vld [vmem:[#allocation4 + $0x10] sm:$0xff]
        %v2934 = vld [vmem:[#allocation4 + $0x18] sm:$0xff]
        %2939 = vrot.lane.b32.xlu0 %v2931, 86
        %v2940 = vpop.permute.xlu0 %2939
        %2941 = vrot.lane.b32.xlu0 %v2932, 86
        %v2942 = vpop.permute.xlu0 %2941
        %2943 = vrot.lane.b32.xlu0 %v2933, 86
        %v2944 = vpop.permute.xlu0 %2943
        %2945 = vrot.lane.b32.xlu0 %v2934, 86
        %v2946 = vpop.permute.xlu0 %2945
        %v2947 = vrot.slane %v2940, 4
        %v2948 = vrot.slane %v2942, 4
        %v2949 = vrot.slane %v2944, 4
        %v2950 = vrot.slane %v2946, 4
        %v2951 = vsel %vm413, %v2947, %v2948
        %vm2952 = vcmask 703488
        %v2953 = vsel %vm2952, %v2940, %v2951
        %v2954 = vsel %vm2952, %v2942, %v2948
        %v2955 = vsel %vm413, %v2949, %v2950
        %v2956 = vsel %vm2952, %v2944, %v2955
        %v2957 = vsel %vm2952, %v2946, %v2950
        %2962 = vst [vmem:[#allocation3 + $0x120] sm:$0xff] %v2953
        %2963 = vst [vmem:[#allocation3 + $0x128] sm:$0xf] %v2954
        %2964 = vst [vmem:[#allocation3 + $0x12c] sm:$0xff] %v2956
        %2965 = vst [vmem:[#allocation3 + $0x134] sm:$0xf] %v2957
        %v2966 = vld [vmem:[#allocation4] sm:$0xff]
        %v2967 = vld [vmem:[#allocation4 + $0x8] sm:$0xff]
        %v2968 = vld [vmem:[#allocation4 + $0x10] sm:$0xff]
        %v2969 = vld [vmem:[#allocation4 + $0x18] sm:$0xff]
        %2974 = vrot.lane.b32.xlu0 %v2966, 85
        %v2975 = vpop.permute.xlu0 %2974
        %2976 = vrot.lane.b32.xlu0 %v2967, 85
        %v2977 = vpop.permute.xlu0 %2976
        %2978 = vrot.lane.b32.xlu0 %v2968, 85
        %v2979 = vpop.permute.xlu0 %2978
        %2980 = vrot.lane.b32.xlu0 %v2969, 85
        %v2981 = vpop.permute.xlu0 %2980
        %v2982 = vrot.slane %v2975, 4
        %v2983 = vrot.slane %v2977, 4
        %v2984 = vrot.slane %v2979, 4
        %v2985 = vrot.slane %v2981, 4
        %v2986 = vsel %vm413, %v2982, %v2983
        %vm2987 = vcmask 695296
        %v2988 = vsel %vm2987, %v2975, %v2986
        %v2989 = vsel %vm2987, %v2977, %v2983
        %v2990 = vsel %vm413, %v2984, %v2985
        %v2991 = vsel %vm2987, %v2979, %v2990
        %v2992 = vsel %vm2987, %v2981, %v2985
        %2997 = vst [vmem:[#allocation3 + $0x138] sm:$0xff] %v2988
        %2998 = vst [vmem:[#allocation3 + $0x140] sm:$0xf] %v2989
        %2999 = vst [vmem:[#allocation3 + $0x144] sm:$0xff] %v2991
        %3000 = vst [vmem:[#allocation3 + $0x14c] sm:$0xf] %v2992
        %v3001 = vld [vmem:[#allocation4] sm:$0xff]
        %v3002 = vld [vmem:[#allocation4 + $0x8] sm:$0xff]
        %v3003 = vld [vmem:[#allocation4 + $0x10] sm:$0xff]
        %v3004 = vld [vmem:[#allocation4 + $0x18] sm:$0xff]
        %3009 = vrot.lane.b32.xlu0 %v3001, 84
        %v3010 = vpop.permute.xlu0 %3009
        %3011 = vrot.lane.b32.xlu0 %v3002, 84
        %v3012 = vpop.permute.xlu0 %3011
        %3013 = vrot.lane.b32.xlu0 %v3003, 84
        %v3014 = vpop.permute.xlu0 %3013
        %3015 = vrot.lane.b32.xlu0 %v3004, 84
        %v3016 = vpop.permute.xlu0 %3015
        %v3017 = vrot.slane %v3010, 4
        %v3018 = vrot.slane %v3012, 4
        %v3019 = vrot.slane %v3014, 4
        %v3020 = vrot.slane %v3016, 4
        %v3021 = vsel %vm413, %v3017, %v3018
        %vm3022 = vcmask 687104
        %v3023 = vsel %vm3022, %v3010, %v3021
        %v3024 = vsel %vm3022, %v3012, %v3018
        %v3025 = vsel %vm413, %v3019, %v3020
        %v3026 = vsel %vm3022, %v3014, %v3025
        %v3027 = vsel %vm3022, %v3016, %v3020
        %3032 = vst [vmem:[#allocation3 + $0x150] sm:$0xff] %v3023
        %3033 = vst [vmem:[#allocation3 + $0x158] sm:$0xf] %v3024
        %3034 = vst [vmem:[#allocation3 + $0x15c] sm:$0xff] %v3026
        %3035 = vst [vmem:[#allocation3 + $0x164] sm:$0xf] %v3027
        %v3036 = vld [vmem:[#allocation4] sm:$0xff]
        %v3037 = vld [vmem:[#allocation4 + $0x8] sm:$0xff]
        %v3038 = vld [vmem:[#allocation4 + $0x10] sm:$0xff]
        %v3039 = vld [vmem:[#allocation4 + $0x18] sm:$0xff]
        %3044 = vrot.lane.b32.xlu0 %v3036, 68
        %v3045 = vpop.permute.xlu0 %3044
        %3046 = vrot.lane.b32.xlu0 %v3037, 68
        %v3047 = vpop.permute.xlu0 %3046
        %3048 = vrot.lane.b32.xlu0 %v3038, 68
        %v3049 = vpop.permute.xlu0 %3048
        %3050 = vrot.lane.b32.xlu0 %v3039, 68
        %v3051 = vpop.permute.xlu0 %3050
        %v3052 = vrot.slane %v3045, 4
        %v3053 = vrot.slane %v3047, 4
        %v3054 = vrot.slane %v3049, 4
        %v3055 = vrot.slane %v3051, 4
        %v3056 = vsel %vm413, %v3052, %v3053
        %vm3057 = vcmask 556032
        %v3058 = vsel %vm3057, %v3045, %v3056
        %v3059 = vsel %vm3057, %v3047, %v3053
        %v3060 = vsel %vm413, %v3054, %v3055
        %v3061 = vsel %vm3057, %v3049, %v3060
        %v3062 = vsel %vm3057, %v3051, %v3055
        %3067 = vst [vmem:[#allocation3 + $0x168] sm:$0xff] %v3058
        %3068 = vst [vmem:[#allocation3 + $0x170] sm:$0xf] %v3059
        %3069 = vst [vmem:[#allocation3 + $0x174] sm:$0xff] %v3061
        %3070 = vst [vmem:[#allocation3 + $0x17c] sm:$0xf] %v3062
        %v3071 = vld [vmem:[#allocation4] sm:$0xff]
        %v3072 = vld [vmem:[#allocation4 + $0x8] sm:$0xff]
        %v3073 = vld [vmem:[#allocation4 + $0x10] sm:$0xff]
        %v3074 = vld [vmem:[#allocation4 + $0x18] sm:$0xff]
        %3079 = vrot.lane.b32.xlu0 %v3071, 67
        %v3080 = vpop.permute.xlu0 %3079
        %3081 = vrot.lane.b32.xlu0 %v3072, 67
        %v3082 = vpop.permute.xlu0 %3081
        %3083 = vrot.lane.b32.xlu0 %v3073, 67
        %v3084 = vpop.permute.xlu0 %3083
        %3085 = vrot.lane.b32.xlu0 %v3074, 67
        %v3086 = vpop.permute.xlu0 %3085
        %v3087 = vrot.slane %v3080, 4
        %v3088 = vrot.slane %v3082, 4
        %v3089 = vrot.slane %v3084, 4
        %v3090 = vrot.slane %v3086, 4
        %v3091 = vsel %vm413, %v3087, %v3088
        %vm3092 = vcmask 547840
        %v3093 = vsel %vm3092, %v3080, %v3091
        %v3094 = vsel %vm3092, %v3082, %v3088
        %v3095 = vsel %vm413, %v3089, %v3090
        %v3096 = vsel %vm3092, %v3084, %v3095
        %v3097 = vsel %vm3092, %v3086, %v3090
        %3102 = vst [vmem:[#allocation3 + $0x180] sm:$0xff] %v3093
        %3103 = vst [vmem:[#allocation3 + $0x188] sm:$0xf] %v3094
        %3104 = vst [vmem:[#allocation3 + $0x18c] sm:$0xff] %v3096
        %3105 = vst [vmem:[#allocation3 + $0x194] sm:$0xf] %v3097
        %v3106 = vld [vmem:[#allocation4] sm:$0xff]
        %v3107 = vld [vmem:[#allocation4 + $0x8] sm:$0xff]
        %v3108 = vld [vmem:[#allocation4 + $0x10] sm:$0xff]
        %v3109 = vld [vmem:[#allocation4 + $0x18] sm:$0xff]
        %3114 = vrot.lane.b32.xlu0 %v3106, 66
        %v3115 = vpop.permute.xlu0 %3114
        %3116 = vrot.lane.b32.xlu0 %v3107, 66
        %v3117 = vpop.permute.xlu0 %3116
        %3118 = vrot.lane.b32.xlu0 %v3108, 66
        %v3119 = vpop.permute.xlu0 %3118
        %3120 = vrot.lane.b32.xlu0 %v3109, 66
        %v3121 = vpop.permute.xlu0 %3120
        %v3122 = vrot.slane %v3115, 4
        %v3123 = vrot.slane %v3117, 4
        %v3124 = vrot.slane %v3119, 4
        %v3125 = vrot.slane %v3121, 4
        %v3126 = vsel %vm413, %v3122, %v3123
        %vm3127 = vcmask 539648
        %v3128 = vsel %vm3127, %v3115, %v3126
        %v3129 = vsel %vm3127, %v3117, %v3123
        %v3130 = vsel %vm413, %v3124, %v3125
        %v3131 = vsel %vm3127, %v3119, %v3130
        %v3132 = vsel %vm3127, %v3121, %v3125
        %3137 = vst [vmem:[#allocation3 + $0x198] sm:$0xff] %v3128
        %3138 = vst [vmem:[#allocation3 + $0x1a0] sm:$0xf] %v3129
        %3139 = vst [vmem:[#allocation3 + $0x1a4] sm:$0xff] %v3131
        %3140 = vst [vmem:[#allocation3 + $0x1ac] sm:$0xf] %v3132
        %v3141 = vld [vmem:[#allocation4] sm:$0xff]
        %v3142 = vld [vmem:[#allocation4 + $0x8] sm:$0xff]
        %v3143 = vld [vmem:[#allocation4 + $0x10] sm:$0xff]
        %v3144 = vld [vmem:[#allocation4 + $0x18] sm:$0xff]
        %3149 = vrot.lane.b32.xlu0 %v3141, 65
        %v3150 = vpop.permute.xlu0 %3149
        %3151 = vrot.lane.b32.xlu0 %v3142, 65
        %v3152 = vpop.permute.xlu0 %3151
        %3153 = vrot.lane.b32.xlu0 %v3143, 65
        %v3154 = vpop.permute.xlu0 %3153
        %3155 = vrot.lane.b32.xlu0 %v3144, 65
        %v3156 = vpop.permute.xlu0 %3155
        %v3157 = vrot.slane %v3150, 4
        %v3158 = vrot.slane %v3152, 4
        %v3159 = vrot.slane %v3154, 4
        %v3160 = vrot.slane %v3156, 4
        %v3161 = vsel %vm413, %v3157, %v3158
        %vm3162 = vcmask 531456
        %v3163 = vsel %vm3162, %v3150, %v3161
        %v3164 = vsel %vm3162, %v3152, %v3158
        %v3165 = vsel %vm413, %v3159, %v3160
        %v3166 = vsel %vm3162, %v3154, %v3165
        %v3167 = vsel %vm3162, %v3156, %v3160
        %3172 = vst [vmem:[#allocation3 + $0x1b0] sm:$0xff] %v3163
        %3173 = vst [vmem:[#allocation3 + $0x1b8] sm:$0xf] %v3164
        %3174 = vst [vmem:[#allocation3 + $0x1bc] sm:$0xff] %v3166
        %3175 = vst [vmem:[#allocation3 + $0x1c4] sm:$0xf] %v3167
        %v3176 = vld [vmem:[#allocation4] sm:$0xff]
        %v3177 = vld [vmem:[#allocation4 + $0x8] sm:$0xff]
        %v3178 = vld [vmem:[#allocation4 + $0x10] sm:$0xff]
        %v3179 = vld [vmem:[#allocation4 + $0x18] sm:$0xff]
        %3184 = vrot.lane.b32.xlu0 %v3176, 64
        %v3185 = vpop.permute.xlu0 %3184
        %3186 = vrot.lane.b32.xlu0 %v3177, 64
        %v3187 = vpop.permute.xlu0 %3186
        %3188 = vrot.lane.b32.xlu0 %v3178, 64
        %v3189 = vpop.permute.xlu0 %3188
        %3190 = vrot.lane.b32.xlu0 %v3179, 64
        %v3191 = vpop.permute.xlu0 %3190
        %v3192 = vrot.slane %v3185, 4
        %v3193 = vrot.slane %v3187, 4
        %v3194 = vrot.slane %v3189, 4
        %v3195 = vrot.slane %v3191, 4
        %v3196 = vsel %vm413, %v3192, %v3193
        %vm3197 = vcmask 523264
        %v3198 = vsel %vm3197, %v3185, %v3196
        %v3199 = vsel %vm3197, %v3187, %v3193
        %v3200 = vsel %vm413, %v3194, %v3195
        %v3201 = vsel %vm3197, %v3189, %v3200
        %v3202 = vsel %vm3197, %v3191, %v3195
        %3207 = vst [vmem:[#allocation3 + $0x1c8] sm:$0xff] %v3198
        %3208 = vst [vmem:[#allocation3 + $0x1d0] sm:$0xf] %v3199
        %3209 = vst [vmem:[#allocation3 + $0x1d4] sm:$0xff] %v3201
        %3210 = vst [vmem:[#allocation3 + $0x1dc] sm:$0xf] %v3202
        %v3211 = vld [vmem:[#allocation4] sm:$0xff]
        %v3212 = vld [vmem:[#allocation4 + $0x8] sm:$0xff]
        %v3213 = vld [vmem:[#allocation4 + $0x10] sm:$0xff]
        %v3214 = vld [vmem:[#allocation4 + $0x18] sm:$0xff]
        %3219 = vrot.lane.b32.xlu0 %v3211, 48
        %v3220 = vpop.permute.xlu0 %3219
        %3221 = vrot.lane.b32.xlu0 %v3212, 48
        %v3222 = vpop.permute.xlu0 %3221
        %3223 = vrot.lane.b32.xlu0 %v3213, 48
        %v3224 = vpop.permute.xlu0 %3223
        %3225 = vrot.lane.b32.xlu0 %v3214, 48
        %v3226 = vpop.permute.xlu0 %3225
        %v3227 = vrot.slane %v3220, 4
        %v3228 = vrot.slane %v3222, 4
        %v3229 = vrot.slane %v3224, 4
        %v3230 = vrot.slane %v3226, 4
        %v3231 = vsel %vm413, %v3227, %v3228
        %vm3232 = vcmask 392192
        %v3233 = vsel %vm3232, %v3220, %v3231
        %v3234 = vsel %vm3232, %v3222, %v3228
        %v3235 = vsel %vm413, %v3229, %v3230
        %v3236 = vsel %vm3232, %v3224, %v3235
        %v3237 = vsel %vm3232, %v3226, %v3230
        %3242 = vst [vmem:[#allocation3 + $0x1e0] sm:$0xff] %v3233
        %3243 = vst [vmem:[#allocation3 + $0x1e8] sm:$0xf] %v3234
        %3244 = vst [vmem:[#allocation3 + $0x1ec] sm:$0xff] %v3236
        %3245 = vst [vmem:[#allocation3 + $0x1f4] sm:$0xf] %v3237
        %v3246 = vld [vmem:[#allocation4] sm:$0xff]
        %v3247 = vld [vmem:[#allocation4 + $0x8] sm:$0xff]
        %v3248 = vld [vmem:[#allocation4 + $0x10] sm:$0xff]
        %v3249 = vld [vmem:[#allocation4 + $0x18] sm:$0xff]
        %3254 = vrot.lane.b32.xlu0 %v3246, 47
        %v3255 = vpop.permute.xlu0 %3254
        %3256 = vrot.lane.b32.xlu0 %v3247, 47
        %v3257 = vpop.permute.xlu0 %3256
        %3258 = vrot.lane.b32.xlu0 %v3248, 47
        %v3259 = vpop.permute.xlu0 %3258
        %3260 = vrot.lane.b32.xlu0 %v3249, 47
        %v3261 = vpop.permute.xlu0 %3260
        %v3262 = vrot.slane %v3255, 4
        %v3263 = vrot.slane %v3257, 4
        %v3264 = vrot.slane %v3259, 4
        %v3265 = vrot.slane %v3261, 4
        %v3266 = vsel %vm413, %v3262, %v3263
        %vm3267 = vcmask 384000
        %v3268 = vsel %vm3267, %v3255, %v3266
        %v3269 = vsel %vm3267, %v3257, %v3263
        %v3270 = vsel %vm413, %v3264, %v3265
        %v3271 = vsel %vm3267, %v3259, %v3270
        %v3272 = vsel %vm3267, %v3261, %v3265
        %3277 = vst [vmem:[#allocation3 + $0x1f8] sm:$0xff] %v3268
        %3278 = vst [vmem:[#allocation3 + $0x200] sm:$0xf] %v3269
        %3279 = vst [vmem:[#allocation3 + $0x204] sm:$0xff] %v3271
        %3280 = vst [vmem:[#allocation3 + $0x20c] sm:$0xf] %v3272
        %v3281 = vld [vmem:[#allocation4] sm:$0xff]
        %v3282 = vld [vmem:[#allocation4 + $0x8] sm:$0xff]
        %v3283 = vld [vmem:[#allocation4 + $0x10] sm:$0xff]
        %v3284 = vld [vmem:[#allocation4 + $0x18] sm:$0xff]
        %3289 = vrot.lane.b32.xlu0 %v3281, 46
        %v3290 = vpop.permute.xlu0 %3289
        %3291 = vrot.lane.b32.xlu0 %v3282, 46
        %v3292 = vpop.permute.xlu0 %3291
        %3293 = vrot.lane.b32.xlu0 %v3283, 46
        %v3294 = vpop.permute.xlu0 %3293
        %3295 = vrot.lane.b32.xlu0 %v3284, 46
        %v3296 = vpop.permute.xlu0 %3295
        %v3297 = vrot.slane %v3290, 4
        %v3298 = vrot.slane %v3292, 4
        %v3299 = vrot.slane %v3294, 4
        %v3300 = vrot.slane %v3296, 4
        %v3301 = vsel %vm413, %v3297, %v3298
        %vm3302 = vcmask 375808
        %v3303 = vsel %vm3302, %v3290, %v3301
        %v3304 = vsel %vm3302, %v3292, %v3298
        %v3305 = vsel %vm413, %v3299, %v3300
        %v3306 = vsel %vm3302, %v3294, %v3305
        %v3307 = vsel %vm3302, %v3296, %v3300
        %3312 = vst [vmem:[#allocation3 + $0x210] sm:$0xff] %v3303
        %3313 = vst [vmem:[#allocation3 + $0x218] sm:$0xf] %v3304
        %3314 = vst [vmem:[#allocation3 + $0x21c] sm:$0xff] %v3306
        %3315 = vst [vmem:[#allocation3 + $0x224] sm:$0xf] %v3307
        %v3316 = vld [vmem:[#allocation4] sm:$0xff]
        %v3317 = vld [vmem:[#allocation4 + $0x8] sm:$0xff]
        %v3318 = vld [vmem:[#allocation4 + $0x10] sm:$0xff]
        %v3319 = vld [vmem:[#allocation4 + $0x18] sm:$0xff]
        %3324 = vrot.lane.b32.xlu0 %v3316, 45
        %v3325 = vpop.permute.xlu0 %3324
        %3326 = vrot.lane.b32.xlu0 %v3317, 45
        %v3327 = vpop.permute.xlu0 %3326
        %3328 = vrot.lane.b32.xlu0 %v3318, 45
        %v3329 = vpop.permute.xlu0 %3328
        %3330 = vrot.lane.b32.xlu0 %v3319, 45
        %v3331 = vpop.permute.xlu0 %3330
        %v3332 = vrot.slane %v3325, 4
        %v3333 = vrot.slane %v3327, 4
        %v3334 = vrot.slane %v3329, 4
        %v3335 = vrot.slane %v3331, 4
        %v3336 = vsel %vm413, %v3332, %v3333
        %vm3337 = vcmask 367616
        %v3338 = vsel %vm3337, %v3325, %v3336
        %v3339 = vsel %vm3337, %v3327, %v3333
        %v3340 = vsel %vm413, %v3334, %v3335
        %v3341 = vsel %vm3337, %v3329, %v3340
        %v3342 = vsel %vm3337, %v3331, %v3335
        %3347 = vst [vmem:[#allocation3 + $0x228] sm:$0xff] %v3338
        %3348 = vst [vmem:[#allocation3 + $0x230] sm:$0xf] %v3339
        %3349 = vst [vmem:[#allocation3 + $0x234] sm:$0xff] %v3341
        %3350 = vst [vmem:[#allocation3 + $0x23c] sm:$0xf] %v3342
        %v3351 = vld [vmem:[#allocation4] sm:$0xff]
        %v3352 = vld [vmem:[#allocation4 + $0x8] sm:$0xff]
        %v3353 = vld [vmem:[#allocation4 + $0x10] sm:$0xff]
        %v3354 = vld [vmem:[#allocation4 + $0x18] sm:$0xff]
        %3359 = vrot.lane.b32.xlu0 %v3351, 44
        %v3360 = vpop.permute.xlu0 %3359
        %3361 = vrot.lane.b32.xlu0 %v3352, 44
        %v3362 = vpop.permute.xlu0 %3361
        %3363 = vrot.lane.b32.xlu0 %v3353, 44
        %v3364 = vpop.permute.xlu0 %3363
        %3365 = vrot.lane.b32.xlu0 %v3354, 44
        %v3366 = vpop.permute.xlu0 %3365
        %v3367 = vrot.slane %v3360, 4
        %v3368 = vrot.slane %v3362, 4
        %v3369 = vrot.slane %v3364, 4
        %v3370 = vrot.slane %v3366, 4
        %v3371 = vsel %vm413, %v3367, %v3368
        %vm3372 = vcmask 359424
        %v3373 = vsel %vm3372, %v3360, %v3371
        %v3374 = vsel %vm3372, %v3362, %v3368
        %v3375 = vsel %vm413, %v3369, %v3370
        %v3376 = vsel %vm3372, %v3364, %v3375
        %v3377 = vsel %vm3372, %v3366, %v3370
        %3382 = vst [vmem:[#allocation3 + $0x240] sm:$0xff] %v3373
        %3383 = vst [vmem:[#allocation3 + $0x248] sm:$0xf] %v3374
        %3384 = vst [vmem:[#allocation3 + $0x24c] sm:$0xff] %v3376
        %3385 = vst [vmem:[#allocation3 + $0x254] sm:$0xf] %v3377
        %v3386 = vld [vmem:[#allocation11] sm:$0xff]
        %v3387 = vld [vmem:[#allocation11 + $0x8] sm:$0xff]
        %v3388 = vld [vmem:[#allocation11 + $0x10] sm:$0xff]
        %v3389 = vld [vmem:[#allocation11 + $0x18] sm:$0xff]
        %v3390 = vld [vmem:[#allocation3] sm:$0xff]
        %v3391 = vld [vmem:[#allocation3 + $0x8] sm:$0xf]
        %v3392 = vld [vmem:[#allocation3 + $0xc] sm:$0xff]
        %v3393 = vld [vmem:[#allocation3 + $0x14] sm:$0xf]
        %v3394 = vld [vmem:[#allocation3 + $0x18] sm:$0xff]
        %v3395 = vld [vmem:[#allocation3 + $0x20] sm:$0xf]
        %v3396 = vld [vmem:[#allocation3 + $0x24] sm:$0xff]
        %v3397 = vld [vmem:[#allocation3 + $0x2c] sm:$0xf]
        %v3398 = vld [vmem:[#allocation3 + $0x30] sm:$0xff]
        %v3399 = vld [vmem:[#allocation3 + $0x38] sm:$0xf]
        %v3400 = vld [vmem:[#allocation3 + $0x3c] sm:$0xff]
        %v3401 = vld [vmem:[#allocation3 + $0x44] sm:$0xf]
        %v3402 = vld [vmem:[#allocation3 + $0x48] sm:$0xff]
        %v3403 = vld [vmem:[#allocation3 + $0x50] sm:$0xf]
        %v3404 = vld [vmem:[#allocation3 + $0x54] sm:$0xff]
        %v3405 = vld [vmem:[#allocation3 + $0x5c] sm:$0xf]
        %v3406 = vld [vmem:[#allocation3 + $0x60] sm:$0xff]
        %v3407 = vld [vmem:[#allocation3 + $0x68] sm:$0xf]
        %v3408 = vld [vmem:[#allocation3 + $0x6c] sm:$0xff]
        %v3409 = vld [vmem:[#allocation3 + $0x74] sm:$0xf]
        %v3410 = vld [vmem:[#allocation3 + $0x78] sm:$0xff]
        %v3411 = vld [vmem:[#allocation3 + $0x80] sm:$0xf]
        %v3412 = vld [vmem:[#allocation3 + $0x84] sm:$0xff]
        %v3413 = vld [vmem:[#allocation3 + $0x8c] sm:$0xf]
        %v3414 = vld [vmem:[#allocation3 + $0x90] sm:$0xff]
        %v3415 = vld [vmem:[#allocation3 + $0x98] sm:$0xf]
        %v3416 = vld [vmem:[#allocation3 + $0x9c] sm:$0xff]
        %v3417 = vld [vmem:[#allocation3 + $0xa4] sm:$0xf]
        %v3418 = vld [vmem:[#allocation3 + $0xa8] sm:$0xff]
        %v3419 = vld [vmem:[#allocation3 + $0xb0] sm:$0xf]
        %v3420 = vld [vmem:[#allocation3 + $0xb4] sm:$0xff]
        %v3421 = vld [vmem:[#allocation3 + $0xbc] sm:$0xf]
        %v3422 = vld [vmem:[#allocation3 + $0xc0] sm:$0xff]
        %v3423 = vld [vmem:[#allocation3 + $0xc8] sm:$0xf]
        %v3424 = vld [vmem:[#allocation3 + $0xcc] sm:$0xff]
        %v3425 = vld [vmem:[#allocation3 + $0xd4] sm:$0xf]
        %v3426 = vld [vmem:[#allocation3 + $0xd8] sm:$0xff]
        %v3427 = vld [vmem:[#allocation3 + $0xe0] sm:$0xf]
        %v3428 = vld [vmem:[#allocation3 + $0xe4] sm:$0xff]
        %v3429 = vld [vmem:[#allocation3 + $0xec] sm:$0xf]
        %v3430 = vld [vmem:[#allocation3 + $0xf0] sm:$0xff]
        %v3431 = vld [vmem:[#allocation3 + $0xf8] sm:$0xf]
        %v3432 = vld [vmem:[#allocation3 + $0xfc] sm:$0xff]
        %v3433 = vld [vmem:[#allocation3 + $0x104] sm:$0xf]
        %v3434 = vld [vmem:[#allocation3 + $0x108] sm:$0xff]
        %v3435 = vld [vmem:[#allocation3 + $0x110] sm:$0xf]
        %v3436 = vld [vmem:[#allocation3 + $0x114] sm:$0xff]
        %v3437 = vld [vmem:[#allocation3 + $0x11c] sm:$0xf]
        %v3438 = vld [vmem:[#allocation3 + $0x120] sm:$0xff]
        %v3439 = vld [vmem:[#allocation3 + $0x128] sm:$0xf]
        %v3440 = vld [vmem:[#allocation3 + $0x12c] sm:$0xff]
        %v3441 = vld [vmem:[#allocation3 + $0x134] sm:$0xf]
        %v3442 = vld [vmem:[#allocation3 + $0x138] sm:$0xff]
        %v3443 = vld [vmem:[#allocation3 + $0x140] sm:$0xf]
        %v3444 = vld [vmem:[#allocation3 + $0x144] sm:$0xff]
        %v3445 = vld [vmem:[#allocation3 + $0x14c] sm:$0xf]
        %v3446 = vld [vmem:[#allocation3 + $0x150] sm:$0xff]
        %v3447 = vld [vmem:[#allocation3 + $0x158] sm:$0xf]
        %v3448 = vld [vmem:[#allocation3 + $0x15c] sm:$0xff]
        %v3449 = vld [vmem:[#allocation3 + $0x164] sm:$0xf]
        %v3450 = vld [vmem:[#allocation3 + $0x168] sm:$0xff]
        %v3451 = vld [vmem:[#allocation3 + $0x170] sm:$0xf]
        %v3452 = vld [vmem:[#allocation3 + $0x174] sm:$0xff]
        %v3453 = vld [vmem:[#allocation3 + $0x17c] sm:$0xf]
        %v3454 = vld [vmem:[#allocation3 + $0x180] sm:$0xff]
        %v3455 = vld [vmem:[#allocation3 + $0x188] sm:$0xf]
        %v3456 = vld [vmem:[#allocation3 + $0x18c] sm:$0xff]
        %v3457 = vld [vmem:[#allocation3 + $0x194] sm:$0xf]
        %v3458 = vld [vmem:[#allocation3 + $0x198] sm:$0xff]
        %v3459 = vld [vmem:[#allocation3 + $0x1a0] sm:$0xf]
        %v3460 = vld [vmem:[#allocation3 + $0x1a4] sm:$0xff]
        %v3461 = vld [vmem:[#allocation3 + $0x1ac] sm:$0xf]
        %v3462 = vld [vmem:[#allocation3 + $0x1b0] sm:$0xff]
        %v3463 = vld [vmem:[#allocation3 + $0x1b8] sm:$0xf]
        %v3464 = vld [vmem:[#allocation3 + $0x1bc] sm:$0xff]
        %v3465 = vld [vmem:[#allocation3 + $0x1c4] sm:$0xf]
        %v3466 = vld [vmem:[#allocation3 + $0x1c8] sm:$0xff]
        %v3467 = vld [vmem:[#allocation3 + $0x1d0] sm:$0xf]
        %v3468 = vld [vmem:[#allocation3 + $0x1d4] sm:$0xff]
        %v3469 = vld [vmem:[#allocation3 + $0x1dc] sm:$0xf]
        %v3470 = vld [vmem:[#allocation3 + $0x1e0] sm:$0xff]
        %v3471 = vld [vmem:[#allocation3 + $0x1e8] sm:$0xf]
        %v3472 = vld [vmem:[#allocation3 + $0x1ec] sm:$0xff]
        %v3473 = vld [vmem:[#allocation3 + $0x1f4] sm:$0xf]
        %v3474 = vld [vmem:[#allocation3 + $0x1f8] sm:$0xff]
        %v3475 = vld [vmem:[#allocation3 + $0x200] sm:$0xf]
        %v3476 = vld [vmem:[#allocation3 + $0x204] sm:$0xff]
        %v3477 = vld [vmem:[#allocation3 + $0x20c] sm:$0xf]
        %v3478 = vld [vmem:[#allocation3 + $0x210] sm:$0xff]
        %v3479 = vld [vmem:[#allocation3 + $0x218] sm:$0xf]
        %v3480 = vld [vmem:[#allocation3 + $0x21c] sm:$0xff]
        %v3481 = vld [vmem:[#allocation3 + $0x224] sm:$0xf]
        %v3482 = vld [vmem:[#allocation3 + $0x228] sm:$0xff]
        %v3483 = vld [vmem:[#allocation3 + $0x230] sm:$0xf]
        %v3484 = vld [vmem:[#allocation3 + $0x234] sm:$0xff]
        %v3485 = vld [vmem:[#allocation3 + $0x23c] sm:$0xf]
        %v3486 = vld [vmem:[#allocation3 + $0x240] sm:$0xff]
        %v3487 = vld [vmem:[#allocation3 + $0x248] sm:$0xf]
        %v3488 = vld [vmem:[#allocation3 + $0x24c] sm:$0xff]
        %v3489 = vld [vmem:[#allocation3 + $0x254] sm:$0xf]
        %v3494 = vunpack.c.l.b16 %v3386
        %v3495 = vunpack.c.h.b16 %v3386
        %v3496 = vunpack.c.l.b16 %v3387
        %v3497 = vunpack.c.h.b16 %v3387
        %v3498 = vunpack.c.l.b16 %v3388
        %v3499 = vunpack.c.h.b16 %v3388
        %v3500 = vunpack.c.l.b16 %v3389
        %v3501 = vunpack.c.h.b16 %v3389
        %v3502 = vpack.c.b16 %v3498, %v3494
        %v3503 = vpack.c.b16 %v3499, %v3495
        %v3504 = vpack.c.b16 %v3500, %v3496
        %v3505 = vpack.c.b16 %v3501, %v3497
        %v3609 = vunpack.c.l.b16 %v3390
        %v3610 = vunpack.c.h.b16 %v3390
        %v3611 = vunpack.c.l.b16 %v3391
        %v3612 = vunpack.c.l.b16 %v3392
        %v3613 = vunpack.c.h.b16 %v3392
        %v3614 = vunpack.c.l.b16 %v3393
        %v3615 = vunpack.c.l.b16 %v3394
        %v3616 = vunpack.c.h.b16 %v3394
        %v3617 = vunpack.c.l.b16 %v3395
        %v3618 = vunpack.c.l.b16 %v3396
        %v3619 = vunpack.c.h.b16 %v3396
        %v3620 = vunpack.c.l.b16 %v3397
        %v3621 = vunpack.c.l.b16 %v3398
        %v3622 = vunpack.c.h.b16 %v3398
        %v3623 = vunpack.c.l.b16 %v3399
        %v3624 = vunpack.c.l.b16 %v3400
        %v3625 = vunpack.c.h.b16 %v3400
        %v3626 = vunpack.c.l.b16 %v3401
        %v3627 = vunpack.c.l.b16 %v3402
        %v3628 = vunpack.c.h.b16 %v3402
        %v3629 = vunpack.c.l.b16 %v3403
        %v3630 = vunpack.c.l.b16 %v3404
        %v3631 = vunpack.c.h.b16 %v3404
        %v3632 = vunpack.c.l.b16 %v3405
        %v3633 = vunpack.c.l.b16 %v3406
        %v3634 = vunpack.c.h.b16 %v3406
        %v3635 = vunpack.c.l.b16 %v3407
        %v3636 = vunpack.c.l.b16 %v3408
        %v3637 = vunpack.c.h.b16 %v3408
        %v3638 = vunpack.c.l.b16 %v3409
        %v3639 = vunpack.c.l.b16 %v3410
        %v3640 = vunpack.c.h.b16 %v3410
        %v3641 = vunpack.c.l.b16 %v3411
        %v3642 = vunpack.c.l.b16 %v3412
        %v3643 = vunpack.c.h.b16 %v3412
        %v3644 = vunpack.c.l.b16 %v3413
        %v3645 = vunpack.c.l.b16 %v3414
        %v3646 = vunpack.c.h.b16 %v3414
        %v3647 = vunpack.c.l.b16 %v3415
        %v3648 = vunpack.c.l.b16 %v3416
        %v3649 = vunpack.c.h.b16 %v3416
        %v3650 = vunpack.c.l.b16 %v3417
        %v3651 = vunpack.c.l.b16 %v3418
        %v3652 = vunpack.c.h.b16 %v3418
        %v3653 = vunpack.c.l.b16 %v3419
        %v3654 = vunpack.c.l.b16 %v3420
        %v3655 = vunpack.c.h.b16 %v3420
        %v3656 = vunpack.c.l.b16 %v3421
        %v3657 = vunpack.c.l.b16 %v3422
        %v3658 = vunpack.c.h.b16 %v3422
        %v3659 = vunpack.c.l.b16 %v3423
        %v3660 = vunpack.c.l.b16 %v3424
        %v3661 = vunpack.c.h.b16 %v3424
        %v3662 = vunpack.c.l.b16 %v3425
        %v3663 = vunpack.c.l.b16 %v3426
        %v3664 = vunpack.c.h.b16 %v3426
        %v3665 = vunpack.c.l.b16 %v3427
        %v3666 = vunpack.c.l.b16 %v3428
        %v3667 = vunpack.c.h.b16 %v3428
        %v3668 = vunpack.c.l.b16 %v3429
        %v3669 = vunpack.c.l.b16 %v3430
        %v3670 = vunpack.c.h.b16 %v3430
        %v3671 = vunpack.c.l.b16 %v3431
        %v3672 = vunpack.c.l.b16 %v3432
        %v3673 = vunpack.c.h.b16 %v3432
        %v3674 = vunpack.c.l.b16 %v3433
        %v3675 = vunpack.c.l.b16 %v3434
        %v3676 = vunpack.c.h.b16 %v3434
        %v3677 = vunpack.c.l.b16 %v3435
        %v3678 = vunpack.c.l.b16 %v3436
        %v3679 = vunpack.c.h.b16 %v3436
        %v3680 = vunpack.c.l.b16 %v3437
        %v3681 = vunpack.c.l.b16 %v3438
        %v3682 = vunpack.c.h.b16 %v3438
        %v3683 = vunpack.c.l.b16 %v3439
        %v3684 = vunpack.c.l.b16 %v3440
        %v3685 = vunpack.c.h.b16 %v3440
        %v3686 = vunpack.c.l.b16 %v3441
        %v3687 = vunpack.c.l.b16 %v3442
        %v3688 = vunpack.c.h.b16 %v3442
        %v3689 = vunpack.c.l.b16 %v3443
        %v3690 = vunpack.c.l.b16 %v3444
        %v3691 = vunpack.c.h.b16 %v3444
        %v3692 = vunpack.c.l.b16 %v3445
        %v3693 = vunpack.c.l.b16 %v3446
        %v3694 = vunpack.c.h.b16 %v3446
        %v3695 = vunpack.c.l.b16 %v3447
        %v3696 = vunpack.c.l.b16 %v3448
        %v3697 = vunpack.c.h.b16 %v3448
        %v3698 = vunpack.c.l.b16 %v3449
        %v3699 = vunpack.c.l.b16 %v3450
        %v3700 = vunpack.c.h.b16 %v3450
        %v3701 = vunpack.c.l.b16 %v3451
        %v3702 = vunpack.c.l.b16 %v3452
        %v3703 = vunpack.c.h.b16 %v3452
        %v3704 = vunpack.c.l.b16 %v3453
        %v3705 = vunpack.c.l.b16 %v3454
        %v3706 = vunpack.c.h.b16 %v3454
        %v3707 = vunpack.c.l.b16 %v3455
        %v3708 = vunpack.c.l.b16 %v3456
        %v3709 = vunpack.c.h.b16 %v3456
        %v3710 = vunpack.c.l.b16 %v3457
        %v3711 = vunpack.c.l.b16 %v3458
        %v3712 = vunpack.c.h.b16 %v3458
        %v3713 = vunpack.c.l.b16 %v3459
        %v3714 = vunpack.c.l.b16 %v3460
        %v3715 = vunpack.c.h.b16 %v3460
        %v3716 = vunpack.c.l.b16 %v3461
        %v3717 = vunpack.c.l.b16 %v3462
        %v3718 = vunpack.c.h.b16 %v3462
        %v3719 = vunpack.c.l.b16 %v3463
        %v3720 = vunpack.c.l.b16 %v3464
        %v3721 = vunpack.c.h.b16 %v3464
        %v3722 = vunpack.c.l.b16 %v3465
        %v3723 = vunpack.c.l.b16 %v3466
        %v3724 = vunpack.c.h.b16 %v3466
        %v3725 = vunpack.c.l.b16 %v3467
        %v3726 = vunpack.c.l.b16 %v3468
        %v3727 = vunpack.c.h.b16 %v3468
        %v3728 = vunpack.c.l.b16 %v3469
        %v3729 = vunpack.c.l.b16 %v3470
        %v3730 = vunpack.c.h.b16 %v3470
        %v3731 = vunpack.c.l.b16 %v3471
        %v3732 = vunpack.c.l.b16 %v3472
        %v3733 = vunpack.c.h.b16 %v3472
        %v3734 = vunpack.c.l.b16 %v3473
        %v3735 = vunpack.c.l.b16 %v3474
        %v3736 = vunpack.c.h.b16 %v3474
        %v3737 = vunpack.c.l.b16 %v3475
        %v3738 = vunpack.c.l.b16 %v3476
        %v3739 = vunpack.c.h.b16 %v3476
        %v3740 = vunpack.c.l.b16 %v3477
        %v3741 = vunpack.c.l.b16 %v3478
        %v3742 = vunpack.c.h.b16 %v3478
        %v3743 = vunpack.c.l.b16 %v3479
        %v3744 = vunpack.c.l.b16 %v3480
        %v3745 = vunpack.c.h.b16 %v3480
        %v3746 = vunpack.c.l.b16 %v3481
        %v3747 = vunpack.c.l.b16 %v3482
        %v3748 = vunpack.c.h.b16 %v3482
        %v3749 = vunpack.c.l.b16 %v3483
        %v3750 = vunpack.c.l.b16 %v3484
        %v3751 = vunpack.c.h.b16 %v3484
        %v3752 = vunpack.c.l.b16 %v3485
        %v3753 = vunpack.c.l.b16 %v3486
        %v3754 = vunpack.c.h.b16 %v3486
        %v3755 = vunpack.c.l.b16 %v3487
        %v3756 = vunpack.c.l.b16 %v3488
        %v3757 = vunpack.c.h.b16 %v3488
        %v3758 = vunpack.c.l.b16 %v3489
        %v3759 = vpack.c.b16 %v3612, %v3609
        %v3760 = vpack.c.b16 %v3613, %v3610
        %v3761 = vpack.c.b16 %v3614, %v3611
        %v3762 = vpack.c.b16 %v3618, %v3615
        %v3763 = vpack.c.b16 %v3619, %v3616
        %v3764 = vpack.c.b16 %v3620, %v3617
        %v3765 = vpack.c.b16 %v3624, %v3621
        %v3766 = vpack.c.b16 %v3625, %v3622
        %v3767 = vpack.c.b16 %v3626, %v3623
        %v3768 = vpack.c.b16 %v3630, %v3627
        %v3769 = vpack.c.b16 %v3631, %v3628
        %v3770 = vpack.c.b16 %v3632, %v3629
        %v3771 = vpack.c.b16 %v3636, %v3633
        %v3772 = vpack.c.b16 %v3637, %v3634
        %v3773 = vpack.c.b16 %v3638, %v3635
        %v3774 = vpack.c.b16 %v3642, %v3639
        %v3775 = vpack.c.b16 %v3643, %v3640
        %v3776 = vpack.c.b16 %v3644, %v3641
        %v3777 = vpack.c.b16 %v3648, %v3645
        %v3778 = vpack.c.b16 %v3649, %v3646
        %v3779 = vpack.c.b16 %v3650, %v3647
        %v3780 = vpack.c.b16 %v3654, %v3651
        %v3781 = vpack.c.b16 %v3655, %v3652
        %v3782 = vpack.c.b16 %v3656, %v3653
        %v3783 = vpack.c.b16 %v3660, %v3657
        %v3784 = vpack.c.b16 %v3661, %v3658
        %v3785 = vpack.c.b16 %v3662, %v3659
        %v3786 = vpack.c.b16 %v3666, %v3663
        %v3787 = vpack.c.b16 %v3667, %v3664
        %v3788 = vpack.c.b16 %v3668, %v3665
        %v3789 = vpack.c.b16 %v3672, %v3669
        %v3790 = vpack.c.b16 %v3673, %v3670
        %v3791 = vpack.c.b16 %v3674, %v3671
        %v3792 = vpack.c.b16 %v3678, %v3675
        %v3793 = vpack.c.b16 %v3679, %v3676
        %v3794 = vpack.c.b16 %v3680, %v3677
        %v3795 = vpack.c.b16 %v3684, %v3681
        %v3796 = vpack.c.b16 %v3685, %v3682
        %v3797 = vpack.c.b16 %v3686, %v3683
        %v3798 = vpack.c.b16 %v3690, %v3687
        %v3799 = vpack.c.b16 %v3691, %v3688
        %v3800 = vpack.c.b16 %v3692, %v3689
        %v3801 = vpack.c.b16 %v3696, %v3693
        %v3802 = vpack.c.b16 %v3697, %v3694
        %v3803 = vpack.c.b16 %v3698, %v3695
        %v3804 = vpack.c.b16 %v3702, %v3699
        %v3805 = vpack.c.b16 %v3703, %v3700
        %v3806 = vpack.c.b16 %v3704, %v3701
        %v3807 = vpack.c.b16 %v3708, %v3705
        %v3808 = vpack.c.b16 %v3709, %v3706
        %v3809 = vpack.c.b16 %v3710, %v3707
        %v3810 = vpack.c.b16 %v3714, %v3711
        %v3811 = vpack.c.b16 %v3715, %v3712
        %v3812 = vpack.c.b16 %v3716, %v3713
        %v3813 = vpack.c.b16 %v3720, %v3717
        %v3814 = vpack.c.b16 %v3721, %v3718
        %v3815 = vpack.c.b16 %v3722, %v3719
        %v3816 = vpack.c.b16 %v3726, %v3723
        %v3817 = vpack.c.b16 %v3727, %v3724
        %v3818 = vpack.c.b16 %v3728, %v3725
        %v3819 = vpack.c.b16 %v3732, %v3729
        %v3820 = vpack.c.b16 %v3733, %v3730
        %v3821 = vpack.c.b16 %v3734, %v3731
        %v3822 = vpack.c.b16 %v3738, %v3735
        %v3823 = vpack.c.b16 %v3739, %v3736
        %v3824 = vpack.c.b16 %v3740, %v3737
        %v3825 = vpack.c.b16 %v3744, %v3741
        %v3826 = vpack.c.b16 %v3745, %v3742
        %v3827 = vpack.c.b16 %v3746, %v3743
        %v3828 = vpack.c.b16 %v3750, %v3747
        %v3829 = vpack.c.b16 %v3751, %v3748
        %v3830 = vpack.c.b16 %v3752, %v3749
        %v3831 = vpack.c.b16 %v3756, %v3753
        %v3832 = vpack.c.b16 %v3757, %v3754
        %v3833 = vpack.c.b16 %v3758, %v3755
        %v3910 = vsel %vm2182, %v3505, 0
        %3912 = vmatpush.bf16.msra.mxu0 %v3780
        %3913 = vmatpush.bf16.msra.mxu0 %v3777
        %3914 = vmatpush.bf16.msra.mxu0 %v3774
        %3915 = vmatpush.bf16.msra.mxu0 %v3771
        %3916 = vmatpush.bf16.msra.mxu0 %v3768
        %3917 = vmatpush.bf16.msra.mxu0 %v3765
        %3918 = vmatpush.bf16.msra.mxu0 %v3762
        %3919 = vmatpush.bf16.msra.mxu0 %v3759
        %3920 = vmatmul.bf16.gmra.mxu0 %v3502
        %v3921 = vpop.f32.mrf.mxu0
        %v3922 = vadd.f32 0.0, %v3921
        %v3923 = vpop.f32.mrf.mxu0
        %v3924 = vadd.f32 0.0, %v3923
        %3925 = vdwg.mxu0
        %3926 = vmatpush.bf16.msra.mxu0 %v3804
        %3927 = vmatpush.bf16.msra.mxu0 %v3801
        %3928 = vmatpush.bf16.msra.mxu0 %v3798
        %3929 = vmatpush.bf16.msra.mxu0 %v3795
        %3930 = vmatpush.bf16.msra.mxu0 %v3792
        %3931 = vmatpush.bf16.msra.mxu0 %v3789
        %3932 = vmatpush.bf16.msra.mxu0 %v3786
        %3933 = vmatpush.bf16.msra.mxu0 %v3783
        %3934 = vmatmul.bf16.gmra.mxu0 %v3503
        %v3935 = vpop.f32.mrf.mxu0
        %v3936 = vadd.f32 %v3922, %v3935
        %v3937 = vpop.f32.mrf.mxu0
        %v3938 = vadd.f32 %v3924, %v3937
        %3939 = vdwg.mxu0
        %3940 = vmatpush.bf16.msra.mxu0 %v3828
        %3941 = vmatpush.bf16.msra.mxu0 %v3825
        %3942 = vmatpush.bf16.msra.mxu0 %v3822
        %3943 = vmatpush.bf16.msra.mxu0 %v3819
        %3944 = vmatpush.bf16.msra.mxu0 %v3816
        %3945 = vmatpush.bf16.msra.mxu0 %v3813
        %3946 = vmatpush.bf16.msra.mxu0 %v3810
        %3947 = vmatpush.bf16.msra.mxu0 %v3807
        %3948 = vmatmul.bf16.gmra.mxu0 %v3504
        %v3949 = vpop.f32.mrf.mxu0
        %v3950 = vadd.f32 %v3936, %v3949
        %v3951 = vpop.f32.mrf.mxu0
        %v3952 = vadd.f32 %v3938, %v3951
        %3953 = vdwg.mxu0
        %3954 = vmatpush.bf16.msra.mxu0 0
        %3955 = vmatpush.bf16.msra.mxu0 0
        %3956 = vmatpush.bf16.msra.mxu0 0
        %3957 = vmatpush.bf16.msra.mxu0 0
        %3958 = vmatpush.bf16.msra.mxu0 0
        %3959 = vmatpush.bf16.msra.mxu0 0
        %3960 = vmatpush.bf16.msra.mxu0 0
        %3961 = vmatpush.bf16.msra.mxu0 %v3831
        %3962 = vmatmul.bf16.gmra.mxu0 %v3910
        %v3963 = vpop.f32.mrf.mxu0
        %v3964 = vadd.f32 %v3950, %v3963
        %v3965 = vpop.f32.mrf.mxu0
        %v3966 = vadd.f32 %v3952, %v3965
        %3967 = vdwg.mxu0
        %3968 = vmatpush.bf16.msra.mxu0 %v3781
        %3969 = vmatpush.bf16.msra.mxu0 %v3778
        %3970 = vmatpush.bf16.msra.mxu0 %v3775
        %3971 = vmatpush.bf16.msra.mxu0 %v3772
        %3972 = vmatpush.bf16.msra.mxu0 %v3769
        %3973 = vmatpush.bf16.msra.mxu0 %v3766
        %3974 = vmatpush.bf16.msra.mxu0 %v3763
        %3975 = vmatpush.bf16.msra.mxu0 %v3760
        %3976 = vmatmul.bf16.gmra.mxu0 %v3502
        %v3977 = vpop.f32.mrf.mxu0
        %v3978 = vadd.f32 0.0, %v3977
        %v3979 = vpop.f32.mrf.mxu0
        %v3980 = vadd.f32 0.0, %v3979
        %3981 = vdwg.mxu0
        %3982 = vmatpush.bf16.msra.mxu0 %v3805
        %3983 = vmatpush.bf16.msra.mxu0 %v3802
        %3984 = vmatpush.bf16.msra.mxu0 %v3799
        %3985 = vmatpush.bf16.msra.mxu0 %v3796
        %3986 = vmatpush.bf16.msra.mxu0 %v3793
        %3987 = vmatpush.bf16.msra.mxu0 %v3790
        %3988 = vmatpush.bf16.msra.mxu0 %v3787
        %3989 = vmatpush.bf16.msra.mxu0 %v3784
        %3990 = vmatmul.bf16.gmra.mxu0 %v3503
        %v3991 = vpop.f32.mrf.mxu0
        %v3992 = vadd.f32 %v3978, %v3991
        %v3993 = vpop.f32.mrf.mxu0
        %v3994 = vadd.f32 %v3980, %v3993
        %3995 = vdwg.mxu0
        %3996 = vmatpush.bf16.msra.mxu0 %v3829
        %3997 = vmatpush.bf16.msra.mxu0 %v3826
        %3998 = vmatpush.bf16.msra.mxu0 %v3823
        %3999 = vmatpush.bf16.msra.mxu0 %v3820
        %4000 = vmatpush.bf16.msra.mxu0 %v3817
        %4001 = vmatpush.bf16.msra.mxu0 %v3814
        %4002 = vmatpush.bf16.msra.mxu0 %v3811
        %4003 = vmatpush.bf16.msra.mxu0 %v3808
        %4004 = vmatmul.bf16.gmra.mxu0 %v3504
        %v4005 = vpop.f32.mrf.mxu0
        %v4006 = vadd.f32 %v3992, %v4005
        %v4007 = vpop.f32.mrf.mxu0
        %v4008 = vadd.f32 %v3994, %v4007
        %4009 = vdwg.mxu0
        %4010 = vmatpush.bf16.msra.mxu0 0
        %4011 = vmatpush.bf16.msra.mxu0 0
        %4012 = vmatpush.bf16.msra.mxu0 0
        %4013 = vmatpush.bf16.msra.mxu0 0
        %4014 = vmatpush.bf16.msra.mxu0 0
        %4015 = vmatpush.bf16.msra.mxu0 0
        %4016 = vmatpush.bf16.msra.mxu0 0
        %4017 = vmatpush.bf16.msra.mxu0 %v3832
        %4018 = vmatmul.bf16.gmra.mxu0 %v3910
        %v4019 = vpop.f32.mrf.mxu0
        %v4020 = vadd.f32 %v4006, %v4019
        %v4021 = vpop.f32.mrf.mxu0
        %v4022 = vadd.f32 %v4008, %v4021
        %4023 = vdwg.mxu0
        %4024 = vmatpush.bf16.msra.mxu0 %v3782
        %4025 = vmatpush.bf16.msra.mxu0 %v3779
        %4026 = vmatpush.bf16.msra.mxu0 %v3776
        %4027 = vmatpush.bf16.msra.mxu0 %v3773
        %4028 = vmatpush.bf16.msra.mxu0 %v3770
        %4029 = vmatpush.bf16.msra.mxu0 %v3767
        %4030 = vmatpush.bf16.msra.mxu0 %v3764
        %4031 = vmatpush.bf16.msra.mxu0 %v3761
        %4032 = vmatmul.bf16.gmra.mxu0 %v3502
        %v4033 = vpop.f32.mrf.mxu0
        %v4034 = vadd.f32 0.0, %v4033
        %v4035 = vpop.f32.mrf.mxu0
        %v4036 = vadd.f32 0.0, %v4035
        %4037 = vdwg.mxu0
        %4038 = vmatpush.bf16.msra.mxu0 %v3806
        %4039 = vmatpush.bf16.msra.mxu0 %v3803
        %4040 = vmatpush.bf16.msra.mxu0 %v3800
        %4041 = vmatpush.bf16.msra.mxu0 %v3797
        %4042 = vmatpush.bf16.msra.mxu0 %v3794
        %4043 = vmatpush.bf16.msra.mxu0 %v3791
        %4044 = vmatpush.bf16.msra.mxu0 %v3788
        %4045 = vmatpush.bf16.msra.mxu0 %v3785
        %4046 = vmatmul.bf16.gmra.mxu0 %v3503
        %v4047 = vpop.f32.mrf.mxu0
        %v4048 = vadd.f32 %v4034, %v4047
        %v4049 = vpop.f32.mrf.mxu0
        %v4050 = vadd.f32 %v4036, %v4049
        %4051 = vdwg.mxu0
        %4052 = vmatpush.bf16.msra.mxu0 %v3830
        %4053 = vmatpush.bf16.msra.mxu0 %v3827
        %4054 = vmatpush.bf16.msra.mxu0 %v3824
        %4055 = vmatpush.bf16.msra.mxu0 %v3821
        %4056 = vmatpush.bf16.msra.mxu0 %v3818
        %4057 = vmatpush.bf16.msra.mxu0 %v3815
        %4058 = vmatpush.bf16.msra.mxu0 %v3812
        %4059 = vmatpush.bf16.msra.mxu0 %v3809
        %4060 = vmatmul.bf16.gmra.mxu0 %v3504
        %v4061 = vpop.f32.mrf.mxu0
        %v4062 = vadd.f32 %v4048, %v4061
        %v4063 = vpop.f32.mrf.mxu0
        %v4064 = vadd.f32 %v4050, %v4063
        %4065 = vdwg.mxu0
        %4066 = vmatpush.bf16.msra.mxu0 0
        %4067 = vmatpush.bf16.msra.mxu0 0
        %4068 = vmatpush.bf16.msra.mxu0 0
        %4069 = vmatpush.bf16.msra.mxu0 0
        %4070 = vmatpush.bf16.msra.mxu0 0
        %4071 = vmatpush.bf16.msra.mxu0 0
        %4072 = vmatpush.bf16.msra.mxu0 0
        %4073 = vmatpush.bf16.msra.mxu0 %v3833
        %4074 = vmatmul.bf16.gmra.mxu0 %v3910
        %v4075 = vpop.f32.mrf.mxu0
        %v4076 = vadd.f32 %v4062, %v4075
        %v4077 = vpop.f32.mrf.mxu0
        %v4078 = vadd.f32 %v4064, %v4077
        %4079 = vdwg.mxu0
        %v4081 = vperm.slane %v382, 0
        %v4082 = vperm.slane %v382, 1
        %v4083 = vperm.slane %v382, 2
        %v4087 = vmul.f32 %v3964, %v4081
        %v4088 = vmul.f32 %v4020, %v4082
        %v4089 = vmul.f32 %v4076, %v4083
        %v4090 = vmul.f32 %v3966, %v4081
        %v4091 = vmul.f32 %v4022, %v4082
        %v4092 = vmul.f32 %v4078, %v4083
        %v4093 = vadd.f32 %v4087, %v4088
        %v4094 = vadd.f32 %v4093, %v4089
        %4095 = vadd.xlane.f32.xlu0 %v4094
        %v4096 = vpop.xlane.xlu0 %4095
        %v4097 = vadd.f32 %v4090, %v4091
        %v4098 = vadd.f32 %v4097, %v4092
        %4099 = vadd.xlane.f32.xlu0 %v4098
        %v4100 = vpop.xlane.xlu0 %4099
        %v4101 = vmul.f32 %v4096, 0.00390625
        %v4102 = vmul.f32 %v4100, 0.00390625
        %v4103 = vsub.f32 %v4087, %v4101
        %v4104 = vsub.f32 %v4088, %v4101
        %v4105 = vsub.f32 %v4089, %v4101
        %v4106 = vsub.f32 %v4090, %v4102
        %v4107 = vsub.f32 %v4091, %v4102
        %v4108 = vsub.f32 %v4092, %v4102
        %v4109 = vmul.f32 %v4103, %v4081
        %v4110 = vmul.f32 %v4104, %v4082
        %v4111 = vmul.f32 %v4105, %v4083
        %v4112 = vmul.f32 %v4106, %v4081
        %v4113 = vmul.f32 %v4107, %v4082
        %v4114 = vmul.f32 %v4108, %v4083
        %v4115 = vmul.f32 %v4109, %v4109
        %v4116 = vmul.f32 %v4110, %v4110
        %v4117 = vmul.f32 %v4111, %v4111
        %v4118 = vmul.f32 %v4112, %v4112
        %v4119 = vmul.f32 %v4113, %v4113
        %v4120 = vmul.f32 %v4114, %v4114
        %v4121 = vadd.f32 %v4115, %v4116
        %v4122 = vadd.f32 %v4121, %v4117
        %4123 = vadd.xlane.f32.xlu0 %v4122
        %v4124 = vpop.xlane.xlu0 %4123
        %v4125 = vadd.f32 %v4118, %v4119
        %v4126 = vadd.f32 %v4125, %v4120
        %4127 = vadd.xlane.f32.xlu0 %v4126
        %v4128 = vpop.xlane.xlu0 %4127
        %v4129 = vmul.f32 %v4124, 0.00390625
        %v4130 = vmul.f32 %v4128, 0.00390625
        %v4131 = vadd.f32 %v4129, 1e-05
        %v4132 = vadd.f32 %v4130, 1e-05
        %v4133 = vrsqrt.pop %v4131
        %v4134 = vmul.f32 %v4133, %v4131
        %v4135 = vmul.f32 %v4134, %v4133
        %v4136 = vmul.f32 0.5, %v4135
        %v4137 = vsub.f32 1.5, %v4136
        %v4138 = vmul.f32 %v4133, %v4137
        %vm4139 = vweird.f32 %v4131
        %vm4140 = vweird.f32 %v4133
        %vm4141 = vmor %vm4139, %vm4140
        %v4142 = vsel %vm4141, %v4133, %v4138
        %v4143 = vrsqrt.pop %v4132
        %v4144 = vmul.f32 %v4143, %v4132
        %v4145 = vmul.f32 %v4144, %v4143
        %v4146 = vmul.f32 0.5, %v4145
        %v4147 = vsub.f32 1.5, %v4146
        %v4148 = vmul.f32 %v4143, %v4147
        %vm4149 = vweird.f32 %v4132
        %vm4150 = vweird.f32 %v4143
        %vm4151 = vmor %vm4149, %vm4150
        %v4152 = vsel %vm4151, %v4143, %v4148
        %v4153 = vmul.f32 %v4109, %v4142
        %v4154 = vmul.f32 %v4110, %v4142
        %v4155 = vmul.f32 %v4111, %v4142
        %v4156 = vmul.f32 %v4112, %v4152
        %v4157 = vmul.f32 %v4113, %v4152
        %v4158 = vmul.f32 %v4114, %v4152
        %vm4159 = vcmp.ge.f32.partialorder %v4153, 0.0
        %vm4160 = vcmp.ge.f32.partialorder %v4154, 0.0
        %vm4161 = vcmp.ge.f32.partialorder %v4155, 0.0
        %vm4162 = vcmp.ge.f32.partialorder %v4156, 0.0
        %vm4163 = vcmp.ge.f32.partialorder %v4157, 0.0
        %vm4164 = vcmp.ge.f32.partialorder %v4158, 0.0
        %v4165 = vstv %s379
        %v4166 = vmul.f32 %v4165, %v4153
        %v4167 = vmul.f32 %v4165, %v4154
        %v4168 = vmul.f32 %v4165, %v4155
        %v4169 = vmul.f32 %v4165, %v4156
        %v4170 = vmul.f32 %v4165, %v4157
        %v4171 = vmul.f32 %v4165, %v4158
        %v4172 = vsel %vm4159, %v4153, %v4166
        %v4173 = vsel %vm4160, %v4154, %v4167
        %v4174 = vsel %vm4161, %v4155, %v4168
        %v4175 = vsel %vm4162, %v4156, %v4169
        %v4176 = vsel %vm4163, %v4157, %v4170
        %v4177 = vsel %vm4164, %v4158, %v4171
        %v4178 = vld [vmem:[%s319] sm:$0xff]
        %v4179 = vld [vmem:[%s319 + $0x8] sm:$0xff]
        %v4180 = vld [vmem:[%s319 + $0x14] sm:$0xff]
        %v4181 = vld [vmem:[%s319 + $0x1c] sm:$0xff]
        %v4182 = vld [vmem:[#allocation12] sm:$0xf]
        %v4183 = vld [vmem:[#allocation12 + $0x4] sm:$0xf]
        %v4186 = vunpack.c.l.b16 %v4182
        %v4187 = vunpack.c.l.b16 %v4183
        %v4188 = vpack.c.b16 %v4187, %v4186
        %v4193 = vunpack.c.l.b16 %v4178
        %v4194 = vunpack.c.h.b16 %v4178
        %v4195 = vunpack.c.l.b16 %v4179
        %v4196 = vunpack.c.h.b16 %v4179
        %v4197 = vunpack.c.l.b16 %v4180
        %v4198 = vunpack.c.h.b16 %v4180
        %v4199 = vunpack.c.l.b16 %v4181
        %v4200 = vunpack.c.h.b16 %v4181
        %v4201 = vpack.c.b16 %v4197, %v4193
        %v4202 = vpack.c.b16 %v4198, %v4194
        %v4203 = vpack.c.b16 %v4199, %v4195
        %v4204 = vpack.c.b16 %v4200, %v4196
        %4205 = vrot.lane.b32.xlu0 %v4201, 38
        %v4206 = vpop.permute.xlu0 %4205
        %4207 = vrot.lane.b32.xlu0 %v4202, 38
        %v4208 = vpop.permute.xlu0 %4207
        %4209 = vrot.lane.b32.xlu0 %v4203, 38
        %v4210 = vpop.permute.xlu0 %4209
        %4211 = vrot.lane.b32.xlu0 %v4204, 38
        %v4212 = vpop.permute.xlu0 %4211
        %v4213 = vsel %vm1543, %v4206, %v4208
        %v4214 = vsel %vm1543, %v4208, %v4210
        %v4215 = vsel %vm1543, %v4210, %v4212
        %v4220 = vsel %vm2182, %v4188, 0
        %4222 = vmatpush.bf16.msra.mxu0 0
        %4223 = vmatpush.bf16.msra.mxu0 0
        %4224 = vmatpush.bf16.msra.mxu0 0
        %4225 = vmatpush.bf16.msra.mxu0 0
        %4226 = vmatpush.bf16.msra.mxu0 0
        %4227 = vmatpush.bf16.msra.mxu0 0
        %4228 = vmatpush.bf16.msra.mxu0 0
        %4229 = vmatpush.bf16.msra.mxu0 %v4213
        %4230 = vmatmul.bf16.gmra.mxu0 %v4220
        %v4231 = vpop.f32.mrf.mxu0
        %v4232 = vadd.f32 0.0, %v4231
        %v4233 = vpop.f32.mrf.mxu0
        %v4234 = vadd.f32 0.0, %v4233
        %4235 = vdwg.mxu0
        %4236 = vmatpush.bf16.msra.mxu0 0
        %4237 = vmatpush.bf16.msra.mxu0 0
        %4238 = vmatpush.bf16.msra.mxu0 0
        %4239 = vmatpush.bf16.msra.mxu0 0
        %4240 = vmatpush.bf16.msra.mxu0 0
        %4241 = vmatpush.bf16.msra.mxu0 0
        %4242 = vmatpush.bf16.msra.mxu0 0
        %4243 = vmatpush.bf16.msra.mxu0 %v4214
        %4244 = vmatmul.bf16.gmra.mxu0 %v4220
        %v4245 = vpop.f32.mrf.mxu0
        %v4246 = vadd.f32 0.0, %v4245
        %v4247 = vpop.f32.mrf.mxu0
        %v4248 = vadd.f32 0.0, %v4247
        %4249 = vdwg.mxu0
        %4250 = vmatpush.bf16.msra.mxu0 0
        %4251 = vmatpush.bf16.msra.mxu0 0
        %4252 = vmatpush.bf16.msra.mxu0 0
        %4253 = vmatpush.bf16.msra.mxu0 0
        %4254 = vmatpush.bf16.msra.mxu0 0
        %4255 = vmatpush.bf16.msra.mxu0 0
        %4256 = vmatpush.bf16.msra.mxu0 0
        %4257 = vmatpush.bf16.msra.mxu0 %v4215
        %4258 = vmatmul.bf16.gmra.mxu0 %v4220
        %v4259 = vpop.f32.mrf.mxu0
        %v4260 = vadd.f32 0.0, %v4259
        %v4261 = vpop.f32.mrf.mxu0
        %v4262 = vadd.f32 0.0, %v4261
        %4263 = vdwg.mxu0
        %v4264 = vmul.f32 %v4232, %v4081
        %v4265 = vmul.f32 %v4246, %v4082
        %v4266 = vmul.f32 %v4260, %v4083
        %v4267 = vmul.f32 %v4234, %v4081
        %v4268 = vmul.f32 %v4248, %v4082
        %v4269 = vmul.f32 %v4262, %v4083
        %v4270 = vadd.f32 %v4264, %v4265
        %v4271 = vadd.f32 %v4270, %v4266
        %4272 = vadd.xlane.f32.xlu0 %v4271
        %v4273 = vpop.xlane.xlu0 %4272
        %v4274 = vadd.f32 %v4267, %v4268
        %v4275 = vadd.f32 %v4274, %v4269
        %4276 = vadd.xlane.f32.xlu0 %v4275
        %v4277 = vpop.xlane.xlu0 %4276
        %v4278 = vmul.f32 %v4273, 0.00390625
        %v4279 = vmul.f32 %v4277, 0.00390625
        %v4280 = vsub.f32 %v4264, %v4278
        %v4281 = vsub.f32 %v4265, %v4278
        %v4282 = vsub.f32 %v4266, %v4278
        %v4283 = vsub.f32 %v4267, %v4279
        %v4284 = vsub.f32 %v4268, %v4279
        %v4285 = vsub.f32 %v4269, %v4279
        %v4286 = vmul.f32 %v4280, %v4081
        %v4287 = vmul.f32 %v4281, %v4082
        %v4288 = vmul.f32 %v4282, %v4083
        %v4289 = vmul.f32 %v4283, %v4081
        %v4290 = vmul.f32 %v4284, %v4082
        %v4291 = vmul.f32 %v4285, %v4083
        %v4292 = vmul.f32 %v4286, %v4286
        %v4293 = vmul.f32 %v4287, %v4287
        %v4294 = vmul.f32 %v4288, %v4288
        %v4295 = vmul.f32 %v4289, %v4289
        %v4296 = vmul.f32 %v4290, %v4290
        %v4297 = vmul.f32 %v4291, %v4291
        %v4298 = vadd.f32 %v4292, %v4293
        %v4299 = vadd.f32 %v4298, %v4294
        %4300 = vadd.xlane.f32.xlu0 %v4299
        %v4301 = vpop.xlane.xlu0 %4300
        %v4302 = vadd.f32 %v4295, %v4296
        %v4303 = vadd.f32 %v4302, %v4297
        %4304 = vadd.xlane.f32.xlu0 %v4303
        %v4305 = vpop.xlane.xlu0 %4304
        %v4306 = vmul.f32 %v4301, 0.00390625
        %v4307 = vmul.f32 %v4305, 0.00390625
        %v4308 = vadd.f32 %v4306, 1e-05
        %v4309 = vadd.f32 %v4307, 1e-05
        %v4310 = vrsqrt.pop %v4308
        %v4311 = vmul.f32 %v4310, %v4308
        %v4312 = vmul.f32 %v4311, %v4310
        %v4313 = vmul.f32 0.5, %v4312
        %v4314 = vsub.f32 1.5, %v4313
        %v4315 = vmul.f32 %v4310, %v4314
        %vm4316 = vweird.f32 %v4308
        %vm4317 = vweird.f32 %v4310
        %vm4318 = vmor %vm4316, %vm4317
        %v4319 = vsel %vm4318, %v4310, %v4315
        %v4320 = vrsqrt.pop %v4309
        %v4321 = vmul.f32 %v4320, %v4309
        %v4322 = vmul.f32 %v4321, %v4320
        %v4323 = vmul.f32 0.5, %v4322
        %v4324 = vsub.f32 1.5, %v4323
        %v4325 = vmul.f32 %v4320, %v4324
        %vm4326 = vweird.f32 %v4309
        %vm4327 = vweird.f32 %v4320
        %vm4328 = vmor %vm4326, %vm4327
        %v4329 = vsel %vm4328, %v4320, %v4325
        %v4330 = vmul.f32 %v4286, %v4319
        %v4331 = vmul.f32 %v4287, %v4319
        %v4332 = vmul.f32 %v4288, %v4319
        %v4333 = vmul.f32 %v4289, %v4329
        %v4334 = vmul.f32 %v4290, %v4329
        %v4335 = vmul.f32 %v4291, %v4329
        %v4336 = vadd.f32 %v4172, %v4330
        %v4337 = vadd.f32 %v4173, %v4331
        %v4338 = vadd.f32 %v4174, %v4332
        %v4339 = vadd.f32 %v4175, %v4333
        %v4340 = vadd.f32 %v4176, %v4334
        %v4341 = vadd.f32 %v4177, %v4335
        %vm4342 = vcmp.ge.f32.partialorder %v4336, 0.0
        %vm4343 = vcmp.ge.f32.partialorder %v4337, 0.0
        %vm4344 = vcmp.ge.f32.partialorder %v4338, 0.0
        %vm4345 = vcmp.ge.f32.partialorder %v4339, 0.0
        %vm4346 = vcmp.ge.f32.partialorder %v4340, 0.0
        %vm4347 = vcmp.ge.f32.partialorder %v4341, 0.0
        %v4348 = vstv %s380
        %v4349 = vmul.f32 %v4348, %v4336
        %v4350 = vmul.f32 %v4348, %v4337
        %v4351 = vmul.f32 %v4348, %v4338
        %v4352 = vmul.f32 %v4348, %v4339
        %v4353 = vmul.f32 %v4348, %v4340
        %v4354 = vmul.f32 %v4348, %v4341
        %v4355 = vsel %vm4342, %v4336, %v4349
        %v4356 = vsel %vm4343, %v4337, %v4350
        %v4357 = vsel %vm4344, %v4338, %v4351
        %v4358 = vsel %vm4345, %v4339, %v4352
        %v4359 = vsel %vm4346, %v4340, %v4353
        %v4360 = vsel %vm4347, %v4341, %v4354
        %4361 = vst [vmem:[%s376] sm:$0xff] %v4355
        %4362 = vst [vmem:[%s376 + $0x8] sm:$0xff] %v4356
        %4363 = vst [vmem:[%s376 + $0x10] sm:$0xff] %v4357
        %4364 = vst [vmem:[%s376 + $0x18] sm:$0xff] %v4358
        %4365 = vst [vmem:[%s376 + $0x20] sm:$0xff] %v4359
        %4366 = vst [vmem:[%s376 + $0x28] sm:$0xff] %v4360
        %s4367 = sand.u32 %s187, 1
        %s4368 = scalar_lea.sflag [#allocation7], %s4367
        %s4369 = sand.u32 %s187, 1
        %s4370 = smul.addr %s4369, 48
        %s4371 = scalar_lea.vmem [#allocation16], %s4370
        // Predicated region
        $region73: #{tpu_custom_call.1} parent=47 // pred_check
          %p4372 = pneg %p197
        $region74: #{tpu_custom_call.1} parent=47 // pred_check_branch
          %4374 = sbr.rel (%p4372) target = $region76
        $region75: #{tpu_custom_call.1} parent=47 // pred_region
          %4376 = vsyncadd %s4368, 0
          %s4377 = smul.addr %s27, 6
          %s4378 = smul.addr %s4377, 8
          %s4379 = scalar_lea.hbm %s7, %s4378
          %s4380 = sshll.u32 %s4371, 4
          %s4381 = int_to_ptr.vmem [resolvable:$true] %s4380
          %s4382 = sshll.u32 %s4379, 4
          %s4383 = int_to_ptr.hbm [resolvable:$true] %s4382
          %4388 = dma.vmem_to_hbm [thread:$0]  %s4381, 768, %s4383, %s4368, 384, 384, 24
        $region76: #{tpu_custom_call.1} parent=47 // pred_fallthru
          _
      $region48: #{tpu_custom_call.1} parent=5 // pred_fallthru
        _
      %p4389 = scmp.le.s32.totalorder 2, %s22
      // Predicated region
      $region77: #{tpu_custom_call.1} parent=5 // pred_check
        %p4390 = pneg %p4389
      $region78: #{tpu_custom_call.1} parent=5 // pred_check_branch
        %4392 = sbr.rel (%p4390) target = $region80
      $region79: #{tpu_custom_call.1} parent=5 // pred_region
        %s4393 = ssub.s32 %s22, 2
        // Predicated region
        $region81: #{tpu_custom_call.1} parent=79 // pred_check
          %p4394 = pneg %p203
        $region82: #{tpu_custom_call.1} parent=79 // pred_check_branch
          %4396 = sbr.rel (%p4394) target = $region84
        $region83: #{tpu_custom_call.1} parent=79 // pred_region
          %s4397 = sand.u32 %s188, 1
          %s4398 = scalar_lea.sflag [#allocation7], %s4397
          %s4399 = sand.u32 %s188, 1
          %s4400 = smul.addr %s4399, 48
          %s4401 = scalar_lea.vmem [#allocation16], %s4400
          %4403 = dma.done %s4398, 768
        $region84: #{tpu_custom_call.1} parent=79 // pred_fallthru
          _
      $region80: #{tpu_custom_call.1} parent=5 // pred_fallthru
        _
    $region6: #{tpu_custom_call.1} parent=1 // loop_footer
      %s26 = sadd.s32 1, %s22
    $region7: #{tpu_custom_call.1} parent=1 // loop_footer_branch
      %21 = sbr.rel target = $region3
    $region8: #{tpu_custom_call.1} parent=1 // loop_exit
      _
    %4404 = vsyncpa [#allocation6], 1
    %s4405 = scalar_lea.sflag [#allocation6], 1
    %4406 = vsyncpa %s4405, 1
    %4407 = vsyncpa [#allocation10], 1
    %4408 = vsyncpa [#allocation13], 1
    %4409 = vsyncpa [#allocation7], 1
    %s4410 = scalar_lea.sflag [#allocation7], 1
    %4411 = vsyncpa %s4410, 1
    %4412 = vsyncpa [#allocation8], 1
    %s4413 = scalar_lea.sflag [#allocation8], 1
    %4414 = vsyncpa %s4413, 1

</llo_original>
